<compile_context>
chip_gen: v6e
topology: v6e:2x2x1
jax: 0.10.0
libtpu: 0.0.40
codegen_flags: <defaults>
</compile_context>

<pallas_src>
import functools

import jax
import jax.numpy as jnp
from jax import lax
from jax.experimental import pallas as pl
from jax.experimental.pallas import tpu as pltpu

LANE = 128
_UNROLL_EDGE_LIMIT = 512   # fully unroll the scatter loop below this many edges


def _vmem():
    return pl.BlockSpec(memory_space=pltpu.MemorySpace.VMEM)


def _smem():
    return pl.BlockSpec(memory_space=pltpu.MemorySpace.SMEM)


# -----------------------------------------------------------------------------
# Fused GCNConv (+ optional BatchNorm+ReLU epilogue) kernel
# -----------------------------------------------------------------------------
def gcn_layer_kernel(col_ref,                              # SMEM [E] i32 (dst per edge)
                     x_ref, xsrc_ref, wt_ref,              # VMEM bf16
                     eemb_ref, norm_ref, root_ref,         # VMEM f32
                     inv_deg_ref, gamma_ref, beta_ref,     # VMEM f32
                     out_ref,                              # VMEM out [N, DP] bf16
                     msg_scr, agg_scr,                     # VMEM f32 scratch
                     *, n_edges, apply_bn):
    # 1) per-edge messages, fully vectorized:
    #    h_src = x[src] @ W^T on the MXU (== (x @ W^T)[src] by linearity),
    #    msg   = norm * relu(h_src + e_emb) on the VPU over [E, DP].
    h_src = jnp.dot(xsrc_ref[...], wt_ref[...], preferred_element_type=jnp.float32)
    msg_scr[...] = norm_ref[...] * jnp.maximum(h_src + eemb_ref[...], 0.0)

    # 2) scatter-add messages to dst nodes (only serial per-edge piece left).
    agg_scr[...] = jnp.zeros_like(agg_scr)
    if n_edges <= _UNROLL_EDGE_LIMIT:
        for e in range(n_edges):                  # fully unrolled at trace time
            d = col_ref[e]
            agg_scr[pl.ds(d, 1), :] = (agg_scr[pl.ds(d, 1), :]
                                       + msg_scr[pl.ds(e, 1), :])
    else:
        def scatter_body(e, carry):
            d = col_ref[e]
            agg_scr[pl.ds(d, 1), :] = (agg_scr[pl.ds(d, 1), :]
                                       + msg_scr[pl.ds(e, 1), :])
            return carry
        lax.fori_loop(0, n_edges, scatter_body, 0)

    # 3) self-loop term: relu(x @ W^T + root) * (1/deg)   (reciprocal precomputed)
    h = jnp.dot(x_ref[...], wt_ref[...], preferred_element_type=jnp.float32)
    out = agg_scr[...] + jnp.maximum(h + root_ref[...], 0.0) * inv_deg_ref[...]

    # 4) fused BatchNorm1d (batch stats, eps=1e-5, f32) + ReLU epilogue
    if apply_bn:
        mean = jnp.mean(out, axis=0, keepdims=True)
        var = jnp.mean((out - mean) ** 2, axis=0, keepdims=True)
        out = (out - mean) * lax.rsqrt(var + 1e-5) * gamma_ref[...] + beta_ref[...]
        out = jnp.maximum(out, 0.0)
        # dropout: identity  # TODO(synk): training-mode random dropout omitted

    out_ref[...] = out.astype(out_ref.dtype)


def gcn_layer(col, x, x_src, wt, eemb, norm, root, inv_deg, gamma, beta, *, apply_bn):
    N, DP = x.shape
    E = x_src.shape[0]
    kernel = functools.partial(gcn_layer_kernel, n_edges=E, apply_bn=apply_bn)
    return pl.pallas_call(
        kernel,
        out_shape=jax.ShapeDtypeStruct((N, DP), jnp.bfloat16),
        in_specs=[_smem(),
                  _vmem(), _vmem(), _vmem(),
                  _vmem(), _vmem(), _vmem(),
                  _vmem(), _vmem(), _vmem()],
        out_specs=_vmem(),
        scratch_shapes=[pltpu.VMEM((E, DP), jnp.float32),   # per-edge messages
                        pltpu.VMEM((N, DP), jnp.float32)],  # scatter-add accumulator
    )(col, x, x_src, wt, eemb, norm, root, inv_deg, gamma, beta)


# -----------------------------------------------------------------------------
# Fused readout: global mean pool (one-hot matmul on MXU) + graph prediction fc
# -----------------------------------------------------------------------------
def readout_kernel(pool_ref, x_ref, wpred_ref, out_ref):
    pooled = jnp.dot(pool_ref[...], x_ref[...],
                     preferred_element_type=jnp.float32)       # [GP, DP]
    out_ref[...] = jnp.dot(pooled.astype(jnp.bfloat16), wpred_ref[...],
                           preferred_element_type=jnp.float32)  # [GP, CP]


def readout_pred(pool, x, wpred_t):
    GP = pool.shape[0]
    CP = wpred_t.shape[1]
    return pl.pallas_call(
        readout_kernel,
        out_shape=jax.ShapeDtypeStruct((GP, CP), jnp.float32),
        in_specs=[_vmem(), _vmem(), _vmem()],
        out_specs=_vmem(),
    )(pool, x, wpred_t)


# -----------------------------------------------------------------------------
# Parameter init (deterministic, synthetic) — stored lane-padded to 128
# -----------------------------------------------------------------------------
def init_params(key, emb_dim, num_classes, num_layers,
                atom_vocab=(16,) * 9, bond_vocab=(8,) * 3):
    D, C = emb_dim, num_classes
    DP = ((D + LANE - 1) // LANE) * LANE
    CP = ((C + LANE - 1) // LANE) * LANE

    def pad_last(a):
        return jnp.pad(a, [(0, 0)] * (a.ndim - 1) + [(0, DP - a.shape[-1])])

    gain = jnp.sqrt(2.0)  # relu gain
    params = {}
    key, *ks = jax.random.split(key, len(atom_vocab) + 1)
    params["atom_emb"] = [
        pad_last(0.1 * jax.random.normal(k, (v, D), jnp.float32))
        for k, v in zip(ks, atom_vocab)]

    layers = []
    for _ in range(num_layers):
        key, kfc, kroot, *kb = jax.random.split(key, 3 + len(bond_vocab))
        bound = gain * jnp.sqrt(6.0 / (D + D))            # xavier_uniform
        w = jax.random.uniform(kfc, (D, D), jnp.float32, -bound, bound)
        wt = jnp.zeros((DP, DP), jnp.float32).at[:D, :D].set(w.T)   # x @ W^T
        layers.append({
            "fc_wt": wt.astype(jnp.bfloat16),
            "root": pad_last(0.1 * jax.random.normal(kroot, (1, D), jnp.float32)),
            "bond_emb": [pad_last(0.1 * jax.random.normal(k, (v, D), jnp.float32))
                         for k, v in zip(kb, bond_vocab)],
        })
    params["layers"] = layers

    params["bn"] = [{
        "gamma": pad_last(jnp.ones((1, D), jnp.float32)),
        "beta": jnp.zeros((1, DP), jnp.float32),
    } for _ in range(num_layers - 1)]

    key, kp = jax.random.split(key)
    bound = 1.0 / jnp.sqrt(D)
    wpred = jax.random.uniform(kp, (C, D), jnp.float32, -bound, bound)
    wpred_t = jnp.zeros((DP, CP), jnp.float32).at[:D, :C].set(wpred.T)
    params["pred_wt"] = wpred_t.astype(jnp.bfloat16)
    return params


# -----------------------------------------------------------------------------
# Forward pass
# -----------------------------------------------------------------------------
def gcn_forward(params, x_atom, edge_index, edge_attr, batch, *,
                num_graphs, num_classes):
    N = x_atom.shape[0]
    E = edge_index.shape[1]
    DP = params["atom_emb"][0].shape[1]
    row, col = edge_index[0], edge_index[1]

    # AtomEncoder: sum of per-feature embedding lookups (plain-JAX gather glue)
    h = jnp.zeros((N, DP), jnp.float32)
    for f, tbl in enumerate(params["atom_emb"]):
        h = h + tbl[x_atom[:, f]]
    h = h.astype(jnp.bfloat16)

    # Per-node / per-edge normalization constants, shared by all layers.
    deg = jnp.zeros((N,), jnp.float32).at[row].add(1.0) + 1.0
    dis = deg ** -0.5
    norm = (dis[row] * dis[col]).reshape(E, 1).astype(jnp.float32)  # [E,1]
    inv_deg = (1.0 / deg).reshape(N, 1)                             # reciprocal, once

    num_layers = len(params["layers"])
    for i, lp in enumerate(params["layers"]):
        # BondEncoder for this layer (integer embedding gather glue)
        eemb = jnp.zeros((E, DP), jnp.float32)
        for f, tbl in enumerate(lp["bond_emb"]):
            eemb = eemb + tbl[edge_attr[:, f]]

        # Source-row gather in glue; transformed on the MXU inside the kernel.
        x_src = jnp.take(h, row, axis=0)                            # [E, DP] bf16

        apply_bn = i < num_layers - 1
        if apply_bn:
            gamma, beta = params["bn"][i]["gamma"], params["bn"][i]["beta"]
        else:  # unused by the last-layer kernel variant
            gamma = jnp.ones((1, DP), jnp.float32)
            beta = jnp.zeros((1, DP), jnp.float32)

        h = gcn_layer(col, h, x_src, lp["fc_wt"], eemb, norm, lp["root"],
                      inv_deg, gamma, beta, apply_bn=apply_bn)

    # global_mean_pool as a (scaled) one-hot matmul on the MXU + graph_pred_fc
    G = num_graphs
    GP = ((G + 7) // 8) * 8
    onehot = (batch[None, :] == jnp.arange(G, dtype=batch.dtype)[:, None]
              ).astype(jnp.float32)                                 # [G, N]
    counts = jnp.sum(onehot, axis=1, keepdims=True)
    pool = onehot / jnp.maximum(counts, 1.0)
    pool = jnp.pad(pool, ((0, GP - G), (0, 0))).astype(jnp.bfloat16)

    logits = readout_pred(pool, h, params["pred_wt"])               # [GP, CP] f32
    return logits[:G, :num_classes]


# -----------------------------------------------------------------------------
if __name__ == "__main__":
    key = jax.random.PRNGKey(0)
    emb_dim, num_classes, num_layers = 32, 2, 3
    N, E, G = 32, 64, 4

    k1, k2, k3, kp = jax.random.split(key, 4)
    x_atom = jax.random.randint(k1, (N, 9), 0, 16, dtype=jnp.int32)
    edge_index = jax.random.randint(k2, (2, E), 0, N, dtype=jnp.int32)
    edge_attr = jax.random.randint(k3, (E, 3), 0, 8, dtype=jnp.int32)
    batch = jnp.repeat(jnp.arange(G, dtype=jnp.int32), N // G)

    params = init_params(kp, emb_dim, num_classes, num_layers)

    fwd = jax.jit(functools.partial(gcn_forward, num_graphs=G,
                                    num_classes=num_classes))
    out = fwd(params, x_atom, edge_index, edge_attr, batch)
    out = jax.block_until_ready(out)
    assert out.shape == (G, num_classes)
    print("KERNEL_OK")
</pallas_src>

<mosaic_0001>
module attributes {stable_mosaic.version = 11 : i64} {
  func.func private @main(%arg0: i32) attributes {dimension_semantics = [#tpu.dimension_semantics<core_parallel>], iteration_bounds = array<i64: 2>, tpu.core_type = #tpu.core_type<sc_scalar_subcore>, window_params = []} {
    return
  }
}

module attributes {stable_mosaic.version = 11 : i64} {
  func.func private @main(%arg0: i32) attributes {dimension_semantics = [#tpu.dimension_semantics<core_parallel>], iteration_bounds = array<i64: 2>, tpu.core_type = #tpu.core_type<sc_scalar_subcore>, window_params = []} {
    return
  }
}

module attributes {stable_mosaic.version = 11 : i64} {
  func.func @readout_kernel(%arg0: memref<8x32xbf16, #tpu.memory_space<vmem>>, %arg1: memref<32x128xbf16, #tpu.memory_space<vmem>>, %arg2: memref<128x128xbf16, #tpu.memory_space<vmem>>, %arg3: memref<8x128xf32, #tpu.memory_space<vmem>>) attributes {dimension_semantics = [], scalar_prefetch = 0 : i64, scratch_operands = 0 : i64, tpu.core_type = #tpu.core_type<tc>} {
    %c0 = arith.constant 0 : index
    %c0_0 = arith.constant 0 : index
    %0 = vector.load %arg0[%c0, %c0_0] : memref<8x32xbf16, #tpu.memory_space<vmem>>, vector<8x32xbf16>
    %c0_1 = arith.constant 0 : index
    %c0_2 = arith.constant 0 : index
    %1 = vector.load %arg1[%c0_1, %c0_2] : memref<32x128xbf16, #tpu.memory_space<vmem>>, vector<32x128xbf16>
    %cst = arith.constant dense<0.000000e+00> : vector<8x128xf32>
    %2 = tpu.matmul %0, %1, %cst {dimension_numbers = #tpu.dot_dimension_numbers<[1], [0], [0], [1], [0, 0, 1, 1], [], []>} : vector<8x32xbf16>, vector<32x128xbf16>, vector<8x128xf32> -> vector<8x128xf32>
    %3 = arith.truncf %2 : vector<8x128xf32> to vector<8x128xbf16>
    %c0_3 = arith.constant 0 : index
    %c0_4 = arith.constant 0 : index
    %4 = vector.load %arg2[%c0_3, %c0_4] : memref<128x128xbf16, #tpu.memory_space<vmem>>, vector<128x128xbf16>
    %cst_5 = arith.constant dense<0.000000e+00> : vector<8x128xf32>
    %5 = tpu.matmul %3, %4, %cst_5 {dimension_numbers = #tpu.dot_dimension_numbers<[1], [0], [0], [1], [0, 0, 1, 1], [], []>} : vector<8x128xbf16>, vector<128x128xbf16>, vector<8x128xf32> -> vector<8x128xf32>
    %c0_6 = arith.constant 0 : index
    %c0_7 = arith.constant 0 : index
    %6 = vector.load %arg3[%c0_6, %c0_7] : memref<8x128xf32, #tpu.memory_space<vmem>>, vector<8x128xf32>
    tpu.vector_store %arg3[%c0_6, %c0_7], %5 {strides = array<i32>} : memref<8x128xf32, #tpu.memory_space<vmem>>, vector<8x128xf32>,
    return
  }
}

module attributes {stable_mosaic.version = 11 : i64} {
  func.func @gcn_layer_kernel(%arg0: memref<64xi32, #tpu.memory_space<smem>>, %arg1: memref<32x128xbf16, #tpu.memory_space<vmem>>, %arg2: memref<64x128xbf16, #tpu.memory_space<vmem>>, %arg3: memref<128x128xbf16, #tpu.memory_space<vmem>>, %arg4: memref<64x128xf32, #tpu.memory_space<vmem>>, %arg5: memref<64x1xf32, #tpu.memory_space<vmem>>, %arg6: memref<1x128xf32, #tpu.memory_space<vmem>>, %arg7: memref<32x1xf32, #tpu.memory_space<vmem>>, %arg8: memref<1x128xf32, #tpu.memory_space<vmem>>, %arg9: memref<1x128xf32, #tpu.memory_space<vmem>>, %arg10: memref<32x128xbf16, #tpu.memory_space<vmem>>, %arg11: memref<64x128xf32, #tpu.memory_space<vmem>>, %arg12: memref<32x128xf32, #tpu.memory_space<vmem>>) attributes {dimension_semantics = [], scalar_prefetch = 0 : i64, scratch_operands = 2 : i64, tpu.core_type = #tpu.core_type<tc>} {
    %c0 = arith.constant 0 : index
    %c0_0 = arith.constant 0 : index
    %0 = vector.load %arg2[%c0, %c0_0] : memref<64x128xbf16, #tpu.memory_space<vmem>>, vector<64x128xbf16>
    %c0_1 = arith.constant 0 : index
    %c0_2 = arith.constant 0 : index
    %1 = vector.load %arg3[%c0_1, %c0_2] : memref<128x128xbf16, #tpu.memory_space<vmem>>, vector<128x128xbf16>
    %cst = arith.constant dense<0.000000e+00> : vector<64x128xf32>
    %2 = tpu.matmul %0, %1, %cst {dimension_numbers = #tpu.dot_dimension_numbers<[1], [0], [0], [1], [0, 0, 1, 1], [], []>} : vector<64x128xbf16>, vector<128x128xbf16>, vector<64x128xf32> -> vector<64x128xf32>
    %c0_3 = arith.constant 0 : index
    %c0_4 = arith.constant 0 : index
    %3 = vector.load %arg5[%c0_3, %c0_4] : memref<64x1xf32, #tpu.memory_space<vmem>>, vector<64x1xf32>
    %c0_5 = arith.constant 0 : index
    %c0_6 = arith.constant 0 : index
    %4 = vector.load %arg4[%c0_5, %c0_6] : memref<64x128xf32, #tpu.memory_space<vmem>>, vector<64x128xf32>
    %5 = arith.addf %2, %4 : vector<64x128xf32>
    %cst_7 = arith.constant 0.000000e+00 : f32
    %6 = vector.broadcast %cst_7 : f32 to vector<64x128xf32>
    %7 = arith.maximumf %5, %6 : vector<64x128xf32>
    %8 = vector.broadcast %3 : vector<64x1xf32> to vector<64x128xf32>
    %9 = arith.mulf %8, %7 : vector<64x128xf32>
    %c0_8 = arith.constant 0 : index
    %c0_9 = arith.constant 0 : index
    %10 = vector.load %arg11[%c0_8, %c0_9] : memref<64x128xf32, #tpu.memory_space<vmem>>, vector<64x128xf32>
    tpu.vector_store %arg11[%c0_8, %c0_9], %9 {strides = array<i32>} : memref<64x128xf32, #tpu.memory_space<vmem>>, vector<64x128xf32>,
    %cst_10 = arith.constant 0.000000e+00 : f32
    %11 = vector.broadcast %cst_10 : f32 to vector<32x128xf32>
    %c0_11 = arith.constant 0 : index
    %c0_12 = arith.constant 0 : index
    %12 = vector.load %arg12[%c0_11, %c0_12] : memref<32x128xf32, #tpu.memory_space<vmem>>, vector<32x128xf32>
    tpu.vector_store %arg12[%c0_11, %c0_12], %11 {strides = array<i32>} : memref<32x128xf32, #tpu.memory_space<vmem>>, vector<32x128xf32>,
    %c0_13 = arith.constant 0 : index
    %13 = memref.load %arg0[%c0_13] : memref<64xi32, #tpu.memory_space<smem>>
    %14 = arith.index_cast %13 : i32 to index
    %c0_14 = arith.constant 0 : index
    %15 = vector.load %arg12[%14, %c0_14] : memref<32x128xf32, #tpu.memory_space<vmem>>, vector<1x128xf32>
    %c0_15 = arith.constant 0 : index
    %c0_16 = arith.constant 0 : index
    %16 = vector.load %arg11[%c0_15, %c0_16] : memref<64x128xf32, #tpu.memory_space<vmem>>, vector<1x128xf32>
    %17 = arith.addf %15, %16 : vector<1x128xf32>
    %18 = arith.index_cast %13 : i32 to index
    %c0_17 = arith.constant 0 : index
    %19 = vector.load %arg12[%18, %c0_17] : memref<32x128xf32, #tpu.memory_space<vmem>>, vector<1x128xf32>
    tpu.vector_store %arg12[%18, %c0_17], %17 {strides = array<i32>} : memref<32x128xf32, #tpu.memory_space<vmem>>, vector<1x128xf32>,
    %c1 = arith.constant 1 : index
    %20 = memref.load %arg0[%c1] : memref<64xi32, #tpu.memory_space<smem>>
    %21 = arith.index_cast %20 : i32 to index
    %c0_18 = arith.constant 0 : index
    %22 = vector.load %arg12[%21, %c0_18] : memref<32x128xf32, #tpu.memory_space<vmem>>, vector<1x128xf32>
    %c1_19 = arith.constant 1 : index
    %c0_20 = arith.constant 0 : index
    %23 = vector.load %arg11[%c1_19, %c0_20] : memref<64x128xf32, #tpu.memory_space<vmem>>, vector<1x128xf32>
    %24 = arith.addf %22, %23 : vector<1x128xf32>
    %25 = arith.index_cast %20 : i32 to index
    %c0_21 = arith.constant 0 : index
    %26 = vector.load %arg12[%25, %c0_21] : memref<32x128xf32, #tpu.memory_space<vmem>>, vector<1x128xf32>
    tpu.vector_store %arg12[%25, %c0_21], %24 {strides = array<i32>} : memref<32x128xf32, #tpu.memory_space<vmem>>, vector<1x128xf32>,
    %c2 = arith.constant 2 : index
    %27 = memref.load %arg0[%c2] : memref<64xi32, #tpu.memory_space<smem>>
    %28 = arith.index_cast %27 : i32 to index
    %c0_22 = arith.constant 0 : index
    %29 = vector.load %arg12[%28, %c0_22] : memref<32x128xf32, #tpu.memory_space<vmem>>, vector<1x128xf32>
    %c2_23 = arith.constant 2 : index
    %c0_24 = arith.constant 0 : index
    %30 = vector.load %arg11[%c2_23, %c0_24] : memref<64x128xf32, #tpu.memory_space<vmem>>, vector<1x128xf32>
    %31 = arith.addf %29, %30 : vector<1x128xf32>
    %32 = arith.index_cast %27 : i32 to index
    %c0_25 = arith.constant 0 : index
    %33 = vector.load %arg12[%32, %c0_25] : memref<32x128xf32, #tpu.memory_space<vmem>>, vector<1x128xf32>
    tpu.vector_store %arg12[%32, %c0_25], %31 {strides = array<i32>} : memref<32x128xf32, #tpu.memory_space<vmem>>, vector<1x128xf32>,
    %c3 = arith.constant 3 : index
    %34 = memref.load %arg0[%c3] : memref<64xi32, #tpu.memory_space<smem>>
    %35 = arith.index_cast %34 : i32 to index
    %c0_26 = arith.constant 0 : index
    %36 = vector.load %arg12[%35, %c0_26] : memref<32x128xf32, #tpu.memory_space<vmem>>, vector<1x128xf32>
    %c3_27 = arith.constant 3 : index
    %c0_28 = arith.constant 0 : index
    %37 = vector.load %arg11[%c3_27, %c0_28] : memref<64x128xf32, #tpu.memory_space<vmem>>, vector<1x128xf32>
    %38 = arith.addf %36, %37 : vector<1x128xf32>
    %39 = arith.index_cast %34 : i32 to index
    %c0_29 = arith.constant 0 : index
    %40 = vector.load %arg12[%39, %c0_29] : memref<32x128xf32, #tpu.memory_space<vmem>>, vector<1x128xf32>
    tpu.vector_store %arg12[%39, %c0_29], %38 {strides = array<i32>} : memref<32x128xf32, #tpu.memory_space<vmem>>, vector<1x128xf32>,
    %c4 = arith.constant 4 : index
    %41 = memref.load %arg0[%c4] : memref<64xi32, #tpu.memory_space<smem>>
    %42 = arith.index_cast %41 : i32 to index
    %c0_30 = arith.constant 0 : index
    %43 = vector.load %arg12[%42, %c0_30] : memref<32x128xf32, #tpu.memory_space<vmem>>, vector<1x128xf32>
    %c4_31 = arith.constant 4 : index
    %c0_32 = arith.constant 0 : index
    %44 = vector.load %arg11[%c4_31, %c0_32] : memref<64x128xf32, #tpu.memory_space<vmem>>, vector<1x128xf32>
    %45 = arith.addf %43, %44 : vector<1x128xf32>
    %46 = arith.index_cast %41 : i32 to index
    %c0_33 = arith.constant 0 : index
    %47 = vector.load %arg12[%46, %c0_33] : memref<32x128xf32, #tpu.memory_space<vmem>>, vector<1x128xf32>
    tpu.vector_store %arg12[%46, %c0_33], %45 {strides = array<i32>} : memref<32x128xf32, #tpu.memory_space<vmem>>, vector<1x128xf32>,
    %c5 = arith.constant 5 : index
    %48 = memref.load %arg0[%c5] : memref<64xi32, #tpu.memory_space<smem>>
    %49 = arith.index_cast %48 : i32 to index
    %c0_34 = arith.constant 0 : index
    %50 = vector.load %arg12[%49, %c0_34] : memref<32x128xf32, #tpu.memory_space<vmem>>, vector<1x128xf32>
    %c5_35 = arith.constant 5 : index
    %c0_36 = arith.constant 0 : index
    %51 = vector.load %arg11[%c5_35, %c0_36] : memref<64x128xf32, #tpu.memory_space<vmem>>, vector<1x128xf32>
    %52 = arith.addf %50, %51 : vector<1x128xf32>
    %53 = arith.index_cast %48 : i32 to index
    %c0_37 = arith.constant 0 : index
    %54 = vector.load %arg12[%53, %c0_37] : memref<32x128xf32, #tpu.memory_space<vmem>>, vector<1x128xf32>
    tpu.vector_store %arg12[%53, %c0_37], %52 {strides = array<i32>} : memref<32x128xf32, #tpu.memory_space<vmem>>, vector<1x128xf32>,
    %c6 = arith.constant 6 : index
    %55 = memref.load %arg0[%c6] : memref<64xi32, #tpu.memory_space<smem>>
    %56 = arith.index_cast %55 : i32 to index
    %c0_38 = arith.constant 0 : index
    %57 = vector.load %arg12[%56, %c0_38] : memref<32x128xf32, #tpu.memory_space<vmem>>, vector<1x128xf32>
    %c6_39 = arith.constant 6 : index
    %c0_40 = arith.constant 0 : index
    %58 = vector.load %arg11[%c6_39, %c0_40] : memref<64x128xf32, #tpu.memory_space<vmem>>, vector<1x128xf32>
    %59 = arith.addf %57, %58 : vector<1x128xf32>
    %60 = arith.index_cast %55 : i32 to index
    %c0_41 = arith.constant 0 : index
    %61 = vector.load %arg12[%60, %c0_41] : memref<32x128xf32, #tpu.memory_space<vmem>>, vector<1x128xf32>
    tpu.vector_store %arg12[%60, %c0_41], %59 {strides = array<i32>} : memref<32x128xf32, #tpu.memory_space<vmem>>, vector<1x128xf32>,
    %c7 = arith.constant 7 : index
    %62 = memref.load %arg0[%c7] : memref<64xi32, #tpu.memory_space<smem>>
    %63 = arith.index_cast %62 : i32 to index
    %c0_42 = arith.constant 0 : index
    %64 = vector.load %arg12[%63, %c0_42] : memref<32x128xf32, #tpu.memory_space<vmem>>, vector<1x128xf32>
    %c7_43 = arith.constant 7 : index
    %c0_44 = arith.constant 0 : index
    %65 = vector.load %arg11[%c7_43, %c0_44] : memref<64x128xf32, #tpu.memory_space<vmem>>, vector<1x128xf32>
    %66 = arith.addf %64, %65 : vector<1x128xf32>
    %67 = arith.index_cast %62 : i32 to index
    %c0_45 = arith.constant 0 : index
    %68 = vector.load %arg12[%67, %c0_45] : memref<32x128xf32, #tpu.memory_space<vmem>>, vector<1x128xf32>
    tpu.vector_store %arg12[%67, %c0_45], %66 {strides = array<i32>} : memref<32x128xf32, #tpu.memory_space<vmem>>, vector<1x128xf32>,
    %c8 = arith.constant 8 : index
    %69 = memref.load %arg0[%c8] : memref<64xi32, #tpu.memory_space<smem>>
    %70 = arith.index_cast %69 : i32 to index
    %c0_46 = arith.constant 0 : index
    %71 = vector.load %arg12[%70, %c0_46] : memref<32x128xf32, #tpu.memory_space<vmem>>, vector<1x128xf32>
    %c8_47 = arith.constant 8 : index
    %c0_48 = arith.constant 0 : index
    %72 = vector.load %arg11[%c8_47, %c0_48] : memref<64x128xf32, #tpu.memory_space<vmem>>, vector<1x128xf32>
    %73 = arith.addf %71, %72 : vector<1x128xf32>
    %74 = arith.index_cast %69 : i32 to index
    %c0_49 = arith.constant 0 : index
    %75 = vector.load %arg12[%74, %c0_49] : memref<32x128xf32, #tpu.memory_space<vmem>>, vector<1x128xf32>
    tpu.vector_store %arg12[%74, %c0_49], %73 {strides = array<i32>} : memref<32x128xf32, #tpu.memory_space<vmem>>, vector<1x128xf32>,
    %c9 = arith.constant 9 : index
    %76 = memref.load %arg0[%c9] : memref<64xi32, #tpu.memory_space<smem>>
    %77 = arith.index_cast %76 : i32 to index
    %c0_50 = arith.constant 0 : index
    %78 = vector.load %arg12[%77, %c0_50] : memref<32x128xf32, #tpu.memory_space<vmem>>, vector<1x128xf32>
    %c9_51 = arith.constant 9 : index
    %c0_52 = arith.constant 0 : index
    %79 = vector.load %arg11[%c9_51, %c0_52] : memref<64x128xf32, #tpu.memory_space<vmem>>, vector<1x128xf32>
    %80 = arith.addf %78, %79 : vector<1x128xf32>
    %81 = arith.index_cast %76 : i32 to index
    %c0_53 = arith.constant 0 : index
    %82 = vector.load %arg12[%81, %c0_53] : memref<32x128xf32, #tpu.memory_space<vmem>>, vector<1x128xf32>
    tpu.vector_store %arg12[%81, %c0_53], %80 {strides = array<i32>} : memref<32x128xf32, #tpu.memory_space<vmem>>, vector<1x128xf32>,
    %c10 = arith.constant 10 : index
    %83 = memref.load %arg0[%c10] : memref<64xi32, #tpu.memory_space<smem>>
    %84 = arith.index_cast %83 : i32 to index
    %c0_54 = arith.constant 0 : index
    %85 = vector.load %arg12[%84, %c0_54] : memref<32x128xf32, #tpu.memory_space<vmem>>, vector<1x128xf32>
    %c10_55 = arith.constant 10 : index
    %c0_56 = arith.constant 0 : index
    %86 = vector.load %arg11[%c10_55, %c0_56] : memref<64x128xf32, #tpu.memory_space<vmem>>, vector<1x128xf32>
    %87 = arith.addf %85, %86 : vector<1x128xf32>
    %88 = arith.index_cast %83 : i32 to index
    %c0_57 = arith.constant 0 : index
    %89 = vector.load %arg12[%88, %c0_57] : memref<32x128xf32, #tpu.memory_space<vmem>>, vector<1x128xf32>
    tpu.vector_store %arg12[%88, %c0_57], %87 {strides = array<i32>} : memref<32x128xf32, #tpu.memory_space<vmem>>, vector<1x128xf32>,
    %c11 = arith.constant 11 : index
    %90 = memref.load %arg0[%c11] : memref<64xi32, #tpu.memory_space<smem>>
    %91 = arith.index_cast %90 : i32 to index
    %c0_58 = arith.constant 0 : index
    %92 = vector.load %arg12[%91, %c0_58] : memref<32x128xf32, #tpu.memory_space<vmem>>, vector<1x128xf32>
    %c11_59 = arith.constant 11 : index
    %c0_60 = arith.constant 0 : index
    %93 = vector.load %arg11[%c11_59, %c0_60] : memref<64x128xf32, #tpu.memory_space<vmem>>, vector<1x128xf32>
    %94 = arith.addf %92, %93 : vector<1x128xf32>
    %95 = arith.index_cast %90 : i32 to index
    %c0_61 = arith.constant 0 : index
    %96 = vector.load %arg12[%95, %c0_61] : memref<32x128xf32, #tpu.memory_space<vmem>>, vector<1x128xf32>
    tpu.vector_store %arg12[%95, %c0_61], %94 {strides = array<i32>} : memref<32x128xf32, #tpu.memory_space<vmem>>, vector<1x128xf32>,
    %c12 = arith.constant 12 : index
    %97 = memref.load %arg0[%c12] : memref<64xi32, #tpu.memory_space<smem>>
    %98 = arith.index_cast %97 : i32 to index
    %c0_62 = arith.constant 0 : index
    %99 = vector.load %arg12[%98, %c0_62] : memref<32x128xf32, #tpu.memory_space<vmem>>, vector<1x128xf32>
    %c12_63 = arith.constant 12 : index
    %c0_64 = arith.constant 0 : index
    %100 = vector.load %arg11[%c12_63, %c0_64] : memref<64x128xf32, #tpu.memory_space<vmem>>, vector<1x128xf32>
    %101 = arith.addf %99, %100 : vector<1x128xf32>
    %102 = arith.index_cast %97 : i32 to index
    %c0_65 = arith.constant 0 : index
    %103 = vector.load %arg12[%102, %c0_65] : memref<32x128xf32, #tpu.memory_space<vmem>>, vector<1x128xf32>
    tpu.vector_store %arg12[%102, %c0_65], %101 {strides = array<i32>} : memref<32x128xf32, #tpu.memory_space<vmem>>, vector<1x128xf32>,
    %c13 = arith.constant 13 : index
    %104 = memref.load %arg0[%c13] : memref<64xi32, #tpu.memory_space<smem>>
    %105 = arith.index_cast %104 : i32 to index
    %c0_66 = arith.constant 0 : index
    %106 = vector.load %arg12[%105, %c0_66] : memref<32x128xf32, #tpu.memory_space<vmem>>, vector<1x128xf32>
    %c13_67 = arith.constant 13 : index
    %c0_68 = arith.constant 0 : index
    %107 = vector.load %arg11[%c13_67, %c0_68] : memref<64x128xf32, #tpu.memory_space<vmem>>, vector<1x128xf32>
    %108 = arith.addf %106, %107 : vector<1x128xf32>
    %109 = arith.index_cast %104 : i32 to index
    %c0_69 = arith.constant 0 : index
    %110 = vector.load %arg12[%109, %c0_69] : memref<32x128xf32, #tpu.memory_space<vmem>>, vector<1x128xf32>
    tpu.vector_store %arg12[%109, %c0_69], %108 {strides = array<i32>} : memref<32x128xf32, #tpu.memory_space<vmem>>, vector<1x128xf32>,
    %c14 = arith.constant 14 : index
    %111 = memref.load %arg0[%c14] : memref<64xi32, #tpu.memory_space<smem>>
    %112 = arith.index_cast %111 : i32 to index
    %c0_70 = arith.constant 0 : index
    %113 = vector.load %arg12[%112, %c0_70] : memref<32x128xf32, #tpu.memory_space<vmem>>, vector<1x128xf32>
    %c14_71 = arith.constant 14 : index
    %c0_72 = arith.constant 0 : index
    %114 = vector.load %arg11[%c14_71, %c0_72] : memref<64x128xf32, #tpu.memory_space<vmem>>, vector<1x128xf32>
    %115 = arith.addf %113, %114 : vector<1x128xf32>
    %116 = arith.index_cast %111 : i32 to index
    %c0_73 = arith.constant 0 : index
    %117 = vector.load %arg12[%116, %c0_73] : memref<32x128xf32, #tpu.memory_space<vmem>>, vector<1x128xf32>
    tpu.vector_store %arg12[%116, %c0_73], %115 {strides = array<i32>} : memref<32x128xf32, #tpu.memory_space<vmem>>, vector<1x128xf32>,
    %c15 = arith.constant 15 : index
    %118 = memref.load %arg0[%c15] : memref<64xi32, #tpu.memory_space<smem>>
    %119 = arith.index_cast %118 : i32 to index
    %c0_74 = arith.constant 0 : index
    %120 = vector.load %arg12[%119, %c0_74] : memref<32x128xf32, #tpu.memory_space<vmem>>, vector<1x128xf32>
    %c15_75 = arith.constant 15 : index
    %c0_76 = arith.constant 0 : index
    %121 = vector.load %arg11[%c15_75, %c0_76] : memref<64x128xf32, #tpu.memory_space<vmem>>, vector<1x128xf32>
    %122 = arith.addf %120, %121 : vector<1x128xf32>
    %123 = arith.index_cast %118 : i32 to index
    %c0_77 = arith.constant 0 : index
    %124 = vector.load %arg12[%123, %c0_77] : memref<32x128xf32, #tpu.memory_space<vmem>>, vector<1x128xf32>
    tpu.vector_store %arg12[%123, %c0_77], %122 {strides = array<i32>} : memref<32x128xf32, #tpu.memory_space<vmem>>, vector<1x128xf32>,
    %c16 = arith.constant 16 : index
    %125 = memref.load %arg0[%c16] : memref<64xi32, #tpu.memory_space<smem>>
    %126 = arith.index_cast %125 : i32 to index
    %c0_78 = arith.constant 0 : index
    %127 = vector.load %arg12[%126, %c0_78] : memref<32x128xf32, #tpu.memory_space<vmem>>, vector<1x128xf32>
    %c16_79 = arith.constant 16 : index
    %c0_80 = arith.constant 0 : index
    %128 = vector.load %arg11[%c16_79, %c0_80] : memref<64x128xf32, #tpu.memory_space<vmem>>, vector<1x128xf32>
    %129 = arith.addf %127, %128 : vector<1x128xf32>
    %130 = arith.index_cast %125 : i32 to index
    %c0_81 = arith.constant 0 : index
    %131 = vector.load %arg12[%130, %c0_81] : memref<32x128xf32, #tpu.memory_space<vmem>>, vector<1x128xf32>
    tpu.vector_store %arg12[%130, %c0_81], %129 {strides = array<i32>} : memref<32x128xf32, #tpu.memory_space<vmem>>, vector<1x128xf32>,
    %c17 = arith.constant 17 : index
    %132 = memref.load %arg0[%c17] : memref<64xi32, #tpu.memory_space<smem>>
    %133 = arith.index_cast %132 : i32 to index
    %c0_82 = arith.constant 0 : index
    %134 = vector.load %arg12[%133, %c0_82] : memref<32x128xf32, #tpu.memory_space<vmem>>, vector<1x128xf32>
    %c17_83 = arith.constant 17 : index
    %c0_84 = arith.constant 0 : index
    %135 = vector.load %arg11[%c17_83, %c0_84] : memref<64x128xf32, #tpu.memory_space<vmem>>, vector<1x128xf32>
    %136 = arith.addf %134, %135 : vector<1x128xf32>
    %137 = arith.index_cast %132 : i32 to index
    %c0_85 = arith.constant 0 : index
    %138 = vector.load %arg12[%137, %c0_85] : memref<32x128xf32, #tpu.memory_space<vmem>>, vector<1x128xf32>
    tpu.vector_store %arg12[%137, %c0_85], %136 {strides = array<i32>} : memref<32x128xf32, #tpu.memory_space<vmem>>, vector<1x128xf32>,
    %c18 = arith.constant 18 : index
    %139 = memref.load %arg0[%c18] : memref<64xi32, #tpu.memory_space<smem>>
    %140 = arith.index_cast %139 : i32 to index
    %c0_86 = arith.constant 0 : index
    %141 = vector.load %arg12[%140, %c0_86] : memref<32x128xf32, #tpu.memory_space<vmem>>, vector<1x128xf32>
    %c18_87 = arith.constant 18 : index
    %c0_88 = arith.constant 0 : index
    %142 = vector.load %arg11[%c18_87, %c0_88] : memref<64x128xf32, #tpu.memory_space<vmem>>, vector<1x128xf32>
    %143 = arith.addf %141, %142 : vector<1x128xf32>
    %144 = arith.index_cast %139 : i32 to index
    %c0_89 = arith.constant 0 : index
    %145 = vector.load %arg12[%144, %c0_89] : memref<32x128xf32, #tpu.memory_space<vmem>>, vector<1x128xf32>
    tpu.vector_store %arg12[%144, %c0_89], %143 {strides = array<i32>} : memref<32x128xf32, #tpu.memory_space<vmem>>, vector<1x128xf32>,
    %c19 = arith.constant 19 : index
    %146 = memref.load %arg0[%c19] : memref<64xi32, #tpu.memory_space<smem>>
    %147 = arith.index_cast %146 : i32 to index
    %c0_90 = arith.constant 0 : index
    %148 = vector.load %arg12[%147, %c0_90] : memref<32x128xf32, #tpu.memory_space<vmem>>, vector<1x128xf32>
    %c19_91 = arith.constant 19 : index
    %c0_92 = arith.constant 0 : index
    %149 = vector.load %arg11[%c19_91, %c0_92] : memref<64x128xf32, #tpu.memory_space<vmem>>, vector<1x128xf32>
    %150 = arith.addf %148, %149 : vector<1x128xf32>
    %151 = arith.index_cast %146 : i32 to index
    %c0_93 = arith.constant 0 : index
    %152 = vector.load %arg12[%151, %c0_93] : memref<32x128xf32, #tpu.memory_space<vmem>>, vector<1x128xf32>
    tpu.vector_store %arg12[%151, %c0_93], %150 {strides = array<i32>} : memref<32x128xf32, #tpu.memory_space<vmem>>, vector<1x128xf32>,
    %c20 = arith.constant 20 : index
    %153 = memref.load %arg0[%c20] : memref<64xi32, #tpu.memory_space<smem>>
    %154 = arith.index_cast %153 : i32 to index
    %c0_94 = arith.constant 0 : index
    %155 = vector.load %arg12[%154, %c0_94] : memref<32x128xf32, #tpu.memory_space<vmem>>, vector<1x128xf32>
    %c20_95 = arith.constant 20 : index
    %c0_96 = arith.constant 0 : index
    %156 = vector.load %arg11[%c20_95, %c0_96] : memref<64x128xf32, #tpu.memory_space<vmem>>, vector<1x128xf32>
    %157 = arith.addf %155, %156 : vector<1x128xf32>
    %158 = arith.index_cast %153 : i32 to index
    %c0_97 = arith.constant 0 : index
    %159 = vector.load %arg12[%158, %c0_97] : memref<32x128xf32, #tpu.memory_space<vmem>>, vector<1x128xf32>
    tpu.vector_store %arg12[%158, %c0_97], %157 {strides = array<i32>} : memref<32x128xf32, #tpu.memory_space<vmem>>, vector<1x128xf32>,
    %c21 = arith.constant 21 : index
    %160 = memref.load %arg0[%c21] : memref<64xi32, #tpu.memory_space<smem>>
    %161 = arith.index_cast %160 : i32 to index
    %c0_98 = arith.constant 0 : index
    %162 = vector.load %arg12[%161, %c0_98] : memref<32x128xf32, #tpu.memory_space<vmem>>, vector<1x128xf32>
    %c21_99 = arith.constant 21 : index
    %c0_100 = arith.constant 0 : index
    %163 = vector.load %arg11[%c21_99, %c0_100] : memref<64x128xf32, #tpu.memory_space<vmem>>, vector<1x128xf32>
    %164 = arith.addf %162, %163 : vector<1x128xf32>
    %165 = arith.index_cast %160 : i32 to index
    %c0_101 = arith.constant 0 : index
    %166 = vector.load %arg12[%165, %c0_101] : memref<32x128xf32, #tpu.memory_space<vmem>>, vector<1x128xf32>
    tpu.vector_store %arg12[%165, %c0_101], %164 {strides = array<i32>} : memref<32x128xf32, #tpu.memory_space<vmem>>, vector<1x128xf32>,
    %c22 = arith.constant 22 : index
    %167 = memref.load %arg0[%c22] : memref<64xi32, #tpu.memory_space<smem>>
    %168 = arith.index_cast %167 : i32 to index
    %c0_102 = arith.constant 0 : index
    %169 = vector.load %arg12[%168, %c0_102] : memref<32x128xf32, #tpu.memory_space<vmem>>, vector<1x128xf32>
    %c22_103 = arith.constant 22 : index
    %c0_104 = arith.constant 0 : index
    %170 = vector.load %arg11[%c22_103, %c0_104] : memref<64x128xf32, #tpu.memory_space<vmem>>, vector<1x128xf32>
    %171 = arith.addf %169, %170 : vector<1x128xf32>
    %172 = arith.index_cast %167 : i32 to index
    %c0_105 = arith.constant 0 : index
    %173 = vector.load %arg12[%172, %c0_105] : memref<32x128xf32, #tpu.memory_space<vmem>>, vector<1x128xf32>
    tpu.vector_store %arg12[%172, %c0_105], %171 {strides = array<i32>} : memref<32x128xf32, #tpu.memory_space<vmem>>, vector<1x128xf32>,
    %c23 = arith.constant 23 : index
    %174 = memref.load %arg0[%c23] : memref<64xi32, #tpu.memory_space<smem>>
    %175 = arith.index_cast %174 : i32 to index
    %c0_106 = arith.constant 0 : index
    %176 = vector.load %arg12[%175, %c0_106] : memref<32x128xf32, #tpu.memory_space<vmem>>, vector<1x128xf32>
    %c23_107 = arith.constant 23 : index
    %c0_108 = arith.constant 0 : index
    %177 = vector.load %arg11[%c23_107, %c0_108] : memref<64x128xf32, #tpu.memory_space<vmem>>, vector<1x128xf32>
    %178 = arith.addf %176, %177 : vector<1x128xf32>
    %179 = arith.index_cast %174 : i32 to index
    %c0_109 = arith.constant 0 : index
    %180 = vector.load %arg12[%179, %c0_109] : memref<32x128xf32, #tpu.memory_space<vmem>>, vector<1x128xf32>
    tpu.vector_store %arg12[%179, %c0_109], %178 {strides = array<i32>} : memref<32x128xf32, #tpu.memory_space<vmem>>, vector<1x128xf32>,
    %c24 = arith.constant 24 : index
    %181 = memref.load %arg0[%c24] : memref<64xi32, #tpu.memory_space<smem>>
    %182 = arith.index_cast %181 : i32 to index
    %c0_110 = arith.constant 0 : index
    %183 = vector.load %arg12[%182, %c0_110] : memref<32x128xf32, #tpu.memory_space<vmem>>, vector<1x128xf32>
    %c24_111 = arith.constant 24 : index
    %c0_112 = arith.constant 0 : index
    %184 = vector.load %arg11[%c24_111, %c0_112] : memref<64x128xf32, #tpu.memory_space<vmem>>, vector<1x128xf32>
    %185 = arith.addf %183, %184 : vector<1x128xf32>
    %186 = arith.index_cast %181 : i32 to index
    %c0_113 = arith.constant 0 : index
    %187 = vector.load %arg12[%186, %c0_113] : memref<32x128xf32, #tpu.memory_space<vmem>>, vector<1x128xf32>
    tpu.vector_store %arg12[%186, %c0_113], %185 {strides = array<i32>} : memref<32x128xf32, #tpu.memory_space<vmem>>, vector<1x128xf32>,
    %c25 = arith.constant 25 : index
    %188 = memref.load %arg0[%c25] : memref<64xi32, #tpu.memory_space<smem>>
    %189 = arith.index_cast %188 : i32 to index
    %c0_114 = arith.constant 0 : index
    %190 = vector.load %arg12[%189, %c0_114] : memref<32x128xf32, #tpu.memory_space<vmem>>, vector<1x128xf32>
    %c25_115 = arith.constant 25 : index
    %c0_116 = arith.constant 0 : index
    %191 = vector.load %arg11[%c25_115, %c0_116] : memref<64x128xf32, #tpu.memory_space<vmem>>, vector<1x128xf32>
    %192 = arith.addf %190, %191 : vector<1x128xf32>
    %193 = arith.index_cast %188 : i32 to index
    %c0_117 = arith.constant 0 : index
    %194 = vector.load %arg12[%193, %c0_117] : memref<32x128xf32, #tpu.memory_space<vmem>>, vector<1x128xf32>
    tpu.vector_store %arg12[%193, %c0_117], %192 {strides = array<i32>} : memref<32x128xf32, #tpu.memory_space<vmem>>, vector<1x128xf32>,
    %c26 = arith.constant 26 : index
    %195 = memref.load %arg0[%c26] : memref<64xi32, #tpu.memory_space<smem>>
    %196 = arith.index_cast %195 : i32 to index
    %c0_118 = arith.constant 0 : index
    %197 = vector.load %arg12[%196, %c0_118] : memref<32x128xf32, #tpu.memory_space<vmem>>, vector<1x128xf32>
    %c26_119 = arith.constant 26 : index
    %c0_120 = arith.constant 0 : index
    %198 = vector.load %arg11[%c26_119, %c0_120] : memref<64x128xf32, #tpu.memory_space<vmem>>, vector<1x128xf32>
    %199 = arith.addf %197, %198 : vector<1x128xf32>
    %200 = arith.index_cast %195 : i32 to index
    %c0_121 = arith.constant 0 : index
    %201 = vector.load %arg12[%200, %c0_121] : memref<32x128xf32, #tpu.memory_space<vmem>>, vector<1x128xf32>
    tpu.vector_store %arg12[%200, %c0_121], %199 {strides = array<i32>} : memref<32x128xf32, #tpu.memory_space<vmem>>, vector<1x128xf32>,
    %c27 = arith.constant 27 : index
    %202 = memref.load %arg0[%c27] : memref<64xi32, #tpu.memory_space<smem>>
    %203 = arith.index_cast %202 : i32 to index
    %c0_122 = arith.constant 0 : index
    %204 = vector.load %arg12[%203, %c0_122] : memref<32x128xf32, #tpu.memory_space<vmem>>, vector<1x128xf32>
    %c27_123 = arith.constant 27 : index
    %c0_124 = arith.constant 0 : index
    %205 = vector.load %arg11[%c27_123, %c0_124] : memref<64x128xf32, #tpu.memory_space<vmem>>, vector<1x128xf32>
    %206 = arith.addf %204, %205 : vector<1x128xf32>
    %207 = arith.index_cast %202 : i32 to index
    %c0_125 = arith.constant 0 : index
    %208 = vector.load %arg12[%207, %c0_125] : memref<32x128xf32, #tpu.memory_space<vmem>>, vector<1x128xf32>
    tpu.vector_store %arg12[%207, %c0_125], %206 {strides = array<i32>} : memref<32x128xf32, #tpu.memory_space<vmem>>, vector<1x128xf32>,
    %c28 = arith.constant 28 : index
    %209 = memref.load %arg0[%c28] : memref<64xi32, #tpu.memory_space<smem>>
    %210 = arith.index_cast %209 : i32 to index
    %c0_126 = arith.constant 0 : index
    %211 = vector.load %arg12[%210, %c0_126] : memref<32x128xf32, #tpu.memory_space<vmem>>, vector<1x128xf32>
    %c28_127 = arith.constant 28 : index
    %c0_128 = arith.constant 0 : index
    %212 = vector.load %arg11[%c28_127, %c0_128] : memref<64x128xf32, #tpu.memory_space<vmem>>, vector<1x128xf32>
    %213 = arith.addf %211, %212 : vector<1x128xf32>
    %214 = arith.index_cast %209 : i32 to index
    %c0_129 = arith.constant 0 : index
    %215 = vector.load %arg12[%214, %c0_129] : memref<32x128xf32, #tpu.memory_space<vmem>>, vector<1x128xf32>
    tpu.vector_store %arg12[%214, %c0_129], %213 {strides = array<i32>} : memref<32x128xf32, #tpu.memory_space<vmem>>, vector<1x128xf32>,
    %c29 = arith.constant 29 : index
    %216 = memref.load %arg0[%c29] : memref<64xi32, #tpu.memory_space<smem>>
    %217 = arith.index_cast %216 : i32 to index
    %c0_130 = arith.constant 0 : index
    %218 = vector.load %arg12[%217, %c0_130] : memref<32x128xf32, #tpu.memory_space<vmem>>, vector<1x128xf32>
    %c29_131 = arith.constant 29 : index
    %c0_132 = arith.constant 0 : index
    %219 = vector.load %arg11[%c29_131, %c0_132] : memref<64x128xf32, #tpu.memory_space<vmem>>, vector<1x128xf32>
    %220 = arith.addf %218, %219 : vector<1x128xf32>
    %221 = arith.index_cast %216 : i32 to index
    %c0_133 = arith.constant 0 : index
    %222 = vector.load %arg12[%221, %c0_133] : memref<32x128xf32, #tpu.memory_space<vmem>>, vector<1x128xf32>
    tpu.vector_store %arg12[%221, %c0_133], %220 {strides = array<i32>} : memref<32x128xf32, #tpu.memory_space<vmem>>, vector<1x128xf32>,
    %c30 = arith.constant 30 : index
    %223 = memref.load %arg0[%c30] : memref<64xi32, #tpu.memory_space<smem>>
    %224 = arith.index_cast %223 : i32 to index
    %c0_134 = arith.constant 0 : index
    %225 = vector.load %arg12[%224, %c0_134] : memref<32x128xf32, #tpu.memory_space<vmem>>, vector<1x128xf32>
    %c30_135 = arith.constant 30 : index
    %c0_136 = arith.constant 0 : index
    %226 = vector.load %arg11[%c30_135, %c0_136] : memref<64x128xf32, #tpu.memory_space<vmem>>, vector<1x128xf32>
    %227 = arith.addf %225, %226 : vector<1x128xf32>
    %228 = arith.index_cast %223 : i32 to index
    %c0_137 = arith.constant 0 : index
    %229 = vector.load %arg12[%228, %c0_137] : memref<32x128xf32, #tpu.memory_space<vmem>>, vector<1x128xf32>
    tpu.vector_store %arg12[%228, %c0_137], %227 {strides = array<i32>} : memref<32x128xf32, #tpu.memory_space<vmem>>, vector<1x128xf32>,
    %c31 = arith.constant 31 : index
    %230 = memref.load %arg0[%c31] : memref<64xi32, #tpu.memory_space<smem>>
    %231 = arith.index_cast %230 : i32 to index
    %c0_138 = arith.constant 0 : index
    %232 = vector.load %arg12[%231, %c0_138] : memref<32x128xf32, #tpu.memory_space<vmem>>, vector<1x128xf32>
    %c31_139 = arith.constant 31 : index
    %c0_140 = arith.constant 0 : index
    %233 = vector.load %arg11[%c31_139, %c0_140] : memref<64x128xf32, #tpu.memory_space<vmem>>, vector<1x128xf32>
    %234 = arith.addf %232, %233 : vector<1x128xf32>
    %235 = arith.index_cast %230 : i32 to index
    %c0_141 = arith.constant 0 : index
    %236 = vector.load %arg12[%235, %c0_141] : memref<32x128xf32, #tpu.memory_space<vmem>>, vector<1x128xf32>
    tpu.vector_store %arg12[%235, %c0_141], %234 {strides = array<i32>} : memref<32x128xf32, #tpu.memory_space<vmem>>, vector<1x128xf32>,
    %c32 = arith.constant 32 : index
    %237 = memref.load %arg0[%c32] : memref<64xi32, #tpu.memory_space<smem>>
    %238 = arith.index_cast %237 : i32 to index
    %c0_142 = arith.constant 0 : index
    %239 = vector.load %arg12[%238, %c0_142] : memref<32x128xf32, #tpu.memory_space<vmem>>, vector<1x128xf32>
    %c32_143 = arith.constant 32 : index
    %c0_144 = arith.constant 0 : index
    %240 = vector.load %arg11[%c32_143, %c0_144] : memref<64x128xf32, #tpu.memory_space<vmem>>, vector<1x128xf32>
    %241 = arith.addf %239, %240 : vector<1x128xf32>
    %242 = arith.index_cast %237 : i32 to index
    %c0_145 = arith.constant 0 : index
    %243 = vector.load %arg12[%242, %c0_145] : memref<32x128xf32, #tpu.memory_space<vmem>>, vector<1x128xf32>
    tpu.vector_store %arg12[%242, %c0_145], %241 {strides = array<i32>} : memref<32x128xf32, #tpu.memory_space<vmem>>, vector<1x128xf32>,
    %c33 = arith.constant 33 : index
    %244 = memref.load %arg0[%c33] : memref<64xi32, #tpu.memory_space<smem>>
    %245 = arith.index_cast %244 : i32 to index
    %c0_146 = arith.constant 0 : index
    %246 = vector.load %arg12[%245, %c0_146] : memref<32x128xf32, #tpu.memory_space<vmem>>, vector<1x128xf32>
    %c33_147 = arith.constant 33 : index
    %c0_148 = arith.constant 0 : index
    %247 = vector.load %arg11[%c33_147, %c0_148] : memref<64x128xf32, #tpu.memory_space<vmem>>, vector<1x128xf32>
    %248 = arith.addf %246, %247 : vector<1x128xf32>
    %249 = arith.index_cast %244 : i32 to index
    %c0_149 = arith.constant 0 : index
    %250 = vector.load %arg12[%249, %c0_149] : memref<32x128xf32, #tpu.memory_space<vmem>>, vector<1x128xf32>
    tpu.vector_store %arg12[%249, %c0_149], %248 {strides = array<i32>} : memref<32x128xf32, #tpu.memory_space<vmem>>, vector<1x128xf32>,
    %c34 = arith.constant 34 : index
    %251 = memref.load %arg0[%c34] : memref<64xi32, #tpu.memory_space<smem>>
    %252 = arith.index_cast %251 : i32 to index
    %c0_150 = arith.constant 0 : index
    %253 = vector.load %arg12[%252, %c0_150] : memref<32x128xf32, #tpu.memory_space<vmem>>, vector<1x128xf32>
    %c34_151 = arith.constant 34 : index
    %c0_152 = arith.constant 0 : index
    %254 = vector.load %arg11[%c34_151, %c0_152] : memref<64x128xf32, #tpu.memory_space<vmem>>, vector<1x128xf32>
    %255 = arith.addf %253, %254 : vector<1x128xf32>
    %256 = arith.index_cast %251 : i32 to index
    %c0_153 = arith.constant 0 : index
    %257 = vector.load %arg12[%256, %c0_153] : memref<32x128xf32, #tpu.memory_space<vmem>>, vector<1x128xf32>
    tpu.vector_store %arg12[%256, %c0_153], %255 {strides = array<i32>} : memref<32x128xf32, #tpu.memory_space<vmem>>, vector<1x128xf32>,
    %c35 = arith.constant 35 : index
    %258 = memref.load %arg0[%c35] : memref<64xi32, #tpu.memory_space<smem>>
    %259 = arith.index_cast %258 : i32 to index
    %c0_154 = arith.constant 0 : index
    %260 = vector.load %arg12[%259, %c0_154] : memref<32x128xf32, #tpu.memory_space<vmem>>, vector<1x128xf32>
    %c35_155 = arith.constant 35 : index
    %c0_156 = arith.constant 0 : index
    %261 = vector.load %arg11[%c35_155, %c0_156] : memref<64x128xf32, #tpu.memory_space<vmem>>, vector<1x128xf32>
    %262 = arith.addf %260, %261 : vector<1x128xf32>
    %263 = arith.index_cast %258 : i32 to index
    %c0_157 = arith.constant 0 : index
    %264 = vector.load %arg12[%263, %c0_157] : memref<32x128xf32, #tpu.memory_space<vmem>>, vector<1x128xf32>
    tpu.vector_store %arg12[%263, %c0_157], %262 {strides = array<i32>} : memref<32x128xf32, #tpu.memory_space<vmem>>, vector<1x128xf32>,
    %c36 = arith.constant 36 : index
    %265 = memref.load %arg0[%c36] : memref<64xi32, #tpu.memory_space<smem>>
    %266 = arith.index_cast %265 : i32 to index
    %c0_158 = arith.constant 0 : index
    %267 = vector.load %arg12[%266, %c0_158] : memref<32x128xf32, #tpu.memory_space<vmem>>, vector<1x128xf32>
    %c36_159 = arith.constant 36 : index
    %c0_160 = arith.constant 0 : index
    %268 = vector.load %arg11[%c36_159, %c0_160] : memref<64x128xf32, #tpu.memory_space<vmem>>, vector<1x128xf32>
    %269 = arith.addf %267, %268 : vector<1x128xf32>
    %270 = arith.index_cast %265 : i32 to index
    %c0_161 = arith.constant 0 : index
    %271 = vector.load %arg12[%270, %c0_161] : memref<32x128xf32, #tpu.memory_space<vmem>>, vector<1x128xf32>
    tpu.vector_store %arg12[%270, %c0_161], %269 {strides = array<i32>} : memref<32x128xf32, #tpu.memory_space<vmem>>, vector<1x128xf32>,
    %c37 = arith.constant 37 : index
    %272 = memref.load %arg0[%c37] : memref<64xi32, #tpu.memory_space<smem>>
    %273 = arith.index_cast %272 : i32 to index
    %c0_162 = arith.constant 0 : index
    %274 = vector.load %arg12[%273, %c0_162] : memref<32x128xf32, #tpu.memory_space<vmem>>, vector<1x128xf32>
    %c37_163 = arith.constant 37 : index
    %c0_164 = arith.constant 0 : index
    %275 = vector.load %arg11[%c37_163, %c0_164] : memref<64x128xf32, #tpu.memory_space<vmem>>, vector<1x128xf32>
    %276 = arith.addf %274, %275 : vector<1x128xf32>
    %277 = arith.index_cast %272 : i32 to index
    %c0_165 = arith.constant 0 : index
    %278 = vector.load %arg12[%277, %c0_165] : memref<32x128xf32, #tpu.memory_space<vmem>>, vector<1x128xf32>
    tpu.vector_store %arg12[%277, %c0_165], %276 {strides = array<i32>} : memref<32x128xf32, #tpu.memory_space<vmem>>, vector<1x128xf32>,
    %c38 = arith.constant 38 : index
    %279 = memref.load %arg0[%c38] : memref<64xi32, #tpu.memory_space<smem>>
    %280 = arith.index_cast %279 : i32 to index
    %c0_166 = arith.constant 0 : index
    %281 = vector.load %arg12[%280, %c0_166] : memref<32x128xf32, #tpu.memory_space<vmem>>, vector<1x128xf32>
    %c38_167 = arith.constant 38 : index
    %c0_168 = arith.constant 0 : index
    %282 = vector.load %arg11[%c38_167, %c0_168] : memref<64x128xf32, #tpu.memory_space<vmem>>, vector<1x128xf32>
    %283 = arith.addf %281, %282 : vector<1x128xf32>
    %284 = arith.index_cast %279 : i32 to index
    %c0_169 = arith.constant 0 : index
    %285 = vector.load %arg12[%284, %c0_169] : memref<32x128xf32, #tpu.memory_space<vmem>>, vector<1x128xf32>
    tpu.vector_store %arg12[%284, %c0_169], %283 {strides = array<i32>} : memref<32x128xf32, #tpu.memory_space<vmem>>, vector<1x128xf32>,
    %c39 = arith.constant 39 : index
    %286 = memref.load %arg0[%c39] : memref<64xi32, #tpu.memory_space<smem>>
    %287 = arith.index_cast %286 : i32 to index
    %c0_170 = arith.constant 0 : index
    %288 = vector.load %arg12[%287, %c0_170] : memref<32x128xf32, #tpu.memory_space<vmem>>, vector<1x128xf32>
    %c39_171 = arith.constant 39 : index
    %c0_172 = arith.constant 0 : index
    %289 = vector.load %arg11[%c39_171, %c0_172] : memref<64x128xf32, #tpu.memory_space<vmem>>, vector<1x128xf32>
    %290 = arith.addf %288, %289 : vector<1x128xf32>
    %291 = arith.index_cast %286 : i32 to index
    %c0_173 = arith.constant 0 : index
    %292 = vector.load %arg12[%291, %c0_173] : memref<32x128xf32, #tpu.memory_space<vmem>>, vector<1x128xf32>
    tpu.vector_store %arg12[%291, %c0_173], %290 {strides = array<i32>} : memref<32x128xf32, #tpu.memory_space<vmem>>, vector<1x128xf32>,
    %c40 = arith.constant 40 : index
    %293 = memref.load %arg0[%c40] : memref<64xi32, #tpu.memory_space<smem>>
    %294 = arith.index_cast %293 : i32 to index
    %c0_174 = arith.constant 0 : index
    %295 = vector.load %arg12[%294, %c0_174] : memref<32x128xf32, #tpu.memory_space<vmem>>, vector<1x128xf32>
    %c40_175 = arith.constant 40 : index
    %c0_176 = arith.constant 0 : index
    %296 = vector.load %arg11[%c40_175, %c0_176] : memref<64x128xf32, #tpu.memory_space<vmem>>, vector<1x128xf32>
    %297 = arith.addf %295, %296 : vector<1x128xf32>
    %298 = arith.index_cast %293 : i32 to index
    %c0_177 = arith.constant 0 : index
    %299 = vector.load %arg12[%298, %c0_177] : memref<32x128xf32, #tpu.memory_space<vmem>>, vector<1x128xf32>
    tpu.vector_store %arg12[%298, %c0_177], %297 {strides = array<i32>} : memref<32x128xf32, #tpu.memory_space<vmem>>, vector<1x128xf32>,
    %c41 = arith.constant 41 : index
    %300 = memref.load %arg0[%c41] : memref<64xi32, #tpu.memory_space<smem>>
    %301 = arith.index_cast %300 : i32 to index
    %c0_178 = arith.constant 0 : index
    %302 = vector.load %arg12[%301, %c0_178] : memref<32x128xf32, #tpu.memory_space<vmem>>, vector<1x128xf32>
    %c41_179 = arith.constant 41 : index
    %c0_180 = arith.constant 0 : index
    %303 = vector.load %arg11[%c41_179, %c0_180] : memref<64x128xf32, #tpu.memory_space<vmem>>, vector<1x128xf32>
    %304 = arith.addf %302, %303 : vector<1x128xf32>
    %305 = arith.index_cast %300 : i32 to index
    %c0_181 = arith.constant 0 : index
    %306 = vector.load %arg12[%305, %c0_181] : memref<32x128xf32, #tpu.memory_space<vmem>>, vector<1x128xf32>
    tpu.vector_store %arg12[%305, %c0_181], %304 {strides = array<i32>} : memref<32x128xf32, #tpu.memory_space<vmem>>, vector<1x128xf32>,
    %c42 = arith.constant 42 : index
    %307 = memref.load %arg0[%c42] : memref<64xi32, #tpu.memory_space<smem>>
    %308 = arith.index_cast %307 : i32 to index
    %c0_182 = arith.constant 0 : index
    %309 = vector.load %arg12[%308, %c0_182] : memref<32x128xf32, #tpu.memory_space<vmem>>, vector<1x128xf32>
    %c42_183 = arith.constant 42 : index
    %c0_184 = arith.constant 0 : index
    %310 = vector.load %arg11[%c42_183, %c0_184] : memref<64x128xf32, #tpu.memory_space<vmem>>, vector<1x128xf32>
    %311 = arith.addf %309, %310 : vector<1x128xf32>
    %312 = arith.index_cast %307 : i32 to index
    %c0_185 = arith.constant 0 : index
    %313 = vector.load %arg12[%312, %c0_185] : memref<32x128xf32, #tpu.memory_space<vmem>>, vector<1x128xf32>
    tpu.vector_store %arg12[%312, %c0_185], %311 {strides = array<i32>} : memref<32x128xf32, #tpu.memory_space<vmem>>, vector<1x128xf32>,
    %c43 = arith.constant 43 : index
    %314 = memref.load %arg0[%c43] : memref<64xi32, #tpu.memory_space<smem>>
    %315 = arith.index_cast %314 : i32 to index
    %c0_186 = arith.constant 0 : index
    %316 = vector.load %arg12[%315, %c0_186] : memref<32x128xf32, #tpu.memory_space<vmem>>, vector<1x128xf32>
    %c43_187 = arith.constant 43 : index
    %c0_188 = arith.constant 0 : index
    %317 = vector.load %arg11[%c43_187, %c0_188] : memref<64x128xf32, #tpu.memory_space<vmem>>, vector<1x128xf32>
    %318 = arith.addf %316, %317 : vector<1x128xf32>
    %319 = arith.index_cast %314 : i32 to index
    %c0_189 = arith.constant 0 : index
    %320 = vector.load %arg12[%319, %c0_189] : memref<32x128xf32, #tpu.memory_space<vmem>>, vector<1x128xf32>
    tpu.vector_store %arg12[%319, %c0_189], %318 {strides = array<i32>} : memref<32x128xf32, #tpu.memory_space<vmem>>, vector<1x128xf32>,
    %c44 = arith.constant 44 : index
    %321 = memref.load %arg0[%c44] : memref<64xi32, #tpu.memory_space<smem>>
    %322 = arith.index_cast %321 : i32 to index
    %c0_190 = arith.constant 0 : index
    %323 = vector.load %arg12[%322, %c0_190] : memref<32x128xf32, #tpu.memory_space<vmem>>, vector<1x128xf32>
    %c44_191 = arith.constant 44 : index
    %c0_192 = arith.constant 0 : index
    %324 = vector.load %arg11[%c44_191, %c0_192] : memref<64x128xf32, #tpu.memory_space<vmem>>, vector<1x128xf32>
    %325 = arith.addf %323, %324 : vector<1x128xf32>
    %326 = arith.index_cast %321 : i32 to index
    %c0_193 = arith.constant 0 : index
    %327 = vector.load %arg12[%326, %c0_193] : memref<32x128xf32, #tpu.memory_space<vmem>>, vector<1x128xf32>
    tpu.vector_store %arg12[%326, %c0_193], %325 {strides = array<i32>} : memref<32x128xf32, #tpu.memory_space<vmem>>, vector<1x128xf32>,
    %c45 = arith.constant 45 : index
    %328 = memref.load %arg0[%c45] : memref<64xi32, #tpu.memory_space<smem>>
    %329 = arith.index_cast %328 : i32 to index
    %c0_194 = arith.constant 0 : index
    %330 = vector.load %arg12[%329, %c0_194] : memref<32x128xf32, #tpu.memory_space<vmem>>, vector<1x128xf32>
    %c45_195 = arith.constant 45 : index
    %c0_196 = arith.constant 0 : index
    %331 = vector.load %arg11[%c45_195, %c0_196] : memref<64x128xf32, #tpu.memory_space<vmem>>, vector<1x128xf32>
    %332 = arith.addf %330, %331 : vector<1x128xf32>
    %333 = arith.index_cast %328 : i32 to index
    %c0_197 = arith.constant 0 : index
    %334 = vector.load %arg12[%333, %c0_197] : memref<32x128xf32, #tpu.memory_space<vmem>>, vector<1x128xf32>
    tpu.vector_store %arg12[%333, %c0_197], %332 {strides = array<i32>} : memref<32x128xf32, #tpu.memory_space<vmem>>, vector<1x128xf32>,
    %c46 = arith.constant 46 : index
    %335 = memref.load %arg0[%c46] : memref<64xi32, #tpu.memory_space<smem>>
    %336 = arith.index_cast %335 : i32 to index
    %c0_198 = arith.constant 0 : index
    %337 = vector.load %arg12[%336, %c0_198] : memref<32x128xf32, #tpu.memory_space<vmem>>, vector<1x128xf32>
    %c46_199 = arith.constant 46 : index
    %c0_200 = arith.constant 0 : index
    %338 = vector.load %arg11[%c46_199, %c0_200] : memref<64x128xf32, #tpu.memory_space<vmem>>, vector<1x128xf32>
    %339 = arith.addf %337, %338 : vector<1x128xf32>
    %340 = arith.index_cast %335 : i32 to index
    %c0_201 = arith.constant 0 : index
    %341 = vector.load %arg12[%340, %c0_201] : memref<32x128xf32, #tpu.memory_space<vmem>>, vector<1x128xf32>
    tpu.vector_store %arg12[%340, %c0_201], %339 {strides = array<i32>} : memref<32x128xf32, #tpu.memory_space<vmem>>, vector<1x128xf32>,
    %c47 = arith.constant 47 : index
    %342 = memref.load %arg0[%c47] : memref<64xi32, #tpu.memory_space<smem>>
    %343 = arith.index_cast %342 : i32 to index
    %c0_202 = arith.constant 0 : index
    %344 = vector.load %arg12[%343, %c0_202] : memref<32x128xf32, #tpu.memory_space<vmem>>, vector<1x128xf32>
    %c47_203 = arith.constant 47 : index
    %c0_204 = arith.constant 0 : index
    %345 = vector.load %arg11[%c47_203, %c0_204] : memref<64x128xf32, #tpu.memory_space<vmem>>, vector<1x128xf32>
    %346 = arith.addf %344, %345 : vector<1x128xf32>
    %347 = arith.index_cast %342 : i32 to index
    %c0_205 = arith.constant 0 : index
    %348 = vector.load %arg12[%347, %c0_205] : memref<32x128xf32, #tpu.memory_space<vmem>>, vector<1x128xf32>
    tpu.vector_store %arg12[%347, %c0_205], %346 {strides = array<i32>} : memref<32x128xf32, #tpu.memory_space<vmem>>, vector<1x128xf32>,
    %c48 = arith.constant 48 : index
    %349 = memref.load %arg0[%c48] : memref<64xi32, #tpu.memory_space<smem>>
    %350 = arith.index_cast %349 : i32 to index
    %c0_206 = arith.constant 0 : index
    %351 = vector.load %arg12[%350, %c0_206] : memref<32x128xf32, #tpu.memory_space<vmem>>, vector<1x128xf32>
    %c48_207 = arith.constant 48 : index
    %c0_208 = arith.constant 0 : index
    %352 = vector.load %arg11[%c48_207, %c0_208] : memref<64x128xf32, #tpu.memory_space<vmem>>, vector<1x128xf32>
    %353 = arith.addf %351, %352 : vector<1x128xf32>
    %354 = arith.index_cast %349 : i32 to index
    %c0_209 = arith.constant 0 : index
    %355 = vector.load %arg12[%354, %c0_209] : memref<32x128xf32, #tpu.memory_space<vmem>>, vector<1x128xf32>
    tpu.vector_store %arg12[%354, %c0_209], %353 {strides = array<i32>} : memref<32x128xf32, #tpu.memory_space<vmem>>, vector<1x128xf32>,
    %c49 = arith.constant 49 : index
    %356 = memref.load %arg0[%c49] : memref<64xi32, #tpu.memory_space<smem>>
    %357 = arith.index_cast %356 : i32 to index
    %c0_210 = arith.constant 0 : index
    %358 = vector.load %arg12[%357, %c0_210] : memref<32x128xf32, #tpu.memory_space<vmem>>, vector<1x128xf32>
    %c49_211 = arith.constant 49 : index
    %c0_212 = arith.constant 0 : index
    %359 = vector.load %arg11[%c49_211, %c0_212] : memref<64x128xf32, #tpu.memory_space<vmem>>, vector<1x128xf32>
    %360 = arith.addf %358, %359 : vector<1x128xf32>
    %361 = arith.index_cast %356 : i32 to index
    %c0_213 = arith.constant 0 : index
    %362 = vector.load %arg12[%361, %c0_213] : memref<32x128xf32, #tpu.memory_space<vmem>>, vector<1x128xf32>
    tpu.vector_store %arg12[%361, %c0_213], %360 {strides = array<i32>} : memref<32x128xf32, #tpu.memory_space<vmem>>, vector<1x128xf32>,
    %c50 = arith.constant 50 : index
    %363 = memref.load %arg0[%c50] : memref<64xi32, #tpu.memory_space<smem>>
    %364 = arith.index_cast %363 : i32 to index
    %c0_214 = arith.constant 0 : index
    %365 = vector.load %arg12[%364, %c0_214] : memref<32x128xf32, #tpu.memory_space<vmem>>, vector<1x128xf32>
    %c50_215 = arith.constant 50 : index
    %c0_216 = arith.constant 0 : index
    %366 = vector.load %arg11[%c50_215, %c0_216] : memref<64x128xf32, #tpu.memory_space<vmem>>, vector<1x128xf32>
    %367 = arith.addf %365, %366 : vector<1x128xf32>
    %368 = arith.index_cast %363 : i32 to index
    %c0_217 = arith.constant 0 : index
    %369 = vector.load %arg12[%368, %c0_217] : memref<32x128xf32, #tpu.memory_space<vmem>>, vector<1x128xf32>
    tpu.vector_store %arg12[%368, %c0_217], %367 {strides = array<i32>} : memref<32x128xf32, #tpu.memory_space<vmem>>, vector<1x128xf32>,
    %c51 = arith.constant 51 : index
    %370 = memref.load %arg0[%c51] : memref<64xi32, #tpu.memory_space<smem>>
    %371 = arith.index_cast %370 : i32 to index
    %c0_218 = arith.constant 0 : index
    %372 = vector.load %arg12[%371, %c0_218] : memref<32x128xf32, #tpu.memory_space<vmem>>, vector<1x128xf32>
    %c51_219 = arith.constant 51 : index
    %c0_220 = arith.constant 0 : index
    %373 = vector.load %arg11[%c51_219, %c0_220] : memref<64x128xf32, #tpu.memory_space<vmem>>, vector<1x128xf32>
    %374 = arith.addf %372, %373 : vector<1x128xf32>
    %375 = arith.index_cast %370 : i32 to index
    %c0_221 = arith.constant 0 : index
    %376 = vector.load %arg12[%375, %c0_221] : memref<32x128xf32, #tpu.memory_space<vmem>>, vector<1x128xf32>
    tpu.vector_store %arg12[%375, %c0_221], %374 {strides = array<i32>} : memref<32x128xf32, #tpu.memory_space<vmem>>, vector<1x128xf32>,
    %c52 = arith.constant 52 : index
    %377 = memref.load %arg0[%c52] : memref<64xi32, #tpu.memory_space<smem>>
    %378 = arith.index_cast %377 : i32 to index
    %c0_222 = arith.constant 0 : index
    %379 = vector.load %arg12[%378, %c0_222] : memref<32x128xf32, #tpu.memory_space<vmem>>, vector<1x128xf32>
    %c52_223 = arith.constant 52 : index
    %c0_224 = arith.constant 0 : index
    %380 = vector.load %arg11[%c52_223, %c0_224] : memref<64x128xf32, #tpu.memory_space<vmem>>, vector<1x128xf32>
    %381 = arith.addf %379, %380 : vector<1x128xf32>
    %382 = arith.index_cast %377 : i32 to index
    %c0_225 = arith.constant 0 : index
    %383 = vector.load %arg12[%382, %c0_225] : memref<32x128xf32, #tpu.memory_space<vmem>>, vector<1x128xf32>
    tpu.vector_store %arg12[%382, %c0_225], %381 {strides = array<i32>} : memref<32x128xf32, #tpu.memory_space<vmem>>, vector<1x128xf32>,
    %c53 = arith.constant 53 : index
    %384 = memref.load %arg0[%c53] : memref<64xi32, #tpu.memory_space<smem>>
    %385 = arith.index_cast %384 : i32 to index
    %c0_226 = arith.constant 0 : index
    %386 = vector.load %arg12[%385, %c0_226] : memref<32x128xf32, #tpu.memory_space<vmem>>, vector<1x128xf32>
    %c53_227 = arith.constant 53 : index
    %c0_228 = arith.constant 0 : index
    %387 = vector.load %arg11[%c53_227, %c0_228] : memref<64x128xf32, #tpu.memory_space<vmem>>, vector<1x128xf32>
    %388 = arith.addf %386, %387 : vector<1x128xf32>
    %389 = arith.index_cast %384 : i32 to index
    %c0_229 = arith.constant 0 : index
    %390 = vector.load %arg12[%389, %c0_229] : memref<32x128xf32, #tpu.memory_space<vmem>>, vector<1x128xf32>
    tpu.vector_store %arg12[%389, %c0_229], %388 {strides = array<i32>} : memref<32x128xf32, #tpu.memory_space<vmem>>, vector<1x128xf32>,
    %c54 = arith.constant 54 : index
    %391 = memref.load %arg0[%c54] : memref<64xi32, #tpu.memory_space<smem>>
    %392 = arith.index_cast %391 : i32 to index
    %c0_230 = arith.constant 0 : index
    %393 = vector.load %arg12[%392, %c0_230] : memref<32x128xf32, #tpu.memory_space<vmem>>, vector<1x128xf32>
    %c54_231 = arith.constant 54 : index
    %c0_232 = arith.constant 0 : index
    %394 = vector.load %arg11[%c54_231, %c0_232] : memref<64x128xf32, #tpu.memory_space<vmem>>, vector<1x128xf32>
    %395 = arith.addf %393, %394 : vector<1x128xf32>
    %396 = arith.index_cast %391 : i32 to index
    %c0_233 = arith.constant 0 : index
    %397 = vector.load %arg12[%396, %c0_233] : memref<32x128xf32, #tpu.memory_space<vmem>>, vector<1x128xf32>
    tpu.vector_store %arg12[%396, %c0_233], %395 {strides = array<i32>} : memref<32x128xf32, #tpu.memory_space<vmem>>, vector<1x128xf32>,
    %c55 = arith.constant 55 : index
    %398 = memref.load %arg0[%c55] : memref<64xi32, #tpu.memory_space<smem>>
    %399 = arith.index_cast %398 : i32 to index
    %c0_234 = arith.constant 0 : index
    %400 = vector.load %arg12[%399, %c0_234] : memref<32x128xf32, #tpu.memory_space<vmem>>, vector<1x128xf32>
    %c55_235 = arith.constant 55 : index
    %c0_236 = arith.constant 0 : index
    %401 = vector.load %arg11[%c55_235, %c0_236] : memref<64x128xf32, #tpu.memory_space<vmem>>, vector<1x128xf32>
    %402 = arith.addf %400, %401 : vector<1x128xf32>
    %403 = arith.index_cast %398 : i32 to index
    %c0_237 = arith.constant 0 : index
    %404 = vector.load %arg12[%403, %c0_237] : memref<32x128xf32, #tpu.memory_space<vmem>>, vector<1x128xf32>
    tpu.vector_store %arg12[%403, %c0_237], %402 {strides = array<i32>} : memref<32x128xf32, #tpu.memory_space<vmem>>, vector<1x128xf32>,
    %c56 = arith.constant 56 : index
    %405 = memref.load %arg0[%c56] : memref<64xi32, #tpu.memory_space<smem>>
    %406 = arith.index_cast %405 : i32 to index
    %c0_238 = arith.constant 0 : index
    %407 = vector.load %arg12[%406, %c0_238] : memref<32x128xf32, #tpu.memory_space<vmem>>, vector<1x128xf32>
    %c56_239 = arith.constant 56 : index
    %c0_240 = arith.constant 0 : index
    %408 = vector.load %arg11[%c56_239, %c0_240] : memref<64x128xf32, #tpu.memory_space<vmem>>, vector<1x128xf32>
    %409 = arith.addf %407, %408 : vector<1x128xf32>
    %410 = arith.index_cast %405 : i32 to index
    %c0_241 = arith.constant 0 : index
    %411 = vector.load %arg12[%410, %c0_241] : memref<32x128xf32, #tpu.memory_space<vmem>>, vector<1x128xf32>
    tpu.vector_store %arg12[%410, %c0_241], %409 {strides = array<i32>} : memref<32x128xf32, #tpu.memory_space<vmem>>, vector<1x128xf32>,
    %c57 = arith.constant 57 : index
    %412 = memref.load %arg0[%c57] : memref<64xi32, #tpu.memory_space<smem>>
    %413 = arith.index_cast %412 : i32 to index
    %c0_242 = arith.constant 0 : index
    %414 = vector.load %arg12[%413, %c0_242] : memref<32x128xf32, #tpu.memory_space<vmem>>, vector<1x128xf32>
    %c57_243 = arith.constant 57 : index
    %c0_244 = arith.constant 0 : index
    %415 = vector.load %arg11[%c57_243, %c0_244] : memref<64x128xf32, #tpu.memory_space<vmem>>, vector<1x128xf32>
    %416 = arith.addf %414, %415 : vector<1x128xf32>
    %417 = arith.index_cast %412 : i32 to index
    %c0_245 = arith.constant 0 : index
    %418 = vector.load %arg12[%417, %c0_245] : memref<32x128xf32, #tpu.memory_space<vmem>>, vector<1x128xf32>
    tpu.vector_store %arg12[%417, %c0_245], %416 {strides = array<i32>} : memref<32x128xf32, #tpu.memory_space<vmem>>, vector<1x128xf32>,
    %c58 = arith.constant 58 : index
    %419 = memref.load %arg0[%c58] : memref<64xi32, #tpu.memory_space<smem>>
    %420 = arith.index_cast %419 : i32 to index
    %c0_246 = arith.constant 0 : index
    %421 = vector.load %arg12[%420, %c0_246] : memref<32x128xf32, #tpu.memory_space<vmem>>, vector<1x128xf32>
    %c58_247 = arith.constant 58 : index
    %c0_248 = arith.constant 0 : index
    %422 = vector.load %arg11[%c58_247, %c0_248] : memref<64x128xf32, #tpu.memory_space<vmem>>, vector<1x128xf32>
    %423 = arith.addf %421, %422 : vector<1x128xf32>
    %424 = arith.index_cast %419 : i32 to index
    %c0_249 = arith.constant 0 : index
    %425 = vector.load %arg12[%424, %c0_249] : memref<32x128xf32, #tpu.memory_space<vmem>>, vector<1x128xf32>
    tpu.vector_store %arg12[%424, %c0_249], %423 {strides = array<i32>} : memref<32x128xf32, #tpu.memory_space<vmem>>, vector<1x128xf32>,
    %c59 = arith.constant 59 : index
    %426 = memref.load %arg0[%c59] : memref<64xi32, #tpu.memory_space<smem>>
    %427 = arith.index_cast %426 : i32 to index
    %c0_250 = arith.constant 0 : index
    %428 = vector.load %arg12[%427, %c0_250] : memref<32x128xf32, #tpu.memory_space<vmem>>, vector<1x128xf32>
    %c59_251 = arith.constant 59 : index
    %c0_252 = arith.constant 0 : index
    %429 = vector.load %arg11[%c59_251, %c0_252] : memref<64x128xf32, #tpu.memory_space<vmem>>, vector<1x128xf32>
    %430 = arith.addf %428, %429 : vector<1x128xf32>
    %431 = arith.index_cast %426 : i32 to index
    %c0_253 = arith.constant 0 : index
    %432 = vector.load %arg12[%431, %c0_253] : memref<32x128xf32, #tpu.memory_space<vmem>>, vector<1x128xf32>
    tpu.vector_store %arg12[%431, %c0_253], %430 {strides = array<i32>} : memref<32x128xf32, #tpu.memory_space<vmem>>, vector<1x128xf32>,
    %c60 = arith.constant 60 : index
    %433 = memref.load %arg0[%c60] : memref<64xi32, #tpu.memory_space<smem>>
    %434 = arith.index_cast %433 : i32 to index
    %c0_254 = arith.constant 0 : index
    %435 = vector.load %arg12[%434, %c0_254] : memref<32x128xf32, #tpu.memory_space<vmem>>, vector<1x128xf32>
    %c60_255 = arith.constant 60 : index
    %c0_256 = arith.constant 0 : index
    %436 = vector.load %arg11[%c60_255, %c0_256] : memref<64x128xf32, #tpu.memory_space<vmem>>, vector<1x128xf32>
    %437 = arith.addf %435, %436 : vector<1x128xf32>
    %438 = arith.index_cast %433 : i32 to index
    %c0_257 = arith.constant 0 : index
    %439 = vector.load %arg12[%438, %c0_257] : memref<32x128xf32, #tpu.memory_space<vmem>>, vector<1x128xf32>
    tpu.vector_store %arg12[%438, %c0_257], %437 {strides = array<i32>} : memref<32x128xf32, #tpu.memory_space<vmem>>, vector<1x128xf32>,
    %c61 = arith.constant 61 : index
    %440 = memref.load %arg0[%c61] : memref<64xi32, #tpu.memory_space<smem>>
    %441 = arith.index_cast %440 : i32 to index
    %c0_258 = arith.constant 0 : index
    %442 = vector.load %arg12[%441, %c0_258] : memref<32x128xf32, #tpu.memory_space<vmem>>, vector<1x128xf32>
    %c61_259 = arith.constant 61 : index
    %c0_260 = arith.constant 0 : index
    %443 = vector.load %arg11[%c61_259, %c0_260] : memref<64x128xf32, #tpu.memory_space<vmem>>, vector<1x128xf32>
    %444 = arith.addf %442, %443 : vector<1x128xf32>
    %445 = arith.index_cast %440 : i32 to index
    %c0_261 = arith.constant 0 : index
    %446 = vector.load %arg12[%445, %c0_261] : memref<32x128xf32, #tpu.memory_space<vmem>>, vector<1x128xf32>
    tpu.vector_store %arg12[%445, %c0_261], %444 {strides = array<i32>} : memref<32x128xf32, #tpu.memory_space<vmem>>, vector<1x128xf32>,
    %c62 = arith.constant 62 : index
    %447 = memref.load %arg0[%c62] : memref<64xi32, #tpu.memory_space<smem>>
    %448 = arith.index_cast %447 : i32 to index
    %c0_262 = arith.constant 0 : index
    %449 = vector.load %arg12[%448, %c0_262] : memref<32x128xf32, #tpu.memory_space<vmem>>, vector<1x128xf32>
    %c62_263 = arith.constant 62 : index
    %c0_264 = arith.constant 0 : index
    %450 = vector.load %arg11[%c62_263, %c0_264] : memref<64x128xf32, #tpu.memory_space<vmem>>, vector<1x128xf32>
    %451 = arith.addf %449, %450 : vector<1x128xf32>
    %452 = arith.index_cast %447 : i32 to index
    %c0_265 = arith.constant 0 : index
    %453 = vector.load %arg12[%452, %c0_265] : memref<32x128xf32, #tpu.memory_space<vmem>>, vector<1x128xf32>
    tpu.vector_store %arg12[%452, %c0_265], %451 {strides = array<i32>} : memref<32x128xf32, #tpu.memory_space<vmem>>, vector<1x128xf32>,
    %c63 = arith.constant 63 : index
    %454 = memref.load %arg0[%c63] : memref<64xi32, #tpu.memory_space<smem>>
    %455 = arith.index_cast %454 : i32 to index
    %c0_266 = arith.constant 0 : index
    %456 = vector.load %arg12[%455, %c0_266] : memref<32x128xf32, #tpu.memory_space<vmem>>, vector<1x128xf32>
    %c63_267 = arith.constant 63 : index
    %c0_268 = arith.constant 0 : index
    %457 = vector.load %arg11[%c63_267, %c0_268] : memref<64x128xf32, #tpu.memory_space<vmem>>, vector<1x128xf32>
    %458 = arith.addf %456, %457 : vector<1x128xf32>
    %459 = arith.index_cast %454 : i32 to index
    %c0_269 = arith.constant 0 : index
    %460 = vector.load %arg12[%459, %c0_269] : memref<32x128xf32, #tpu.memory_space<vmem>>, vector<1x128xf32>
    tpu.vector_store %arg12[%459, %c0_269], %458 {strides = array<i32>} : memref<32x128xf32, #tpu.memory_space<vmem>>, vector<1x128xf32>,
    %c0_270 = arith.constant 0 : index
    %c0_271 = arith.constant 0 : index
    %461 = vector.load %arg1[%c0_270, %c0_271] : memref<32x128xbf16, #tpu.memory_space<vmem>>, vector<32x128xbf16>
    %c0_272 = arith.constant 0 : index
    %c0_273 = arith.constant 0 : index
    %462 = vector.load %arg3[%c0_272, %c0_273] : memref<128x128xbf16, #tpu.memory_space<vmem>>, vector<128x128xbf16>
    %cst_274 = arith.constant dense<0.000000e+00> : vector<32x128xf32>
    %463 = tpu.matmul %461, %462, %cst_274 {dimension_numbers = #tpu.dot_dimension_numbers<[1], [0], [0], [1], [0, 0, 1, 1], [], []>} : vector<32x128xbf16>, vector<128x128xbf16>, vector<32x128xf32> -> vector<32x128xf32>
    %c0_275 = arith.constant 0 : index
    %c0_276 = arith.constant 0 : index
    %464 = vector.load %arg12[%c0_275, %c0_276] : memref<32x128xf32, #tpu.memory_space<vmem>>, vector<32x128xf32>
    %c0_277 = arith.constant 0 : index
    %c0_278 = arith.constant 0 : index
    %465 = vector.load %arg6[%c0_277, %c0_278] : memref<1x128xf32, #tpu.memory_space<vmem>>, vector<1x128xf32>
    %466 = vector.broadcast %465 : vector<1x128xf32> to vector<32x128xf32>
    %467 = arith.addf %463, %466 : vector<32x128xf32>
    %cst_279 = arith.constant 0.000000e+00 : f32
    %468 = vector.broadcast %cst_279 : f32 to vector<32x128xf32>
    %469 = arith.maximumf %467, %468 : vector<32x128xf32>
    %c0_280 = arith.constant 0 : index
    %c0_281 = arith.constant 0 : index
    %470 = vector.load %arg7[%c0_280, %c0_281] : memref<32x1xf32, #tpu.memory_space<vmem>>, vector<32x1xf32>
    %471 = vector.broadcast %470 : vector<32x1xf32> to vector<32x128xf32>
    %472 = arith.mulf %469, %471 : vector<32x128xf32>
    %473 = arith.addf %464, %472 : vector<32x128xf32>
    %474 = arith.truncf %473 : vector<32x128xf32> to vector<32x128xbf16>
    %c0_282 = arith.constant 0 : index
    %c0_283 = arith.constant 0 : index
    %475 = vector.load %arg10[%c0_282, %c0_283] : memref<32x128xbf16, #tpu.memory_space<vmem>>, vector<32x128xbf16>
    tpu.vector_store %arg10[%c0_282, %c0_283], %474 {strides = array<i32>} : memref<32x128xbf16, #tpu.memory_space<vmem>>, vector<32x128xbf16>,
    return
  }
}

module attributes {stable_mosaic.version = 11 : i64} {
  func.func @gcn_layer_kernel(%arg0: memref<64xi32, #tpu.memory_space<smem>>, %arg1: memref<32x128xbf16, #tpu.memory_space<vmem>>, %arg2: memref<64x128xbf16, #tpu.memory_space<vmem>>, %arg3: memref<128x128xbf16, #tpu.memory_space<vmem>>, %arg4: memref<64x128xf32, #tpu.memory_space<vmem>>, %arg5: memref<64x1xf32, #tpu.memory_space<vmem>>, %arg6: memref<1x128xf32, #tpu.memory_space<vmem>>, %arg7: memref<32x1xf32, #tpu.memory_space<vmem>>, %arg8: memref<1x128xf32, #tpu.memory_space<vmem>>, %arg9: memref<1x128xf32, #tpu.memory_space<vmem>>, %arg10: memref<32x128xbf16, #tpu.memory_space<vmem>>, %arg11: memref<64x128xf32, #tpu.memory_space<vmem>>, %arg12: memref<32x128xf32, #tpu.memory_space<vmem>>) attributes {dimension_semantics = [], scalar_prefetch = 0 : i64, scratch_operands = 2 : i64, tpu.core_type = #tpu.core_type<tc>} {
    %c0 = arith.constant 0 : index
    %c0_0 = arith.constant 0 : index
    %0 = vector.load %arg2[%c0, %c0_0] : memref<64x128xbf16, #tpu.memory_space<vmem>>, vector<64x128xbf16>
    %c0_1 = arith.constant 0 : index
    %c0_2 = arith.constant 0 : index
    %1 = vector.load %arg3[%c0_1, %c0_2] : memref<128x128xbf16, #tpu.memory_space<vmem>>, vector<128x128xbf16>
    %cst = arith.constant dense<0.000000e+00> : vector<64x128xf32>
    %2 = tpu.matmul %0, %1, %cst {dimension_numbers = #tpu.dot_dimension_numbers<[1], [0], [0], [1], [0, 0, 1, 1], [], []>} : vector<64x128xbf16>, vector<128x128xbf16>, vector<64x128xf32> -> vector<64x128xf32>
    %c0_3 = arith.constant 0 : index
    %c0_4 = arith.constant 0 : index
    %3 = vector.load %arg5[%c0_3, %c0_4] : memref<64x1xf32, #tpu.memory_space<vmem>>, vector<64x1xf32>
    %c0_5 = arith.constant 0 : index
    %c0_6 = arith.constant 0 : index
    %4 = vector.load %arg4[%c0_5, %c0_6] : memref<64x128xf32, #tpu.memory_space<vmem>>, vector<64x128xf32>
    %5 = arith.addf %2, %4 : vector<64x128xf32>
    %cst_7 = arith.constant 0.000000e+00 : f32
    %6 = vector.broadcast %cst_7 : f32 to vector<64x128xf32>
    %7 = arith.maximumf %5, %6 : vector<64x128xf32>
    %8 = vector.broadcast %3 : vector<64x1xf32> to vector<64x128xf32>
    %9 = arith.mulf %8, %7 : vector<64x128xf32>
    %c0_8 = arith.constant 0 : index
    %c0_9 = arith.constant 0 : index
    %10 = vector.load %arg11[%c0_8, %c0_9] : memref<64x128xf32, #tpu.memory_space<vmem>>, vector<64x128xf32>
    tpu.vector_store %arg11[%c0_8, %c0_9], %9 {strides = array<i32>} : memref<64x128xf32, #tpu.memory_space<vmem>>, vector<64x128xf32>,
    %cst_10 = arith.constant 0.000000e+00 : f32
    %11 = vector.broadcast %cst_10 : f32 to vector<32x128xf32>
    %c0_11 = arith.constant 0 : index
    %c0_12 = arith.constant 0 : index
    %12 = vector.load %arg12[%c0_11, %c0_12] : memref<32x128xf32, #tpu.memory_space<vmem>>, vector<32x128xf32>
    tpu.vector_store %arg12[%c0_11, %c0_12], %11 {strides = array<i32>} : memref<32x128xf32, #tpu.memory_space<vmem>>, vector<32x128xf32>,
    %c0_13 = arith.constant 0 : index
    %13 = memref.load %arg0[%c0_13] : memref<64xi32, #tpu.memory_space<smem>>
    %14 = arith.index_cast %13 : i32 to index
    %c0_14 = arith.constant 0 : index
    %15 = vector.load %arg12[%14, %c0_14] : memref<32x128xf32, #tpu.memory_space<vmem>>, vector<1x128xf32>
    %c0_15 = arith.constant 0 : index
    %c0_16 = arith.constant 0 : index
    %16 = vector.load %arg11[%c0_15, %c0_16] : memref<64x128xf32, #tpu.memory_space<vmem>>, vector<1x128xf32>
    %17 = arith.addf %15, %16 : vector<1x128xf32>
    %18 = arith.index_cast %13 : i32 to index
    %c0_17 = arith.constant 0 : index
    %19 = vector.load %arg12[%18, %c0_17] : memref<32x128xf32, #tpu.memory_space<vmem>>, vector<1x128xf32>
    tpu.vector_store %arg12[%18, %c0_17], %17 {strides = array<i32>} : memref<32x128xf32, #tpu.memory_space<vmem>>, vector<1x128xf32>,
    %c1 = arith.constant 1 : index
    %20 = memref.load %arg0[%c1] : memref<64xi32, #tpu.memory_space<smem>>
    %21 = arith.index_cast %20 : i32 to index
    %c0_18 = arith.constant 0 : index
    %22 = vector.load %arg12[%21, %c0_18] : memref<32x128xf32, #tpu.memory_space<vmem>>, vector<1x128xf32>
    %c1_19 = arith.constant 1 : index
    %c0_20 = arith.constant 0 : index
    %23 = vector.load %arg11[%c1_19, %c0_20] : memref<64x128xf32, #tpu.memory_space<vmem>>, vector<1x128xf32>
    %24 = arith.addf %22, %23 : vector<1x128xf32>
    %25 = arith.index_cast %20 : i32 to index
    %c0_21 = arith.constant 0 : index
    %26 = vector.load %arg12[%25, %c0_21] : memref<32x128xf32, #tpu.memory_space<vmem>>, vector<1x128xf32>
    tpu.vector_store %arg12[%25, %c0_21], %24 {strides = array<i32>} : memref<32x128xf32, #tpu.memory_space<vmem>>, vector<1x128xf32>,
    %c2 = arith.constant 2 : index
    %27 = memref.load %arg0[%c2] : memref<64xi32, #tpu.memory_space<smem>>
    %28 = arith.index_cast %27 : i32 to index
    %c0_22 = arith.constant 0 : index
    %29 = vector.load %arg12[%28, %c0_22] : memref<32x128xf32, #tpu.memory_space<vmem>>, vector<1x128xf32>
    %c2_23 = arith.constant 2 : index
    %c0_24 = arith.constant 0 : index
    %30 = vector.load %arg11[%c2_23, %c0_24] : memref<64x128xf32, #tpu.memory_space<vmem>>, vector<1x128xf32>
    %31 = arith.addf %29, %30 : vector<1x128xf32>
    %32 = arith.index_cast %27 : i32 to index
    %c0_25 = arith.constant 0 : index
    %33 = vector.load %arg12[%32, %c0_25] : memref<32x128xf32, #tpu.memory_space<vmem>>, vector<1x128xf32>
    tpu.vector_store %arg12[%32, %c0_25], %31 {strides = array<i32>} : memref<32x128xf32, #tpu.memory_space<vmem>>, vector<1x128xf32>,
    %c3 = arith.constant 3 : index
    %34 = memref.load %arg0[%c3] : memref<64xi32, #tpu.memory_space<smem>>
    %35 = arith.index_cast %34 : i32 to index
    %c0_26 = arith.constant 0 : index
    %36 = vector.load %arg12[%35, %c0_26] : memref<32x128xf32, #tpu.memory_space<vmem>>, vector<1x128xf32>
    %c3_27 = arith.constant 3 : index
    %c0_28 = arith.constant 0 : index
    %37 = vector.load %arg11[%c3_27, %c0_28] : memref<64x128xf32, #tpu.memory_space<vmem>>, vector<1x128xf32>
    %38 = arith.addf %36, %37 : vector<1x128xf32>
    %39 = arith.index_cast %34 : i32 to index
    %c0_29 = arith.constant 0 : index
    %40 = vector.load %arg12[%39, %c0_29] : memref<32x128xf32, #tpu.memory_space<vmem>>, vector<1x128xf32>
    tpu.vector_store %arg12[%39, %c0_29], %38 {strides = array<i32>} : memref<32x128xf32, #tpu.memory_space<vmem>>, vector<1x128xf32>,
    %c4 = arith.constant 4 : index
    %41 = memref.load %arg0[%c4] : memref<64xi32, #tpu.memory_space<smem>>
    %42 = arith.index_cast %41 : i32 to index
    %c0_30 = arith.constant 0 : index
    %43 = vector.load %arg12[%42, %c0_30] : memref<32x128xf32, #tpu.memory_space<vmem>>, vector<1x128xf32>
    %c4_31 = arith.constant 4 : index
    %c0_32 = arith.constant 0 : index
    %44 = vector.load %arg11[%c4_31, %c0_32] : memref<64x128xf32, #tpu.memory_space<vmem>>, vector<1x128xf32>
    %45 = arith.addf %43, %44 : vector<1x128xf32>
    %46 = arith.index_cast %41 : i32 to index
    %c0_33 = arith.constant 0 : index
    %47 = vector.load %arg12[%46, %c0_33] : memref<32x128xf32, #tpu.memory_space<vmem>>, vector<1x128xf32>
    tpu.vector_store %arg12[%46, %c0_33], %45 {strides = array<i32>} : memref<32x128xf32, #tpu.memory_space<vmem>>, vector<1x128xf32>,
    %c5 = arith.constant 5 : index
    %48 = memref.load %arg0[%c5] : memref<64xi32, #tpu.memory_space<smem>>
    %49 = arith.index_cast %48 : i32 to index
    %c0_34 = arith.constant 0 : index
    %50 = vector.load %arg12[%49, %c0_34] : memref<32x128xf32, #tpu.memory_space<vmem>>, vector<1x128xf32>
    %c5_35 = arith.constant 5 : index
    %c0_36 = arith.constant 0 : index
    %51 = vector.load %arg11[%c5_35, %c0_36] : memref<64x128xf32, #tpu.memory_space<vmem>>, vector<1x128xf32>
    %52 = arith.addf %50, %51 : vector<1x128xf32>
    %53 = arith.index_cast %48 : i32 to index
    %c0_37 = arith.constant 0 : index
    %54 = vector.load %arg12[%53, %c0_37] : memref<32x128xf32, #tpu.memory_space<vmem>>, vector<1x128xf32>
    tpu.vector_store %arg12[%53, %c0_37], %52 {strides = array<i32>} : memref<32x128xf32, #tpu.memory_space<vmem>>, vector<1x128xf32>,
    %c6 = arith.constant 6 : index
    %55 = memref.load %arg0[%c6] : memref<64xi32, #tpu.memory_space<smem>>
    %56 = arith.index_cast %55 : i32 to index
    %c0_38 = arith.constant 0 : index
    %57 = vector.load %arg12[%56, %c0_38] : memref<32x128xf32, #tpu.memory_space<vmem>>, vector<1x128xf32>
    %c6_39 = arith.constant 6 : index
    %c0_40 = arith.constant 0 : index
    %58 = vector.load %arg11[%c6_39, %c0_40] : memref<64x128xf32, #tpu.memory_space<vmem>>, vector<1x128xf32>
    %59 = arith.addf %57, %58 : vector<1x128xf32>
    %60 = arith.index_cast %55 : i32 to index
    %c0_41 = arith.constant 0 : index
    %61 = vector.load %arg12[%60, %c0_41] : memref<32x128xf32, #tpu.memory_space<vmem>>, vector<1x128xf32>
    tpu.vector_store %arg12[%60, %c0_41], %59 {strides = array<i32>} : memref<32x128xf32, #tpu.memory_space<vmem>>, vector<1x128xf32>,
    %c7 = arith.constant 7 : index
    %62 = memref.load %arg0[%c7] : memref<64xi32, #tpu.memory_space<smem>>
    %63 = arith.index_cast %62 : i32 to index
    %c0_42 = arith.constant 0 : index
    %64 = vector.load %arg12[%63, %c0_42] : memref<32x128xf32, #tpu.memory_space<vmem>>, vector<1x128xf32>
    %c7_43 = arith.constant 7 : index
    %c0_44 = arith.constant 0 : index
    %65 = vector.load %arg11[%c7_43, %c0_44] : memref<64x128xf32, #tpu.memory_space<vmem>>, vector<1x128xf32>
    %66 = arith.addf %64, %65 : vector<1x128xf32>
    %67 = arith.index_cast %62 : i32 to index
    %c0_45 = arith.constant 0 : index
    %68 = vector.load %arg12[%67, %c0_45] : memref<32x128xf32, #tpu.memory_space<vmem>>, vector<1x128xf32>
    tpu.vector_store %arg12[%67, %c0_45], %66 {strides = array<i32>} : memref<32x128xf32, #tpu.memory_space<vmem>>, vector<1x128xf32>,
    %c8 = arith.constant 8 : index
    %69 = memref.load %arg0[%c8] : memref<64xi32, #tpu.memory_space<smem>>
    %70 = arith.index_cast %69 : i32 to index
    %c0_46 = arith.constant 0 : index
    %71 = vector.load %arg12[%70, %c0_46] : memref<32x128xf32, #tpu.memory_space<vmem>>, vector<1x128xf32>
    %c8_47 = arith.constant 8 : index
    %c0_48 = arith.constant 0 : index
    %72 = vector.load %arg11[%c8_47, %c0_48] : memref<64x128xf32, #tpu.memory_space<vmem>>, vector<1x128xf32>
    %73 = arith.addf %71, %72 : vector<1x128xf32>
    %74 = arith.index_cast %69 : i32 to index
    %c0_49 = arith.constant 0 : index
    %75 = vector.load %arg12[%74, %c0_49] : memref<32x128xf32, #tpu.memory_space<vmem>>, vector<1x128xf32>
    tpu.vector_store %arg12[%74, %c0_49], %73 {strides = array<i32>} : memref<32x128xf32, #tpu.memory_space<vmem>>, vector<1x128xf32>,
    %c9 = arith.constant 9 : index
    %76 = memref.load %arg0[%c9] : memref<64xi32, #tpu.memory_space<smem>>
    %77 = arith.index_cast %76 : i32 to index
    %c0_50 = arith.constant 0 : index
    %78 = vector.load %arg12[%77, %c0_50] : memref<32x128xf32, #tpu.memory_space<vmem>>, vector<1x128xf32>
    %c9_51 = arith.constant 9 : index
    %c0_52 = arith.constant 0 : index
    %79 = vector.load %arg11[%c9_51, %c0_52] : memref<64x128xf32, #tpu.memory_space<vmem>>, vector<1x128xf32>
    %80 = arith.addf %78, %79 : vector<1x128xf32>
    %81 = arith.index_cast %76 : i32 to index
    %c0_53 = arith.constant 0 : index
    %82 = vector.load %arg12[%81, %c0_53] : memref<32x128xf32, #tpu.memory_space<vmem>>, vector<1x128xf32>
    tpu.vector_store %arg12[%81, %c0_53], %80 {strides = array<i32>} : memref<32x128xf32, #tpu.memory_space<vmem>>, vector<1x128xf32>,
    %c10 = arith.constant 10 : index
    %83 = memref.load %arg0[%c10] : memref<64xi32, #tpu.memory_space<smem>>
    %84 = arith.index_cast %83 : i32 to index
    %c0_54 = arith.constant 0 : index
    %85 = vector.load %arg12[%84, %c0_54] : memref<32x128xf32, #tpu.memory_space<vmem>>, vector<1x128xf32>
    %c10_55 = arith.constant 10 : index
    %c0_56 = arith.constant 0 : index
    %86 = vector.load %arg11[%c10_55, %c0_56] : memref<64x128xf32, #tpu.memory_space<vmem>>, vector<1x128xf32>
    %87 = arith.addf %85, %86 : vector<1x128xf32>
    %88 = arith.index_cast %83 : i32 to index
    %c0_57 = arith.constant 0 : index
    %89 = vector.load %arg12[%88, %c0_57] : memref<32x128xf32, #tpu.memory_space<vmem>>, vector<1x128xf32>
    tpu.vector_store %arg12[%88, %c0_57], %87 {strides = array<i32>} : memref<32x128xf32, #tpu.memory_space<vmem>>, vector<1x128xf32>,
    %c11 = arith.constant 11 : index
    %90 = memref.load %arg0[%c11] : memref<64xi32, #tpu.memory_space<smem>>
    %91 = arith.index_cast %90 : i32 to index
    %c0_58 = arith.constant 0 : index
    %92 = vector.load %arg12[%91, %c0_58] : memref<32x128xf32, #tpu.memory_space<vmem>>, vector<1x128xf32>
    %c11_59 = arith.constant 11 : index
    %c0_60 = arith.constant 0 : index
    %93 = vector.load %arg11[%c11_59, %c0_60] : memref<64x128xf32, #tpu.memory_space<vmem>>, vector<1x128xf32>
    %94 = arith.addf %92, %93 : vector<1x128xf32>
    %95 = arith.index_cast %90 : i32 to index
    %c0_61 = arith.constant 0 : index
    %96 = vector.load %arg12[%95, %c0_61] : memref<32x128xf32, #tpu.memory_space<vmem>>, vector<1x128xf32>
    tpu.vector_store %arg12[%95, %c0_61], %94 {strides = array<i32>} : memref<32x128xf32, #tpu.memory_space<vmem>>, vector<1x128xf32>,
    %c12 = arith.constant 12 : index
    %97 = memref.load %arg0[%c12] : memref<64xi32, #tpu.memory_space<smem>>
    %98 = arith.index_cast %97 : i32 to index
    %c0_62 = arith.constant 0 : index
    %99 = vector.load %arg12[%98, %c0_62] : memref<32x128xf32, #tpu.memory_space<vmem>>, vector<1x128xf32>
    %c12_63 = arith.constant 12 : index
    %c0_64 = arith.constant 0 : index
    %100 = vector.load %arg11[%c12_63, %c0_64] : memref<64x128xf32, #tpu.memory_space<vmem>>, vector<1x128xf32>
    %101 = arith.addf %99, %100 : vector<1x128xf32>
    %102 = arith.index_cast %97 : i32 to index
    %c0_65 = arith.constant 0 : index
    %103 = vector.load %arg12[%102, %c0_65] : memref<32x128xf32, #tpu.memory_space<vmem>>, vector<1x128xf32>
    tpu.vector_store %arg12[%102, %c0_65], %101 {strides = array<i32>} : memref<32x128xf32, #tpu.memory_space<vmem>>, vector<1x128xf32>,
    %c13 = arith.constant 13 : index
    %104 = memref.load %arg0[%c13] : memref<64xi32, #tpu.memory_space<smem>>
    %105 = arith.index_cast %104 : i32 to index
    %c0_66 = arith.constant 0 : index
    %106 = vector.load %arg12[%105, %c0_66] : memref<32x128xf32, #tpu.memory_space<vmem>>, vector<1x128xf32>
    %c13_67 = arith.constant 13 : index
    %c0_68 = arith.constant 0 : index
    %107 = vector.load %arg11[%c13_67, %c0_68] : memref<64x128xf32, #tpu.memory_space<vmem>>, vector<1x128xf32>
    %108 = arith.addf %106, %107 : vector<1x128xf32>
    %109 = arith.index_cast %104 : i32 to index
    %c0_69 = arith.constant 0 : index
    %110 = vector.load %arg12[%109, %c0_69] : memref<32x128xf32, #tpu.memory_space<vmem>>, vector<1x128xf32>
    tpu.vector_store %arg12[%109, %c0_69], %108 {strides = array<i32>} : memref<32x128xf32, #tpu.memory_space<vmem>>, vector<1x128xf32>,
    %c14 = arith.constant 14 : index
    %111 = memref.load %arg0[%c14] : memref<64xi32, #tpu.memory_space<smem>>
    %112 = arith.index_cast %111 : i32 to index
    %c0_70 = arith.constant 0 : index
    %113 = vector.load %arg12[%112, %c0_70] : memref<32x128xf32, #tpu.memory_space<vmem>>, vector<1x128xf32>
    %c14_71 = arith.constant 14 : index
    %c0_72 = arith.constant 0 : index
    %114 = vector.load %arg11[%c14_71, %c0_72] : memref<64x128xf32, #tpu.memory_space<vmem>>, vector<1x128xf32>
    %115 = arith.addf %113, %114 : vector<1x128xf32>
    %116 = arith.index_cast %111 : i32 to index
    %c0_73 = arith.constant 0 : index
    %117 = vector.load %arg12[%116, %c0_73] : memref<32x128xf32, #tpu.memory_space<vmem>>, vector<1x128xf32>
    tpu.vector_store %arg12[%116, %c0_73], %115 {strides = array<i32>} : memref<32x128xf32, #tpu.memory_space<vmem>>, vector<1x128xf32>,
    %c15 = arith.constant 15 : index
    %118 = memref.load %arg0[%c15] : memref<64xi32, #tpu.memory_space<smem>>
    %119 = arith.index_cast %118 : i32 to index
    %c0_74 = arith.constant 0 : index
    %120 = vector.load %arg12[%119, %c0_74] : memref<32x128xf32, #tpu.memory_space<vmem>>, vector<1x128xf32>
    %c15_75 = arith.constant 15 : index
    %c0_76 = arith.constant 0 : index
    %121 = vector.load %arg11[%c15_75, %c0_76] : memref<64x128xf32, #tpu.memory_space<vmem>>, vector<1x128xf32>
    %122 = arith.addf %120, %121 : vector<1x128xf32>
    %123 = arith.index_cast %118 : i32 to index
    %c0_77 = arith.constant 0 : index
    %124 = vector.load %arg12[%123, %c0_77] : memref<32x128xf32, #tpu.memory_space<vmem>>, vector<1x128xf32>
    tpu.vector_store %arg12[%123, %c0_77], %122 {strides = array<i32>} : memref<32x128xf32, #tpu.memory_space<vmem>>, vector<1x128xf32>,
    %c16 = arith.constant 16 : index
    %125 = memref.load %arg0[%c16] : memref<64xi32, #tpu.memory_space<smem>>
    %126 = arith.index_cast %125 : i32 to index
    %c0_78 = arith.constant 0 : index
    %127 = vector.load %arg12[%126, %c0_78] : memref<32x128xf32, #tpu.memory_space<vmem>>, vector<1x128xf32>
    %c16_79 = arith.constant 16 : index
    %c0_80 = arith.constant 0 : index
    %128 = vector.load %arg11[%c16_79, %c0_80] : memref<64x128xf32, #tpu.memory_space<vmem>>, vector<1x128xf32>
    %129 = arith.addf %127, %128 : vector<1x128xf32>
    %130 = arith.index_cast %125 : i32 to index
    %c0_81 = arith.constant 0 : index
    %131 = vector.load %arg12[%130, %c0_81] : memref<32x128xf32, #tpu.memory_space<vmem>>, vector<1x128xf32>
    tpu.vector_store %arg12[%130, %c0_81], %129 {strides = array<i32>} : memref<32x128xf32, #tpu.memory_space<vmem>>, vector<1x128xf32>,
    %c17 = arith.constant 17 : index
    %132 = memref.load %arg0[%c17] : memref<64xi32, #tpu.memory_space<smem>>
    %133 = arith.index_cast %132 : i32 to index
    %c0_82 = arith.constant 0 : index
    %134 = vector.load %arg12[%133, %c0_82] : memref<32x128xf32, #tpu.memory_space<vmem>>, vector<1x128xf32>
    %c17_83 = arith.constant 17 : index
    %c0_84 = arith.constant 0 : index
    %135 = vector.load %arg11[%c17_83, %c0_84] : memref<64x128xf32, #tpu.memory_space<vmem>>, vector<1x128xf32>
    %136 = arith.addf %134, %135 : vector<1x128xf32>
    %137 = arith.index_cast %132 : i32 to index
    %c0_85 = arith.constant 0 : index
    %138 = vector.load %arg12[%137, %c0_85] : memref<32x128xf32, #tpu.memory_space<vmem>>, vector<1x128xf32>
    tpu.vector_store %arg12[%137, %c0_85], %136 {strides = array<i32>} : memref<32x128xf32, #tpu.memory_space<vmem>>, vector<1x128xf32>,
    %c18 = arith.constant 18 : index
    %139 = memref.load %arg0[%c18] : memref<64xi32, #tpu.memory_space<smem>>
    %140 = arith.index_cast %139 : i32 to index
    %c0_86 = arith.constant 0 : index
    %141 = vector.load %arg12[%140, %c0_86] : memref<32x128xf32, #tpu.memory_space<vmem>>, vector<1x128xf32>
    %c18_87 = arith.constant 18 : index
    %c0_88 = arith.constant 0 : index
    %142 = vector.load %arg11[%c18_87, %c0_88] : memref<64x128xf32, #tpu.memory_space<vmem>>, vector<1x128xf32>
    %143 = arith.addf %141, %142 : vector<1x128xf32>
    %144 = arith.index_cast %139 : i32 to index
    %c0_89 = arith.constant 0 : index
    %145 = vector.load %arg12[%144, %c0_89] : memref<32x128xf32, #tpu.memory_space<vmem>>, vector<1x128xf32>
    tpu.vector_store %arg12[%144, %c0_89], %143 {strides = array<i32>} : memref<32x128xf32, #tpu.memory_space<vmem>>, vector<1x128xf32>,
    %c19 = arith.constant 19 : index
    %146 = memref.load %arg0[%c19] : memref<64xi32, #tpu.memory_space<smem>>
    %147 = arith.index_cast %146 : i32 to index
    %c0_90 = arith.constant 0 : index
    %148 = vector.load %arg12[%147, %c0_90] : memref<32x128xf32, #tpu.memory_space<vmem>>, vector<1x128xf32>
    %c19_91 = arith.constant 19 : index
    %c0_92 = arith.constant 0 : index
    %149 = vector.load %arg11[%c19_91, %c0_92] : memref<64x128xf32, #tpu.memory_space<vmem>>, vector<1x128xf32>
    %150 = arith.addf %148, %149 : vector<1x128xf32>
    %151 = arith.index_cast %146 : i32 to index
    %c0_93 = arith.constant 0 : index
    %152 = vector.load %arg12[%151, %c0_93] : memref<32x128xf32, #tpu.memory_space<vmem>>, vector<1x128xf32>
    tpu.vector_store %arg12[%151, %c0_93], %150 {strides = array<i32>} : memref<32x128xf32, #tpu.memory_space<vmem>>, vector<1x128xf32>,
    %c20 = arith.constant 20 : index
    %153 = memref.load %arg0[%c20] : memref<64xi32, #tpu.memory_space<smem>>
    %154 = arith.index_cast %153 : i32 to index
    %c0_94 = arith.constant 0 : index
    %155 = vector.load %arg12[%154, %c0_94] : memref<32x128xf32, #tpu.memory_space<vmem>>, vector<1x128xf32>
    %c20_95 = arith.constant 20 : index
    %c0_96 = arith.constant 0 : index
    %156 = vector.load %arg11[%c20_95, %c0_96] : memref<64x128xf32, #tpu.memory_space<vmem>>, vector<1x128xf32>
    %157 = arith.addf %155, %156 : vector<1x128xf32>
    %158 = arith.index_cast %153 : i32 to index
    %c0_97 = arith.constant 0 : index
    %159 = vector.load %arg12[%158, %c0_97] : memref<32x128xf32, #tpu.memory_space<vmem>>, vector<1x128xf32>
    tpu.vector_store %arg12[%158, %c0_97], %157 {strides = array<i32>} : memref<32x128xf32, #tpu.memory_space<vmem>>, vector<1x128xf32>,
    %c21 = arith.constant 21 : index
    %160 = memref.load %arg0[%c21] : memref<64xi32, #tpu.memory_space<smem>>
    %161 = arith.index_cast %160 : i32 to index
    %c0_98 = arith.constant 0 : index
    %162 = vector.load %arg12[%161, %c0_98] : memref<32x128xf32, #tpu.memory_space<vmem>>, vector<1x128xf32>
    %c21_99 = arith.constant 21 : index
    %c0_100 = arith.constant 0 : index
    %163 = vector.load %arg11[%c21_99, %c0_100] : memref<64x128xf32, #tpu.memory_space<vmem>>, vector<1x128xf32>
    %164 = arith.addf %162, %163 : vector<1x128xf32>
    %165 = arith.index_cast %160 : i32 to index
    %c0_101 = arith.constant 0 : index
    %166 = vector.load %arg12[%165, %c0_101] : memref<32x128xf32, #tpu.memory_space<vmem>>, vector<1x128xf32>
    tpu.vector_store %arg12[%165, %c0_101], %164 {strides = array<i32>} : memref<32x128xf32, #tpu.memory_space<vmem>>, vector<1x128xf32>,
    %c22 = arith.constant 22 : index
    %167 = memref.load %arg0[%c22] : memref<64xi32, #tpu.memory_space<smem>>
    %168 = arith.index_cast %167 : i32 to index
    %c0_102 = arith.constant 0 : index
    %169 = vector.load %arg12[%168, %c0_102] : memref<32x128xf32, #tpu.memory_space<vmem>>, vector<1x128xf32>
    %c22_103 = arith.constant 22 : index
    %c0_104 = arith.constant 0 : index
    %170 = vector.load %arg11[%c22_103, %c0_104] : memref<64x128xf32, #tpu.memory_space<vmem>>, vector<1x128xf32>
    %171 = arith.addf %169, %170 : vector<1x128xf32>
    %172 = arith.index_cast %167 : i32 to index
    %c0_105 = arith.constant 0 : index
    %173 = vector.load %arg12[%172, %c0_105] : memref<32x128xf32, #tpu.memory_space<vmem>>, vector<1x128xf32>
    tpu.vector_store %arg12[%172, %c0_105], %171 {strides = array<i32>} : memref<32x128xf32, #tpu.memory_space<vmem>>, vector<1x128xf32>,
    %c23 = arith.constant 23 : index
    %174 = memref.load %arg0[%c23] : memref<64xi32, #tpu.memory_space<smem>>
    %175 = arith.index_cast %174 : i32 to index
    %c0_106 = arith.constant 0 : index
    %176 = vector.load %arg12[%175, %c0_106] : memref<32x128xf32, #tpu.memory_space<vmem>>, vector<1x128xf32>
    %c23_107 = arith.constant 23 : index
    %c0_108 = arith.constant 0 : index
    %177 = vector.load %arg11[%c23_107, %c0_108] : memref<64x128xf32, #tpu.memory_space<vmem>>, vector<1x128xf32>
    %178 = arith.addf %176, %177 : vector<1x128xf32>
    %179 = arith.index_cast %174 : i32 to index
    %c0_109 = arith.constant 0 : index
    %180 = vector.load %arg12[%179, %c0_109] : memref<32x128xf32, #tpu.memory_space<vmem>>, vector<1x128xf32>
    tpu.vector_store %arg12[%179, %c0_109], %178 {strides = array<i32>} : memref<32x128xf32, #tpu.memory_space<vmem>>, vector<1x128xf32>,
    %c24 = arith.constant 24 : index
    %181 = memref.load %arg0[%c24] : memref<64xi32, #tpu.memory_space<smem>>
    %182 = arith.index_cast %181 : i32 to index
    %c0_110 = arith.constant 0 : index
    %183 = vector.load %arg12[%182, %c0_110] : memref<32x128xf32, #tpu.memory_space<vmem>>, vector<1x128xf32>
    %c24_111 = arith.constant 24 : index
    %c0_112 = arith.constant 0 : index
    %184 = vector.load %arg11[%c24_111, %c0_112] : memref<64x128xf32, #tpu.memory_space<vmem>>, vector<1x128xf32>
    %185 = arith.addf %183, %184 : vector<1x128xf32>
    %186 = arith.index_cast %181 : i32 to index
    %c0_113 = arith.constant 0 : index
    %187 = vector.load %arg12[%186, %c0_113] : memref<32x128xf32, #tpu.memory_space<vmem>>, vector<1x128xf32>
    tpu.vector_store %arg12[%186, %c0_113], %185 {strides = array<i32>} : memref<32x128xf32, #tpu.memory_space<vmem>>, vector<1x128xf32>,
    %c25 = arith.constant 25 : index
    %188 = memref.load %arg0[%c25] : memref<64xi32, #tpu.memory_space<smem>>
    %189 = arith.index_cast %188 : i32 to index
    %c0_114 = arith.constant 0 : index
    %190 = vector.load %arg12[%189, %c0_114] : memref<32x128xf32, #tpu.memory_space<vmem>>, vector<1x128xf32>
    %c25_115 = arith.constant 25 : index
    %c0_116 = arith.constant 0 : index
    %191 = vector.load %arg11[%c25_115, %c0_116] : memref<64x128xf32, #tpu.memory_space<vmem>>, vector<1x128xf32>
    %192 = arith.addf %190, %191 : vector<1x128xf32>
    %193 = arith.index_cast %188 : i32 to index
    %c0_117 = arith.constant 0 : index
    %194 = vector.load %arg12[%193, %c0_117] : memref<32x128xf32, #tpu.memory_space<vmem>>, vector<1x128xf32>
    tpu.vector_store %arg12[%193, %c0_117], %192 {strides = array<i32>} : memref<32x128xf32, #tpu.memory_space<vmem>>, vector<1x128xf32>,
    %c26 = arith.constant 26 : index
    %195 = memref.load %arg0[%c26] : memref<64xi32, #tpu.memory_space<smem>>
    %196 = arith.index_cast %195 : i32 to index
    %c0_118 = arith.constant 0 : index
    %197 = vector.load %arg12[%196, %c0_118] : memref<32x128xf32, #tpu.memory_space<vmem>>, vector<1x128xf32>
    %c26_119 = arith.constant 26 : index
    %c0_120 = arith.constant 0 : index
    %198 = vector.load %arg11[%c26_119, %c0_120] : memref<64x128xf32, #tpu.memory_space<vmem>>, vector<1x128xf32>
    %199 = arith.addf %197, %198 : vector<1x128xf32>
    %200 = arith.index_cast %195 : i32 to index
    %c0_121 = arith.constant 0 : index
    %201 = vector.load %arg12[%200, %c0_121] : memref<32x128xf32, #tpu.memory_space<vmem>>, vector<1x128xf32>
    tpu.vector_store %arg12[%200, %c0_121], %199 {strides = array<i32>} : memref<32x128xf32, #tpu.memory_space<vmem>>, vector<1x128xf32>,
    %c27 = arith.constant 27 : index
    %202 = memref.load %arg0[%c27] : memref<64xi32, #tpu.memory_space<smem>>
    %203 = arith.index_cast %202 : i32 to index
    %c0_122 = arith.constant 0 : index
    %204 = vector.load %arg12[%203, %c0_122] : memref<32x128xf32, #tpu.memory_space<vmem>>, vector<1x128xf32>
    %c27_123 = arith.constant 27 : index
    %c0_124 = arith.constant 0 : index
    %205 = vector.load %arg11[%c27_123, %c0_124] : memref<64x128xf32, #tpu.memory_space<vmem>>, vector<1x128xf32>
    %206 = arith.addf %204, %205 : vector<1x128xf32>
    %207 = arith.index_cast %202 : i32 to index
    %c0_125 = arith.constant 0 : index
    %208 = vector.load %arg12[%207, %c0_125] : memref<32x128xf32, #tpu.memory_space<vmem>>, vector<1x128xf32>
    tpu.vector_store %arg12[%207, %c0_125], %206 {strides = array<i32>} : memref<32x128xf32, #tpu.memory_space<vmem>>, vector<1x128xf32>,
    %c28 = arith.constant 28 : index
    %209 = memref.load %arg0[%c28] : memref<64xi32, #tpu.memory_space<smem>>
    %210 = arith.index_cast %209 : i32 to index
    %c0_126 = arith.constant 0 : index
    %211 = vector.load %arg12[%210, %c0_126] : memref<32x128xf32, #tpu.memory_space<vmem>>, vector<1x128xf32>
    %c28_127 = arith.constant 28 : index
    %c0_128 = arith.constant 0 : index
    %212 = vector.load %arg11[%c28_127, %c0_128] : memref<64x128xf32, #tpu.memory_space<vmem>>, vector<1x128xf32>
    %213 = arith.addf %211, %212 : vector<1x128xf32>
    %214 = arith.index_cast %209 : i32 to index
    %c0_129 = arith.constant 0 : index
    %215 = vector.load %arg12[%214, %c0_129] : memref<32x128xf32, #tpu.memory_space<vmem>>, vector<1x128xf32>
    tpu.vector_store %arg12[%214, %c0_129], %213 {strides = array<i32>} : memref<32x128xf32, #tpu.memory_space<vmem>>, vector<1x128xf32>,
    %c29 = arith.constant 29 : index
    %216 = memref.load %arg0[%c29] : memref<64xi32, #tpu.memory_space<smem>>
    %217 = arith.index_cast %216 : i32 to index
    %c0_130 = arith.constant 0 : index
    %218 = vector.load %arg12[%217, %c0_130] : memref<32x128xf32, #tpu.memory_space<vmem>>, vector<1x128xf32>
    %c29_131 = arith.constant 29 : index
    %c0_132 = arith.constant 0 : index
    %219 = vector.load %arg11[%c29_131, %c0_132] : memref<64x128xf32, #tpu.memory_space<vmem>>, vector<1x128xf32>
    %220 = arith.addf %218, %219 : vector<1x128xf32>
    %221 = arith.index_cast %216 : i32 to index
    %c0_133 = arith.constant 0 : index
    %222 = vector.load %arg12[%221, %c0_133] : memref<32x128xf32, #tpu.memory_space<vmem>>, vector<1x128xf32>
    tpu.vector_store %arg12[%221, %c0_133], %220 {strides = array<i32>} : memref<32x128xf32, #tpu.memory_space<vmem>>, vector<1x128xf32>,
    %c30 = arith.constant 30 : index
    %223 = memref.load %arg0[%c30] : memref<64xi32, #tpu.memory_space<smem>>
    %224 = arith.index_cast %223 : i32 to index
    %c0_134 = arith.constant 0 : index
    %225 = vector.load %arg12[%224, %c0_134] : memref<32x128xf32, #tpu.memory_space<vmem>>, vector<1x128xf32>
    %c30_135 = arith.constant 30 : index
    %c0_136 = arith.constant 0 : index
    %226 = vector.load %arg11[%c30_135, %c0_136] : memref<64x128xf32, #tpu.memory_space<vmem>>, vector<1x128xf32>
    %227 = arith.addf %225, %226 : vector<1x128xf32>
    %228 = arith.index_cast %223 : i32 to index
    %c0_137 = arith.constant 0 : index
    %229 = vector.load %arg12[%228, %c0_137] : memref<32x128xf32, #tpu.memory_space<vmem>>, vector<1x128xf32>
    tpu.vector_store %arg12[%228, %c0_137], %227 {strides = array<i32>} : memref<32x128xf32, #tpu.memory_space<vmem>>, vector<1x128xf32>,
    %c31 = arith.constant 31 : index
    %230 = memref.load %arg0[%c31] : memref<64xi32, #tpu.memory_space<smem>>
    %231 = arith.index_cast %230 : i32 to index
    %c0_138 = arith.constant 0 : index
    %232 = vector.load %arg12[%231, %c0_138] : memref<32x128xf32, #tpu.memory_space<vmem>>, vector<1x128xf32>
    %c31_139 = arith.constant 31 : index
    %c0_140 = arith.constant 0 : index
    %233 = vector.load %arg11[%c31_139, %c0_140] : memref<64x128xf32, #tpu.memory_space<vmem>>, vector<1x128xf32>
    %234 = arith.addf %232, %233 : vector<1x128xf32>
    %235 = arith.index_cast %230 : i32 to index
    %c0_141 = arith.constant 0 : index
    %236 = vector.load %arg12[%235, %c0_141] : memref<32x128xf32, #tpu.memory_space<vmem>>, vector<1x128xf32>
    tpu.vector_store %arg12[%235, %c0_141], %234 {strides = array<i32>} : memref<32x128xf32, #tpu.memory_space<vmem>>, vector<1x128xf32>,
    %c32 = arith.constant 32 : index
    %237 = memref.load %arg0[%c32] : memref<64xi32, #tpu.memory_space<smem>>
    %238 = arith.index_cast %237 : i32 to index
    %c0_142 = arith.constant 0 : index
    %239 = vector.load %arg12[%238, %c0_142] : memref<32x128xf32, #tpu.memory_space<vmem>>, vector<1x128xf32>
    %c32_143 = arith.constant 32 : index
    %c0_144 = arith.constant 0 : index
    %240 = vector.load %arg11[%c32_143, %c0_144] : memref<64x128xf32, #tpu.memory_space<vmem>>, vector<1x128xf32>
    %241 = arith.addf %239, %240 : vector<1x128xf32>
    %242 = arith.index_cast %237 : i32 to index
    %c0_145 = arith.constant 0 : index
    %243 = vector.load %arg12[%242, %c0_145] : memref<32x128xf32, #tpu.memory_space<vmem>>, vector<1x128xf32>
    tpu.vector_store %arg12[%242, %c0_145], %241 {strides = array<i32>} : memref<32x128xf32, #tpu.memory_space<vmem>>, vector<1x128xf32>,
    %c33 = arith.constant 33 : index
    %244 = memref.load %arg0[%c33] : memref<64xi32, #tpu.memory_space<smem>>
    %245 = arith.index_cast %244 : i32 to index
    %c0_146 = arith.constant 0 : index
    %246 = vector.load %arg12[%245, %c0_146] : memref<32x128xf32, #tpu.memory_space<vmem>>, vector<1x128xf32>
    %c33_147 = arith.constant 33 : index
    %c0_148 = arith.constant 0 : index
    %247 = vector.load %arg11[%c33_147, %c0_148] : memref<64x128xf32, #tpu.memory_space<vmem>>, vector<1x128xf32>
    %248 = arith.addf %246, %247 : vector<1x128xf32>
    %249 = arith.index_cast %244 : i32 to index
    %c0_149 = arith.constant 0 : index
    %250 = vector.load %arg12[%249, %c0_149] : memref<32x128xf32, #tpu.memory_space<vmem>>, vector<1x128xf32>
    tpu.vector_store %arg12[%249, %c0_149], %248 {strides = array<i32>} : memref<32x128xf32, #tpu.memory_space<vmem>>, vector<1x128xf32>,
    %c34 = arith.constant 34 : index
    %251 = memref.load %arg0[%c34] : memref<64xi32, #tpu.memory_space<smem>>
    %252 = arith.index_cast %251 : i32 to index
    %c0_150 = arith.constant 0 : index
    %253 = vector.load %arg12[%252, %c0_150] : memref<32x128xf32, #tpu.memory_space<vmem>>, vector<1x128xf32>
    %c34_151 = arith.constant 34 : index
    %c0_152 = arith.constant 0 : index
    %254 = vector.load %arg11[%c34_151, %c0_152] : memref<64x128xf32, #tpu.memory_space<vmem>>, vector<1x128xf32>
    %255 = arith.addf %253, %254 : vector<1x128xf32>
    %256 = arith.index_cast %251 : i32 to index
    %c0_153 = arith.constant 0 : index
    %257 = vector.load %arg12[%256, %c0_153] : memref<32x128xf32, #tpu.memory_space<vmem>>, vector<1x128xf32>
    tpu.vector_store %arg12[%256, %c0_153], %255 {strides = array<i32>} : memref<32x128xf32, #tpu.memory_space<vmem>>, vector<1x128xf32>,
    %c35 = arith.constant 35 : index
    %258 = memref.load %arg0[%c35] : memref<64xi32, #tpu.memory_space<smem>>
    %259 = arith.index_cast %258 : i32 to index
    %c0_154 = arith.constant 0 : index
    %260 = vector.load %arg12[%259, %c0_154] : memref<32x128xf32, #tpu.memory_space<vmem>>, vector<1x128xf32>
    %c35_155 = arith.constant 35 : index
    %c0_156 = arith.constant 0 : index
    %261 = vector.load %arg11[%c35_155, %c0_156] : memref<64x128xf32, #tpu.memory_space<vmem>>, vector<1x128xf32>
    %262 = arith.addf %260, %261 : vector<1x128xf32>
    %263 = arith.index_cast %258 : i32 to index
    %c0_157 = arith.constant 0 : index
    %264 = vector.load %arg12[%263, %c0_157] : memref<32x128xf32, #tpu.memory_space<vmem>>, vector<1x128xf32>
    tpu.vector_store %arg12[%263, %c0_157], %262 {strides = array<i32>} : memref<32x128xf32, #tpu.memory_space<vmem>>, vector<1x128xf32>,
    %c36 = arith.constant 36 : index
    %265 = memref.load %arg0[%c36] : memref<64xi32, #tpu.memory_space<smem>>
    %266 = arith.index_cast %265 : i32 to index
    %c0_158 = arith.constant 0 : index
    %267 = vector.load %arg12[%266, %c0_158] : memref<32x128xf32, #tpu.memory_space<vmem>>, vector<1x128xf32>
    %c36_159 = arith.constant 36 : index
    %c0_160 = arith.constant 0 : index
    %268 = vector.load %arg11[%c36_159, %c0_160] : memref<64x128xf32, #tpu.memory_space<vmem>>, vector<1x128xf32>
    %269 = arith.addf %267, %268 : vector<1x128xf32>
    %270 = arith.index_cast %265 : i32 to index
    %c0_161 = arith.constant 0 : index
    %271 = vector.load %arg12[%270, %c0_161] : memref<32x128xf32, #tpu.memory_space<vmem>>, vector<1x128xf32>
    tpu.vector_store %arg12[%270, %c0_161], %269 {strides = array<i32>} : memref<32x128xf32, #tpu.memory_space<vmem>>, vector<1x128xf32>,
    %c37 = arith.constant 37 : index
    %272 = memref.load %arg0[%c37] : memref<64xi32, #tpu.memory_space<smem>>
    %273 = arith.index_cast %272 : i32 to index
    %c0_162 = arith.constant 0 : index
    %274 = vector.load %arg12[%273, %c0_162] : memref<32x128xf32, #tpu.memory_space<vmem>>, vector<1x128xf32>
    %c37_163 = arith.constant 37 : index
    %c0_164 = arith.constant 0 : index
    %275 = vector.load %arg11[%c37_163, %c0_164] : memref<64x128xf32, #tpu.memory_space<vmem>>, vector<1x128xf32>
    %276 = arith.addf %274, %275 : vector<1x128xf32>
    %277 = arith.index_cast %272 : i32 to index
    %c0_165 = arith.constant 0 : index
    %278 = vector.load %arg12[%277, %c0_165] : memref<32x128xf32, #tpu.memory_space<vmem>>, vector<1x128xf32>
    tpu.vector_store %arg12[%277, %c0_165], %276 {strides = array<i32>} : memref<32x128xf32, #tpu.memory_space<vmem>>, vector<1x128xf32>,
    %c38 = arith.constant 38 : index
    %279 = memref.load %arg0[%c38] : memref<64xi32, #tpu.memory_space<smem>>
    %280 = arith.index_cast %279 : i32 to index
    %c0_166 = arith.constant 0 : index
    %281 = vector.load %arg12[%280, %c0_166] : memref<32x128xf32, #tpu.memory_space<vmem>>, vector<1x128xf32>
    %c38_167 = arith.constant 38 : index
    %c0_168 = arith.constant 0 : index
    %282 = vector.load %arg11[%c38_167, %c0_168] : memref<64x128xf32, #tpu.memory_space<vmem>>, vector<1x128xf32>
    %283 = arith.addf %281, %282 : vector<1x128xf32>
    %284 = arith.index_cast %279 : i32 to index
    %c0_169 = arith.constant 0 : index
    %285 = vector.load %arg12[%284, %c0_169] : memref<32x128xf32, #tpu.memory_space<vmem>>, vector<1x128xf32>
    tpu.vector_store %arg12[%284, %c0_169], %283 {strides = array<i32>} : memref<32x128xf32, #tpu.memory_space<vmem>>, vector<1x128xf32>,
    %c39 = arith.constant 39 : index
    %286 = memref.load %arg0[%c39] : memref<64xi32, #tpu.memory_space<smem>>
    %287 = arith.index_cast %286 : i32 to index
    %c0_170 = arith.constant 0 : index
    %288 = vector.load %arg12[%287, %c0_170] : memref<32x128xf32, #tpu.memory_space<vmem>>, vector<1x128xf32>
    %c39_171 = arith.constant 39 : index
    %c0_172 = arith.constant 0 : index
    %289 = vector.load %arg11[%c39_171, %c0_172] : memref<64x128xf32, #tpu.memory_space<vmem>>, vector<1x128xf32>
    %290 = arith.addf %288, %289 : vector<1x128xf32>
    %291 = arith.index_cast %286 : i32 to index
    %c0_173 = arith.constant 0 : index
    %292 = vector.load %arg12[%291, %c0_173] : memref<32x128xf32, #tpu.memory_space<vmem>>, vector<1x128xf32>
    tpu.vector_store %arg12[%291, %c0_173], %290 {strides = array<i32>} : memref<32x128xf32, #tpu.memory_space<vmem>>, vector<1x128xf32>,
    %c40 = arith.constant 40 : index
    %293 = memref.load %arg0[%c40] : memref<64xi32, #tpu.memory_space<smem>>
    %294 = arith.index_cast %293 : i32 to index
    %c0_174 = arith.constant 0 : index
    %295 = vector.load %arg12[%294, %c0_174] : memref<32x128xf32, #tpu.memory_space<vmem>>, vector<1x128xf32>
    %c40_175 = arith.constant 40 : index
    %c0_176 = arith.constant 0 : index
    %296 = vector.load %arg11[%c40_175, %c0_176] : memref<64x128xf32, #tpu.memory_space<vmem>>, vector<1x128xf32>
    %297 = arith.addf %295, %296 : vector<1x128xf32>
    %298 = arith.index_cast %293 : i32 to index
    %c0_177 = arith.constant 0 : index
    %299 = vector.load %arg12[%298, %c0_177] : memref<32x128xf32, #tpu.memory_space<vmem>>, vector<1x128xf32>
    tpu.vector_store %arg12[%298, %c0_177], %297 {strides = array<i32>} : memref<32x128xf32, #tpu.memory_space<vmem>>, vector<1x128xf32>,
    %c41 = arith.constant 41 : index
    %300 = memref.load %arg0[%c41] : memref<64xi32, #tpu.memory_space<smem>>
    %301 = arith.index_cast %300 : i32 to index
    %c0_178 = arith.constant 0 : index
    %302 = vector.load %arg12[%301, %c0_178] : memref<32x128xf32, #tpu.memory_space<vmem>>, vector<1x128xf32>
    %c41_179 = arith.constant 41 : index
    %c0_180 = arith.constant 0 : index
    %303 = vector.load %arg11[%c41_179, %c0_180] : memref<64x128xf32, #tpu.memory_space<vmem>>, vector<1x128xf32>
    %304 = arith.addf %302, %303 : vector<1x128xf32>
    %305 = arith.index_cast %300 : i32 to index
    %c0_181 = arith.constant 0 : index
    %306 = vector.load %arg12[%305, %c0_181] : memref<32x128xf32, #tpu.memory_space<vmem>>, vector<1x128xf32>
    tpu.vector_store %arg12[%305, %c0_181], %304 {strides = array<i32>} : memref<32x128xf32, #tpu.memory_space<vmem>>, vector<1x128xf32>,
    %c42 = arith.constant 42 : index
    %307 = memref.load %arg0[%c42] : memref<64xi32, #tpu.memory_space<smem>>
    %308 = arith.index_cast %307 : i32 to index
    %c0_182 = arith.constant 0 : index
    %309 = vector.load %arg12[%308, %c0_182] : memref<32x128xf32, #tpu.memory_space<vmem>>, vector<1x128xf32>
    %c42_183 = arith.constant 42 : index
    %c0_184 = arith.constant 0 : index
    %310 = vector.load %arg11[%c42_183, %c0_184] : memref<64x128xf32, #tpu.memory_space<vmem>>, vector<1x128xf32>
    %311 = arith.addf %309, %310 : vector<1x128xf32>
    %312 = arith.index_cast %307 : i32 to index
    %c0_185 = arith.constant 0 : index
    %313 = vector.load %arg12[%312, %c0_185] : memref<32x128xf32, #tpu.memory_space<vmem>>, vector<1x128xf32>
    tpu.vector_store %arg12[%312, %c0_185], %311 {strides = array<i32>} : memref<32x128xf32, #tpu.memory_space<vmem>>, vector<1x128xf32>,
    %c43 = arith.constant 43 : index
    %314 = memref.load %arg0[%c43] : memref<64xi32, #tpu.memory_space<smem>>
    %315 = arith.index_cast %314 : i32 to index
    %c0_186 = arith.constant 0 : index
    %316 = vector.load %arg12[%315, %c0_186] : memref<32x128xf32, #tpu.memory_space<vmem>>, vector<1x128xf32>
    %c43_187 = arith.constant 43 : index
    %c0_188 = arith.constant 0 : index
    %317 = vector.load %arg11[%c43_187, %c0_188] : memref<64x128xf32, #tpu.memory_space<vmem>>, vector<1x128xf32>
    %318 = arith.addf %316, %317 : vector<1x128xf32>
    %319 = arith.index_cast %314 : i32 to index
    %c0_189 = arith.constant 0 : index
    %320 = vector.load %arg12[%319, %c0_189] : memref<32x128xf32, #tpu.memory_space<vmem>>, vector<1x128xf32>
    tpu.vector_store %arg12[%319, %c0_189], %318 {strides = array<i32>} : memref<32x128xf32, #tpu.memory_space<vmem>>, vector<1x128xf32>,
    %c44 = arith.constant 44 : index
    %321 = memref.load %arg0[%c44] : memref<64xi32, #tpu.memory_space<smem>>
    %322 = arith.index_cast %321 : i32 to index
    %c0_190 = arith.constant 0 : index
    %323 = vector.load %arg12[%322, %c0_190] : memref<32x128xf32, #tpu.memory_space<vmem>>, vector<1x128xf32>
    %c44_191 = arith.constant 44 : index
    %c0_192 = arith.constant 0 : index
    %324 = vector.load %arg11[%c44_191, %c0_192] : memref<64x128xf32, #tpu.memory_space<vmem>>, vector<1x128xf32>
    %325 = arith.addf %323, %324 : vector<1x128xf32>
    %326 = arith.index_cast %321 : i32 to index
    %c0_193 = arith.constant 0 : index
    %327 = vector.load %arg12[%326, %c0_193] : memref<32x128xf32, #tpu.memory_space<vmem>>, vector<1x128xf32>
    tpu.vector_store %arg12[%326, %c0_193], %325 {strides = array<i32>} : memref<32x128xf32, #tpu.memory_space<vmem>>, vector<1x128xf32>,
    %c45 = arith.constant 45 : index
    %328 = memref.load %arg0[%c45] : memref<64xi32, #tpu.memory_space<smem>>
    %329 = arith.index_cast %328 : i32 to index
    %c0_194 = arith.constant 0 : index
    %330 = vector.load %arg12[%329, %c0_194] : memref<32x128xf32, #tpu.memory_space<vmem>>, vector<1x128xf32>
    %c45_195 = arith.constant 45 : index
    %c0_196 = arith.constant 0 : index
    %331 = vector.load %arg11[%c45_195, %c0_196] : memref<64x128xf32, #tpu.memory_space<vmem>>, vector<1x128xf32>
    %332 = arith.addf %330, %331 : vector<1x128xf32>
    %333 = arith.index_cast %328 : i32 to index
    %c0_197 = arith.constant 0 : index
    %334 = vector.load %arg12[%333, %c0_197] : memref<32x128xf32, #tpu.memory_space<vmem>>, vector<1x128xf32>
    tpu.vector_store %arg12[%333, %c0_197], %332 {strides = array<i32>} : memref<32x128xf32, #tpu.memory_space<vmem>>, vector<1x128xf32>,
    %c46 = arith.constant 46 : index
    %335 = memref.load %arg0[%c46] : memref<64xi32, #tpu.memory_space<smem>>
    %336 = arith.index_cast %335 : i32 to index
    %c0_198 = arith.constant 0 : index
    %337 = vector.load %arg12[%336, %c0_198] : memref<32x128xf32, #tpu.memory_space<vmem>>, vector<1x128xf32>
    %c46_199 = arith.constant 46 : index
    %c0_200 = arith.constant 0 : index
    %338 = vector.load %arg11[%c46_199, %c0_200] : memref<64x128xf32, #tpu.memory_space<vmem>>, vector<1x128xf32>
    %339 = arith.addf %337, %338 : vector<1x128xf32>
    %340 = arith.index_cast %335 : i32 to index
    %c0_201 = arith.constant 0 : index
    %341 = vector.load %arg12[%340, %c0_201] : memref<32x128xf32, #tpu.memory_space<vmem>>, vector<1x128xf32>
    tpu.vector_store %arg12[%340, %c0_201], %339 {strides = array<i32>} : memref<32x128xf32, #tpu.memory_space<vmem>>, vector<1x128xf32>,
    %c47 = arith.constant 47 : index
    %342 = memref.load %arg0[%c47] : memref<64xi32, #tpu.memory_space<smem>>
    %343 = arith.index_cast %342 : i32 to index
    %c0_202 = arith.constant 0 : index
    %344 = vector.load %arg12[%343, %c0_202] : memref<32x128xf32, #tpu.memory_space<vmem>>, vector<1x128xf32>
    %c47_203 = arith.constant 47 : index
    %c0_204 = arith.constant 0 : index
    %345 = vector.load %arg11[%c47_203, %c0_204] : memref<64x128xf32, #tpu.memory_space<vmem>>, vector<1x128xf32>
    %346 = arith.addf %344, %345 : vector<1x128xf32>
    %347 = arith.index_cast %342 : i32 to index
    %c0_205 = arith.constant 0 : index
    %348 = vector.load %arg12[%347, %c0_205] : memref<32x128xf32, #tpu.memory_space<vmem>>, vector<1x128xf32>
    tpu.vector_store %arg12[%347, %c0_205], %346 {strides = array<i32>} : memref<32x128xf32, #tpu.memory_space<vmem>>, vector<1x128xf32>,
    %c48 = arith.constant 48 : index
    %349 = memref.load %arg0[%c48] : memref<64xi32, #tpu.memory_space<smem>>
    %350 = arith.index_cast %349 : i32 to index
    %c0_206 = arith.constant 0 : index
    %351 = vector.load %arg12[%350, %c0_206] : memref<32x128xf32, #tpu.memory_space<vmem>>, vector<1x128xf32>
    %c48_207 = arith.constant 48 : index
    %c0_208 = arith.constant 0 : index
    %352 = vector.load %arg11[%c48_207, %c0_208] : memref<64x128xf32, #tpu.memory_space<vmem>>, vector<1x128xf32>
    %353 = arith.addf %351, %352 : vector<1x128xf32>
    %354 = arith.index_cast %349 : i32 to index
    %c0_209 = arith.constant 0 : index
    %355 = vector.load %arg12[%354, %c0_209] : memref<32x128xf32, #tpu.memory_space<vmem>>, vector<1x128xf32>
    tpu.vector_store %arg12[%354, %c0_209], %353 {strides = array<i32>} : memref<32x128xf32, #tpu.memory_space<vmem>>, vector<1x128xf32>,
    %c49 = arith.constant 49 : index
    %356 = memref.load %arg0[%c49] : memref<64xi32, #tpu.memory_space<smem>>
    %357 = arith.index_cast %356 : i32 to index
    %c0_210 = arith.constant 0 : index
    %358 = vector.load %arg12[%357, %c0_210] : memref<32x128xf32, #tpu.memory_space<vmem>>, vector<1x128xf32>
    %c49_211 = arith.constant 49 : index
    %c0_212 = arith.constant 0 : index
    %359 = vector.load %arg11[%c49_211, %c0_212] : memref<64x128xf32, #tpu.memory_space<vmem>>, vector<1x128xf32>
    %360 = arith.addf %358, %359 : vector<1x128xf32>
    %361 = arith.index_cast %356 : i32 to index
    %c0_213 = arith.constant 0 : index
    %362 = vector.load %arg12[%361, %c0_213] : memref<32x128xf32, #tpu.memory_space<vmem>>, vector<1x128xf32>
    tpu.vector_store %arg12[%361, %c0_213], %360 {strides = array<i32>} : memref<32x128xf32, #tpu.memory_space<vmem>>, vector<1x128xf32>,
    %c50 = arith.constant 50 : index
    %363 = memref.load %arg0[%c50] : memref<64xi32, #tpu.memory_space<smem>>
    %364 = arith.index_cast %363 : i32 to index
    %c0_214 = arith.constant 0 : index
    %365 = vector.load %arg12[%364, %c0_214] : memref<32x128xf32, #tpu.memory_space<vmem>>, vector<1x128xf32>
    %c50_215 = arith.constant 50 : index
    %c0_216 = arith.constant 0 : index
    %366 = vector.load %arg11[%c50_215, %c0_216] : memref<64x128xf32, #tpu.memory_space<vmem>>, vector<1x128xf32>
    %367 = arith.addf %365, %366 : vector<1x128xf32>
    %368 = arith.index_cast %363 : i32 to index
    %c0_217 = arith.constant 0 : index
    %369 = vector.load %arg12[%368, %c0_217] : memref<32x128xf32, #tpu.memory_space<vmem>>, vector<1x128xf32>
    tpu.vector_store %arg12[%368, %c0_217], %367 {strides = array<i32>} : memref<32x128xf32, #tpu.memory_space<vmem>>, vector<1x128xf32>,
    %c51 = arith.constant 51 : index
    %370 = memref.load %arg0[%c51] : memref<64xi32, #tpu.memory_space<smem>>
    %371 = arith.index_cast %370 : i32 to index
    %c0_218 = arith.constant 0 : index
    %372 = vector.load %arg12[%371, %c0_218] : memref<32x128xf32, #tpu.memory_space<vmem>>, vector<1x128xf32>
    %c51_219 = arith.constant 51 : index
    %c0_220 = arith.constant 0 : index
    %373 = vector.load %arg11[%c51_219, %c0_220] : memref<64x128xf32, #tpu.memory_space<vmem>>, vector<1x128xf32>
    %374 = arith.addf %372, %373 : vector<1x128xf32>
    %375 = arith.index_cast %370 : i32 to index
    %c0_221 = arith.constant 0 : index
    %376 = vector.load %arg12[%375, %c0_221] : memref<32x128xf32, #tpu.memory_space<vmem>>, vector<1x128xf32>
    tpu.vector_store %arg12[%375, %c0_221], %374 {strides = array<i32>} : memref<32x128xf32, #tpu.memory_space<vmem>>, vector<1x128xf32>,
    %c52 = arith.constant 52 : index
    %377 = memref.load %arg0[%c52] : memref<64xi32, #tpu.memory_space<smem>>
    %378 = arith.index_cast %377 : i32 to index
    %c0_222 = arith.constant 0 : index
    %379 = vector.load %arg12[%378, %c0_222] : memref<32x128xf32, #tpu.memory_space<vmem>>, vector<1x128xf32>
    %c52_223 = arith.constant 52 : index
    %c0_224 = arith.constant 0 : index
    %380 = vector.load %arg11[%c52_223, %c0_224] : memref<64x128xf32, #tpu.memory_space<vmem>>, vector<1x128xf32>
    %381 = arith.addf %379, %380 : vector<1x128xf32>
    %382 = arith.index_cast %377 : i32 to index
    %c0_225 = arith.constant 0 : index
    %383 = vector.load %arg12[%382, %c0_225] : memref<32x128xf32, #tpu.memory_space<vmem>>, vector<1x128xf32>
    tpu.vector_store %arg12[%382, %c0_225], %381 {strides = array<i32>} : memref<32x128xf32, #tpu.memory_space<vmem>>, vector<1x128xf32>,
    %c53 = arith.constant 53 : index
    %384 = memref.load %arg0[%c53] : memref<64xi32, #tpu.memory_space<smem>>
    %385 = arith.index_cast %384 : i32 to index
    %c0_226 = arith.constant 0 : index
    %386 = vector.load %arg12[%385, %c0_226] : memref<32x128xf32, #tpu.memory_space<vmem>>, vector<1x128xf32>
    %c53_227 = arith.constant 53 : index
    %c0_228 = arith.constant 0 : index
    %387 = vector.load %arg11[%c53_227, %c0_228] : memref<64x128xf32, #tpu.memory_space<vmem>>, vector<1x128xf32>
    %388 = arith.addf %386, %387 : vector<1x128xf32>
    %389 = arith.index_cast %384 : i32 to index
    %c0_229 = arith.constant 0 : index
    %390 = vector.load %arg12[%389, %c0_229] : memref<32x128xf32, #tpu.memory_space<vmem>>, vector<1x128xf32>
    tpu.vector_store %arg12[%389, %c0_229], %388 {strides = array<i32>} : memref<32x128xf32, #tpu.memory_space<vmem>>, vector<1x128xf32>,
    %c54 = arith.constant 54 : index
    %391 = memref.load %arg0[%c54] : memref<64xi32, #tpu.memory_space<smem>>
    %392 = arith.index_cast %391 : i32 to index
    %c0_230 = arith.constant 0 : index
    %393 = vector.load %arg12[%392, %c0_230] : memref<32x128xf32, #tpu.memory_space<vmem>>, vector<1x128xf32>
    %c54_231 = arith.constant 54 : index
    %c0_232 = arith.constant 0 : index
    %394 = vector.load %arg11[%c54_231, %c0_232] : memref<64x128xf32, #tpu.memory_space<vmem>>, vector<1x128xf32>
    %395 = arith.addf %393, %394 : vector<1x128xf32>
    %396 = arith.index_cast %391 : i32 to index
    %c0_233 = arith.constant 0 : index
    %397 = vector.load %arg12[%396, %c0_233] : memref<32x128xf32, #tpu.memory_space<vmem>>, vector<1x128xf32>
    tpu.vector_store %arg12[%396, %c0_233], %395 {strides = array<i32>} : memref<32x128xf32, #tpu.memory_space<vmem>>, vector<1x128xf32>,
    %c55 = arith.constant 55 : index
    %398 = memref.load %arg0[%c55] : memref<64xi32, #tpu.memory_space<smem>>
    %399 = arith.index_cast %398 : i32 to index
    %c0_234 = arith.constant 0 : index
    %400 = vector.load %arg12[%399, %c0_234] : memref<32x128xf32, #tpu.memory_space<vmem>>, vector<1x128xf32>
    %c55_235 = arith.constant 55 : index
    %c0_236 = arith.constant 0 : index
    %401 = vector.load %arg11[%c55_235, %c0_236] : memref<64x128xf32, #tpu.memory_space<vmem>>, vector<1x128xf32>
    %402 = arith.addf %400, %401 : vector<1x128xf32>
    %403 = arith.index_cast %398 : i32 to index
    %c0_237 = arith.constant 0 : index
    %404 = vector.load %arg12[%403, %c0_237] : memref<32x128xf32, #tpu.memory_space<vmem>>, vector<1x128xf32>
    tpu.vector_store %arg12[%403, %c0_237], %402 {strides = array<i32>} : memref<32x128xf32, #tpu.memory_space<vmem>>, vector<1x128xf32>,
    %c56 = arith.constant 56 : index
    %405 = memref.load %arg0[%c56] : memref<64xi32, #tpu.memory_space<smem>>
    %406 = arith.index_cast %405 : i32 to index
    %c0_238 = arith.constant 0 : index
    %407 = vector.load %arg12[%406, %c0_238] : memref<32x128xf32, #tpu.memory_space<vmem>>, vector<1x128xf32>
    %c56_239 = arith.constant 56 : index
    %c0_240 = arith.constant 0 : index
    %408 = vector.load %arg11[%c56_239, %c0_240] : memref<64x128xf32, #tpu.memory_space<vmem>>, vector<1x128xf32>
    %409 = arith.addf %407, %408 : vector<1x128xf32>
    %410 = arith.index_cast %405 : i32 to index
    %c0_241 = arith.constant 0 : index
    %411 = vector.load %arg12[%410, %c0_241] : memref<32x128xf32, #tpu.memory_space<vmem>>, vector<1x128xf32>
    tpu.vector_store %arg12[%410, %c0_241], %409 {strides = array<i32>} : memref<32x128xf32, #tpu.memory_space<vmem>>, vector<1x128xf32>,
    %c57 = arith.constant 57 : index
    %412 = memref.load %arg0[%c57] : memref<64xi32, #tpu.memory_space<smem>>
    %413 = arith.index_cast %412 : i32 to index
    %c0_242 = arith.constant 0 : index
    %414 = vector.load %arg12[%413, %c0_242] : memref<32x128xf32, #tpu.memory_space<vmem>>, vector<1x128xf32>
    %c57_243 = arith.constant 57 : index
    %c0_244 = arith.constant 0 : index
    %415 = vector.load %arg11[%c57_243, %c0_244] : memref<64x128xf32, #tpu.memory_space<vmem>>, vector<1x128xf32>
    %416 = arith.addf %414, %415 : vector<1x128xf32>
    %417 = arith.index_cast %412 : i32 to index
    %c0_245 = arith.constant 0 : index
    %418 = vector.load %arg12[%417, %c0_245] : memref<32x128xf32, #tpu.memory_space<vmem>>, vector<1x128xf32>
    tpu.vector_store %arg12[%417, %c0_245], %416 {strides = array<i32>} : memref<32x128xf32, #tpu.memory_space<vmem>>, vector<1x128xf32>,
    %c58 = arith.constant 58 : index
    %419 = memref.load %arg0[%c58] : memref<64xi32, #tpu.memory_space<smem>>
    %420 = arith.index_cast %419 : i32 to index
    %c0_246 = arith.constant 0 : index
    %421 = vector.load %arg12[%420, %c0_246] : memref<32x128xf32, #tpu.memory_space<vmem>>, vector<1x128xf32>
    %c58_247 = arith.constant 58 : index
    %c0_248 = arith.constant 0 : index
    %422 = vector.load %arg11[%c58_247, %c0_248] : memref<64x128xf32, #tpu.memory_space<vmem>>, vector<1x128xf32>
    %423 = arith.addf %421, %422 : vector<1x128xf32>
    %424 = arith.index_cast %419 : i32 to index
    %c0_249 = arith.constant 0 : index
    %425 = vector.load %arg12[%424, %c0_249] : memref<32x128xf32, #tpu.memory_space<vmem>>, vector<1x128xf32>
    tpu.vector_store %arg12[%424, %c0_249], %423 {strides = array<i32>} : memref<32x128xf32, #tpu.memory_space<vmem>>, vector<1x128xf32>,
    %c59 = arith.constant 59 : index
    %426 = memref.load %arg0[%c59] : memref<64xi32, #tpu.memory_space<smem>>
    %427 = arith.index_cast %426 : i32 to index
    %c0_250 = arith.constant 0 : index
    %428 = vector.load %arg12[%427, %c0_250] : memref<32x128xf32, #tpu.memory_space<vmem>>, vector<1x128xf32>
    %c59_251 = arith.constant 59 : index
    %c0_252 = arith.constant 0 : index
    %429 = vector.load %arg11[%c59_251, %c0_252] : memref<64x128xf32, #tpu.memory_space<vmem>>, vector<1x128xf32>
    %430 = arith.addf %428, %429 : vector<1x128xf32>
    %431 = arith.index_cast %426 : i32 to index
    %c0_253 = arith.constant 0 : index
    %432 = vector.load %arg12[%431, %c0_253] : memref<32x128xf32, #tpu.memory_space<vmem>>, vector<1x128xf32>
    tpu.vector_store %arg12[%431, %c0_253], %430 {strides = array<i32>} : memref<32x128xf32, #tpu.memory_space<vmem>>, vector<1x128xf32>,
    %c60 = arith.constant 60 : index
    %433 = memref.load %arg0[%c60] : memref<64xi32, #tpu.memory_space<smem>>
    %434 = arith.index_cast %433 : i32 to index
    %c0_254 = arith.constant 0 : index
    %435 = vector.load %arg12[%434, %c0_254] : memref<32x128xf32, #tpu.memory_space<vmem>>, vector<1x128xf32>
    %c60_255 = arith.constant 60 : index
    %c0_256 = arith.constant 0 : index
    %436 = vector.load %arg11[%c60_255, %c0_256] : memref<64x128xf32, #tpu.memory_space<vmem>>, vector<1x128xf32>
    %437 = arith.addf %435, %436 : vector<1x128xf32>
    %438 = arith.index_cast %433 : i32 to index
    %c0_257 = arith.constant 0 : index
    %439 = vector.load %arg12[%438, %c0_257] : memref<32x128xf32, #tpu.memory_space<vmem>>, vector<1x128xf32>
    tpu.vector_store %arg12[%438, %c0_257], %437 {strides = array<i32>} : memref<32x128xf32, #tpu.memory_space<vmem>>, vector<1x128xf32>,
    %c61 = arith.constant 61 : index
    %440 = memref.load %arg0[%c61] : memref<64xi32, #tpu.memory_space<smem>>
    %441 = arith.index_cast %440 : i32 to index
    %c0_258 = arith.constant 0 : index
    %442 = vector.load %arg12[%441, %c0_258] : memref<32x128xf32, #tpu.memory_space<vmem>>, vector<1x128xf32>
    %c61_259 = arith.constant 61 : index
    %c0_260 = arith.constant 0 : index
    %443 = vector.load %arg11[%c61_259, %c0_260] : memref<64x128xf32, #tpu.memory_space<vmem>>, vector<1x128xf32>
    %444 = arith.addf %442, %443 : vector<1x128xf32>
    %445 = arith.index_cast %440 : i32 to index
    %c0_261 = arith.constant 0 : index
    %446 = vector.load %arg12[%445, %c0_261] : memref<32x128xf32, #tpu.memory_space<vmem>>, vector<1x128xf32>
    tpu.vector_store %arg12[%445, %c0_261], %444 {strides = array<i32>} : memref<32x128xf32, #tpu.memory_space<vmem>>, vector<1x128xf32>,
    %c62 = arith.constant 62 : index
    %447 = memref.load %arg0[%c62] : memref<64xi32, #tpu.memory_space<smem>>
    %448 = arith.index_cast %447 : i32 to index
    %c0_262 = arith.constant 0 : index
    %449 = vector.load %arg12[%448, %c0_262] : memref<32x128xf32, #tpu.memory_space<vmem>>, vector<1x128xf32>
    %c62_263 = arith.constant 62 : index
    %c0_264 = arith.constant 0 : index
    %450 = vector.load %arg11[%c62_263, %c0_264] : memref<64x128xf32, #tpu.memory_space<vmem>>, vector<1x128xf32>
    %451 = arith.addf %449, %450 : vector<1x128xf32>
    %452 = arith.index_cast %447 : i32 to index
    %c0_265 = arith.constant 0 : index
    %453 = vector.load %arg12[%452, %c0_265] : memref<32x128xf32, #tpu.memory_space<vmem>>, vector<1x128xf32>
    tpu.vector_store %arg12[%452, %c0_265], %451 {strides = array<i32>} : memref<32x128xf32, #tpu.memory_space<vmem>>, vector<1x128xf32>,
    %c63 = arith.constant 63 : index
    %454 = memref.load %arg0[%c63] : memref<64xi32, #tpu.memory_space<smem>>
    %455 = arith.index_cast %454 : i32 to index
    %c0_266 = arith.constant 0 : index
    %456 = vector.load %arg12[%455, %c0_266] : memref<32x128xf32, #tpu.memory_space<vmem>>, vector<1x128xf32>
    %c63_267 = arith.constant 63 : index
    %c0_268 = arith.constant 0 : index
    %457 = vector.load %arg11[%c63_267, %c0_268] : memref<64x128xf32, #tpu.memory_space<vmem>>, vector<1x128xf32>
    %458 = arith.addf %456, %457 : vector<1x128xf32>
    %459 = arith.index_cast %454 : i32 to index
    %c0_269 = arith.constant 0 : index
    %460 = vector.load %arg12[%459, %c0_269] : memref<32x128xf32, #tpu.memory_space<vmem>>, vector<1x128xf32>
    tpu.vector_store %arg12[%459, %c0_269], %458 {strides = array<i32>} : memref<32x128xf32, #tpu.memory_space<vmem>>, vector<1x128xf32>,
    %c0_270 = arith.constant 0 : index
    %c0_271 = arith.constant 0 : index
    %461 = vector.load %arg1[%c0_270, %c0_271] : memref<32x128xbf16, #tpu.memory_space<vmem>>, vector<32x128xbf16>
    %c0_272 = arith.constant 0 : index
    %c0_273 = arith.constant 0 : index
    %462 = vector.load %arg3[%c0_272, %c0_273] : memref<128x128xbf16, #tpu.memory_space<vmem>>, vector<128x128xbf16>
    %cst_274 = arith.constant dense<0.000000e+00> : vector<32x128xf32>
    %463 = tpu.matmul %461, %462, %cst_274 {dimension_numbers = #tpu.dot_dimension_numbers<[1], [0], [0], [1], [0, 0, 1, 1], [], []>} : vector<32x128xbf16>, vector<128x128xbf16>, vector<32x128xf32> -> vector<32x128xf32>
    %c0_275 = arith.constant 0 : index
    %c0_276 = arith.constant 0 : index
    %464 = vector.load %arg12[%c0_275, %c0_276] : memref<32x128xf32, #tpu.memory_space<vmem>>, vector<32x128xf32>
    %c0_277 = arith.constant 0 : index
    %c0_278 = arith.constant 0 : index
    %465 = vector.load %arg6[%c0_277, %c0_278] : memref<1x128xf32, #tpu.memory_space<vmem>>, vector<1x128xf32>
    %466 = vector.broadcast %465 : vector<1x128xf32> to vector<32x128xf32>
    %467 = arith.addf %463, %466 : vector<32x128xf32>
    %cst_279 = arith.constant 0.000000e+00 : f32
    %468 = vector.broadcast %cst_279 : f32 to vector<32x128xf32>
    %469 = arith.maximumf %467, %468 : vector<32x128xf32>
    %c0_280 = arith.constant 0 : index
    %c0_281 = arith.constant 0 : index
    %470 = vector.load %arg7[%c0_280, %c0_281] : memref<32x1xf32, #tpu.memory_space<vmem>>, vector<32x1xf32>
    %471 = vector.broadcast %470 : vector<32x1xf32> to vector<32x128xf32>
    %472 = arith.mulf %469, %471 : vector<32x128xf32>
    %473 = arith.addf %464, %472 : vector<32x128xf32>
    %cst_282 = arith.constant dense<0.000000e+00> : vector<128xf32>
    %474 = vector.multi_reduction <add>, %473, %cst_282 [0] : vector<32x128xf32> to vector<128xf32>
    %475 = vector.shape_cast %474 : vector<128xf32> to vector<1x128xf32>
    %cst_283 = arith.constant 3.200000e+01 : f32
    %476 = vector.broadcast %cst_283 : f32 to vector<1x128xf32>
    %477 = arith.divf %475, %476 : vector<1x128xf32>
    %478 = vector.broadcast %477 : vector<1x128xf32> to vector<32x128xf32>
    %479 = arith.subf %473, %478 : vector<32x128xf32>
    %480 = arith.mulf %479, %479 : vector<32x128xf32>
    %cst_284 = arith.constant dense<0.000000e+00> : vector<128xf32>
    %481 = vector.multi_reduction <add>, %480, %cst_284 [0] : vector<32x128xf32> to vector<128xf32>
    %482 = vector.shape_cast %481 : vector<128xf32> to vector<1x128xf32>
    %cst_285 = arith.constant 3.200000e+01 : f32
    %483 = vector.broadcast %cst_285 : f32 to vector<1x128xf32>
    %484 = arith.divf %482, %483 : vector<1x128xf32>
    %485 = vector.broadcast %477 : vector<1x128xf32> to vector<32x128xf32>
    %486 = arith.subf %473, %485 : vector<32x128xf32>
    %cst_286 = arith.constant 9.99999974E-6 : f32
    %487 = vector.broadcast %cst_286 : f32 to vector<1x128xf32>
    %488 = arith.addf %484, %487 : vector<1x128xf32>
    %489 = math.rsqrt %488 : vector<1x128xf32>
    %490 = vector.broadcast %489 : vector<1x128xf32> to vector<32x128xf32>
    %491 = arith.mulf %486, %490 : vector<32x128xf32>
    %c0_287 = arith.constant 0 : index
    %c0_288 = arith.constant 0 : index
    %492 = vector.load %arg8[%c0_287, %c0_288] : memref<1x128xf32, #tpu.memory_space<vmem>>, vector<1x128xf32>
    %493 = vector.broadcast %492 : vector<1x128xf32> to vector<32x128xf32>
    %494 = arith.mulf %491, %493 : vector<32x128xf32>
    %c0_289 = arith.constant 0 : index
    %c0_290 = arith.constant 0 : index
    %495 = vector.load %arg9[%c0_289, %c0_290] : memref<1x128xf32, #tpu.memory_space<vmem>>, vector<1x128xf32>
    %496 = vector.broadcast %495 : vector<1x128xf32> to vector<32x128xf32>
    %497 = arith.addf %494, %496 : vector<32x128xf32>
    %cst_291 = arith.constant 0.000000e+00 : f32
    %498 = vector.broadcast %cst_291 : f32 to vector<32x128xf32>
    %499 = arith.maximumf %497, %498 : vector<32x128xf32>
    %500 = arith.truncf %499 : vector<32x128xf32> to vector<32x128xbf16>
    %c0_292 = arith.constant 0 : index
    %c0_293 = arith.constant 0 : index
    %501 = vector.load %arg10[%c0_292, %c0_293] : memref<32x128xbf16, #tpu.memory_space<vmem>>, vector<32x128xbf16>
    tpu.vector_store %arg10[%c0_292, %c0_293], %500 {strides = array<i32>} : memref<32x128xbf16, #tpu.memory_space<vmem>>, vector<32x128xbf16>,
    return
  }
}

</mosaic_0001>

<llo_original>
// kernel: gcn_forward.7
$region0: #{gcn_forward.7}
  #allocation0 [shape = 'u32[]', space=smem, size = 0x4, offset = 0x4, fixed_abs, tag = 'smem constant byte address 0x4 - core index']
  #allocation1 [shape = 'u32[144,128]{1,0:T(1,128)}', space=vmem, size = 0x12000, scoped, tag = 'internal scratch']
  %s0 = inlined_call_operand.vmem [shape: bf16[8,32], index: 0, kind: input, shape index: {}]
  %s1 = inlined_call_operand.vmem [shape: bf16[32,128], index: 1, kind: input, shape index: {}]
  %s2 = inlined_call_operand.vmem [shape: bf16[128,128], index: 2, kind: input, shape index: {}]
  %s3 = inlined_call_operand.vmem [shape: f32[8,128], index: 3, kind: output, shape index: {}]
  %s4 = sld [smem:[#allocation0]]
  $region22: #{gcn_forward.7} parent=0
    _
  %s6 = ssub.s32 1, %s4
  %s7 = scalar_select 0, %s6, %s4
  // Predicated region
  $region2: #{gcn_forward.7} parent=0 // pred_check
    _
  $region3: #{gcn_forward.7} parent=0 // pred_check_branch
    %9 = sbr.rel (0) target = $region5
  $region4: #{gcn_forward.7} parent=0 // pred_region
    _
  $region5: #{gcn_forward.7} parent=0 // pred_fallthru
    _
  // Predicated region
  $region6: #{gcn_forward.7} parent=0 // pred_check
    _
  $region7: #{gcn_forward.7} parent=0 // pred_check_branch
    %11 = sbr.rel (0) target = $region9
  $region8: #{gcn_forward.7} parent=0 // pred_region
    _
  $region9: #{gcn_forward.7} parent=0 // pred_fallthru
    _
  // Predicated region
  $region10: #{gcn_forward.7} parent=0 // pred_check
    _
  $region11: #{gcn_forward.7} parent=0 // pred_check_branch
    %13 = sbr.rel (0) target = $region13
  $region12: #{gcn_forward.7} parent=0 // pred_region
    _
  $region13: #{gcn_forward.7} parent=0 // pred_fallthru
    _
  %v15 = vld [vmem:[%s0] sm:$0xf]
  %v16 = vld [vmem:[%s1] sm:$0xf]
  %v17 = vld [vmem:[%s1 + $0x4] sm:$0xf]
  %v18 = vld [vmem:[%s1 + $0x8] sm:$0xf]
  %v19 = vld [vmem:[%s1 + $0xc] sm:$0xf]
  %v24 = vunpack.c.l.b16 %v16
  %v25 = vunpack.c.l.b16 %v17
  %v26 = vunpack.c.l.b16 %v18
  %v27 = vunpack.c.l.b16 %v19
  %v28 = vpack.c.b16 %v25, %v24
  %v29 = vpack.c.b16 %v27, %v26
  %vm32 = vcmask 261120
  %v34 = vsel %vm32, %v15, 0
  %36 = vmatprep.subr.bf16.mxu0 0
  %37 = vmatpush1.bf16.msra.mxu0 0
  %38 = vmatprep.subr.bf16.mxu0 0
  %39 = vmatpush1.bf16.msra.mxu0 0
  %40 = vmatprep.subr.bf16.mxu0 0
  %41 = vmatpush1.bf16.msra.mxu0 0
  %42 = vmatprep.subr.bf16.mxu0 0
  %43 = vmatpush1.bf16.msra.mxu0 0
  %44 = vmatprep.subr.bf16.mxu0 0
  %45 = vmatpush1.bf16.msra.mxu0 0
  %46 = vmatprep.subr.bf16.mxu0 0
  %47 = vmatpush1.bf16.msra.mxu0 0
  %48 = vmatprep.subr.bf16.mxu0 0
  %49 = vmatpush1.bf16.msra.mxu0 %v29
  %50 = vmatprep.subr.bf16.mxu0 0
  %51 = vmatpush1.bf16.msra.mxu0 %v28
  %52 = vmatprep.subr.bf16.mxu0 0
  %53 = vmatpush2.bf16.msra.mxu0 0
  %54 = vmatprep.subr.bf16.mxu0 0
  %55 = vmatpush2.bf16.msra.mxu0 0
  %56 = vmatprep.subr.bf16.mxu0 0
  %57 = vmatpush2.bf16.msra.mxu0 0
  %58 = vmatprep.subr.bf16.mxu0 0
  %59 = vmatpush2.bf16.msra.mxu0 0
  %60 = vmatprep.subr.bf16.mxu0 0
  %61 = vmatpush2.bf16.msra.mxu0 0
  %62 = vmatprep.subr.bf16.mxu0 0
  %63 = vmatpush2.bf16.msra.mxu0 0
  %64 = vmatprep.subr.bf16.mxu0 0
  %65 = vmatpush2.bf16.msra.mxu0 0
  %66 = vmatprep.subr.bf16.mxu0 0
  %67 = vmatpush2.bf16.msra.mxu0 0
  %68 = vmatprep.mubr.bf16.mxu0 0
  %69 = vmatmul.mubr.bf16.gmra.mxu0 %v34
  %v70 = vpop.f32.mrf.mxu0
  %v71 = vadd.f32 0.0, %v70
  %v72 = vpop.f32.mrf.mxu0
  %v73 = vpop.f32.mrf.mxu0
  %v74 = vpop.f32.mrf.mxu0
  %75 = vdwg.mxu0
  %v76 = vpack.c.bf16 %v71, %v71
  %v77 = vld [vmem:[%s2] sm:$0xf]
  %v78 = vld [vmem:[%s2 + $0x4] sm:$0xf]
  %v79 = vld [vmem:[%s2 + $0x8] sm:$0xf]
  %v80 = vld [vmem:[%s2 + $0xc] sm:$0xf]
  %v81 = vld [vmem:[%s2 + $0x10] sm:$0xf]
  %v82 = vld [vmem:[%s2 + $0x14] sm:$0xf]
  %v83 = vld [vmem:[%s2 + $0x18] sm:$0xf]
  %v84 = vld [vmem:[%s2 + $0x1c] sm:$0xf]
  %v85 = vld [vmem:[%s2 + $0x20] sm:$0xf]
  %v86 = vld [vmem:[%s2 + $0x24] sm:$0xf]
  %v87 = vld [vmem:[%s2 + $0x28] sm:$0xf]
  %v88 = vld [vmem:[%s2 + $0x2c] sm:$0xf]
  %v89 = vld [vmem:[%s2 + $0x30] sm:$0xf]
  %v90 = vld [vmem:[%s2 + $0x34] sm:$0xf]
  %v91 = vld [vmem:[%s2 + $0x38] sm:$0xf]
  %v92 = vld [vmem:[%s2 + $0x3c] sm:$0xf]
  %v109 = vunpack.c.l.b16 %v77
  %v110 = vunpack.c.l.b16 %v78
  %v111 = vunpack.c.l.b16 %v79
  %v112 = vunpack.c.l.b16 %v80
  %v113 = vunpack.c.l.b16 %v81
  %v114 = vunpack.c.l.b16 %v82
  %v115 = vunpack.c.l.b16 %v83
  %v116 = vunpack.c.l.b16 %v84
  %v117 = vunpack.c.l.b16 %v85
  %v118 = vunpack.c.l.b16 %v86
  %v119 = vunpack.c.l.b16 %v87
  %v120 = vunpack.c.l.b16 %v88
  %v121 = vunpack.c.l.b16 %v89
  %v122 = vunpack.c.l.b16 %v90
  %v123 = vunpack.c.l.b16 %v91
  %v124 = vunpack.c.l.b16 %v92
  %v125 = vpack.c.b16 %v110, %v109
  %v126 = vpack.c.b16 %v112, %v111
  %v127 = vpack.c.b16 %v114, %v113
  %v128 = vpack.c.b16 %v116, %v115
  %v129 = vpack.c.b16 %v118, %v117
  %v130 = vpack.c.b16 %v120, %v119
  %v131 = vpack.c.b16 %v122, %v121
  %v132 = vpack.c.b16 %v124, %v123
  %141 = vmatprep.subr.bf16.mxu0 0
  %142 = vmatpush1.bf16.msra.mxu0 %v132
  %143 = vmatprep.subr.bf16.mxu0 0
  %144 = vmatpush1.bf16.msra.mxu0 %v131
  %145 = vmatprep.subr.bf16.mxu0 0
  %146 = vmatpush1.bf16.msra.mxu0 %v130
  %147 = vmatprep.subr.bf16.mxu0 0
  %148 = vmatpush1.bf16.msra.mxu0 %v129
  %149 = vmatprep.subr.bf16.mxu0 0
  %150 = vmatpush1.bf16.msra.mxu0 %v128
  %151 = vmatprep.subr.bf16.mxu0 0
  %152 = vmatpush1.bf16.msra.mxu0 %v127
  %153 = vmatprep.subr.bf16.mxu0 0
  %154 = vmatpush1.bf16.msra.mxu0 %v126
  %155 = vmatprep.subr.bf16.mxu0 0
  %156 = vmatpush1.bf16.msra.mxu0 %v125
  %157 = vmatprep.subr.bf16.mxu0 0
  %158 = vmatpush2.bf16.msra.mxu0 0
  %159 = vmatprep.subr.bf16.mxu0 0
  %160 = vmatpush2.bf16.msra.mxu0 0
  %161 = vmatprep.subr.bf16.mxu0 0
  %162 = vmatpush2.bf16.msra.mxu0 0
  %163 = vmatprep.subr.bf16.mxu0 0
  %164 = vmatpush2.bf16.msra.mxu0 0
  %165 = vmatprep.subr.bf16.mxu0 0
  %166 = vmatpush2.bf16.msra.mxu0 0
  %167 = vmatprep.subr.bf16.mxu0 0
  %168 = vmatpush2.bf16.msra.mxu0 0
  %169 = vmatprep.subr.bf16.mxu0 0
  %170 = vmatpush2.bf16.msra.mxu0 0
  %171 = vmatprep.subr.bf16.mxu0 0
  %172 = vmatpush2.bf16.msra.mxu0 0
  %173 = vmatprep.mubr.bf16.mxu0 0
  %174 = vmatmul.mubr.bf16.gmra.mxu0 %v76
  %v175 = vpop.f32.mrf.mxu0
  %v176 = vadd.f32 0.0, %v175
  %v177 = vpop.f32.mrf.mxu0
  %v178 = vpop.f32.mrf.mxu0
  %v179 = vpop.f32.mrf.mxu0
  %180 = vdwg.mxu0
  %181 = vst [vmem:[%s3] sm:$0xff] %v176
  // Predicated region
  $region14: #{gcn_forward.7} parent=0 // pred_check
    _
  $region15: #{gcn_forward.7} parent=0 // pred_check_branch
    %183 = sbr.rel (0) target = $region17
  $region16: #{gcn_forward.7} parent=0 // pred_region
    _
  $region17: #{gcn_forward.7} parent=0 // pred_fallthru
    _
  // Predicated region
  $region18: #{gcn_forward.7} parent=0 // pred_check
    _
  $region19: #{gcn_forward.7} parent=0 // pred_check_branch
    %185 = sbr.rel (0) target = $region21
  $region20: #{gcn_forward.7} parent=0 // pred_region
    _
  $region21: #{gcn_forward.7} parent=0 // pred_fallthru
    _

// kernel: gcn_forward.6
$region0: #{gcn_forward.6}
  #allocation0 [shape = 'u32[]', space=smem, size = 0x4, offset = 0x4, fixed_abs, tag = 'smem constant byte address 0x4 - core index']
  #allocation1 [shape = 'u32[144,128]{1,0:T(1,128)}', space=vmem, size = 0x12000, scoped, tag = 'internal scratch']
  #allocation2 [shape = 'f32[64,128]{1,0:T(8,128)}', space=vmem, size = 0x8000, scoped, tag = 'scratch operand']
  #allocation3 [shape = 'f32[32,128]{1,0:T(8,128)}', space=vmem, size = 0x4000, scoped, tag = 'scratch operand']
  %s0 = inlined_call_operand.vmem [shape: s32[64], index: 0, kind: input, shape index: {}]
  %s1 = inlined_call_operand.vmem [shape: bf16[32,128], index: 1, kind: input, shape index: {}]
  %s2 = inlined_call_operand.vmem [shape: bf16[64,128], index: 2, kind: input, shape index: {}]
  %s3 = inlined_call_operand.vmem [shape: bf16[128,128], index: 3, kind: input, shape index: {}]
  %s4 = inlined_call_operand.vmem [shape: f32[64,128], index: 4, kind: input, shape index: {}]
  %s5 = inlined_call_operand.vmem [shape: f32[64,1], index: 5, kind: input, shape index: {}]
  %s6 = inlined_call_operand.vmem [shape: f32[1,128], index: 6, kind: input, shape index: {}]
  %s7 = inlined_call_operand.vmem [shape: f32[32,1], index: 7, kind: input, shape index: {}]
  %s8 = inlined_call_operand.vmem [shape: f32[1,128], index: 8, kind: input, shape index: {}]
  %s9 = inlined_call_operand.vmem [shape: f32[1,128], index: 9, kind: input, shape index: {}]
  %s10 = inlined_call_operand.vmem [shape: bf16[32,128], index: 10, kind: output, shape index: {}]
  %s11 = sld [smem:[#allocation0]]
  $region54: #{gcn_forward.6} parent=0
    _
  %s13 = ssub.s32 1, %s11
  %s14 = scalar_select 0, %s13, %s11
  $region1: #{gcn_forward.6} parent=0
    #allocation4 [shape = 'u8[512]{0}', space=smem, size = 0x200, scoped, tag = 'input window, operand 0, single buffered']
    #allocation5 [shape = 's32[1]{0}', space=sflag, size = 0x4, scoped, tag = 'scoped memory for gcn_forward.6']
    %15 = vsyncpa [#allocation5], 0
    // Predicated region
    $region2: #{gcn_forward.6} parent=1 // pred_check
      _
    $region3: #{gcn_forward.6} parent=1 // pred_check_branch
      %17 = sbr.rel (0) target = $region5
    $region4: #{gcn_forward.6} parent=1 // pred_region
      %s19 = ssub.s32 16, 16
      %20 = vsyncadd [#allocation5], %s19
      %s22 = sshll.u32 %s0, 4
      %s23 = int_to_ptr.vmem [resolvable:$true] %s22
      %25 = dma.vmem_to_smem %s23, 16, [#allocation4], [#allocation5]
    $region5: #{gcn_forward.6} parent=1 // pred_fallthru
      _
    // Predicated region
    $region6: #{gcn_forward.6} parent=1 // pred_check
      _
    $region7: #{gcn_forward.6} parent=1 // pred_check_branch
      %27 = sbr.rel (0) target = $region9
    $region8: #{gcn_forward.6} parent=1 // pred_region
      _
    $region9: #{gcn_forward.6} parent=1 // pred_fallthru
      _
    // Predicated region
    $region10: #{gcn_forward.6} parent=1 // pred_check
      _
    $region11: #{gcn_forward.6} parent=1 // pred_check_branch
      %29 = sbr.rel (0) target = $region13
    $region12: #{gcn_forward.6} parent=1 // pred_region
      _
    $region13: #{gcn_forward.6} parent=1 // pred_fallthru
      _
    // Predicated region
    $region14: #{gcn_forward.6} parent=1 // pred_check
      _
    $region15: #{gcn_forward.6} parent=1 // pred_check_branch
      %31 = sbr.rel (0) target = $region17
    $region16: #{gcn_forward.6} parent=1 // pred_region
      _
    $region17: #{gcn_forward.6} parent=1 // pred_fallthru
      _
    // Predicated region
    $region18: #{gcn_forward.6} parent=1 // pred_check
      _
    $region19: #{gcn_forward.6} parent=1 // pred_check_branch
      %33 = sbr.rel (0) target = $region21
    $region20: #{gcn_forward.6} parent=1 // pred_region
      _
    $region21: #{gcn_forward.6} parent=1 // pred_fallthru
      _
    // Predicated region
    $region22: #{gcn_forward.6} parent=1 // pred_check
      _
    $region23: #{gcn_forward.6} parent=1 // pred_check_branch
      %35 = sbr.rel (0) target = $region25
    $region24: #{gcn_forward.6} parent=1 // pred_region
      _
    $region25: #{gcn_forward.6} parent=1 // pred_fallthru
      _
    // Predicated region
    $region26: #{gcn_forward.6} parent=1 // pred_check
      _
    $region27: #{gcn_forward.6} parent=1 // pred_check_branch
      %37 = sbr.rel (0) target = $region29
    $region28: #{gcn_forward.6} parent=1 // pred_region
      _
    $region29: #{gcn_forward.6} parent=1 // pred_fallthru
      _
    // Predicated region
    $region30: #{gcn_forward.6} parent=1 // pred_check
      _
    $region31: #{gcn_forward.6} parent=1 // pred_check_branch
      %39 = sbr.rel (0) target = $region33
    $region32: #{gcn_forward.6} parent=1 // pred_region
      _
    $region33: #{gcn_forward.6} parent=1 // pred_fallthru
      _
    // Predicated region
    $region34: #{gcn_forward.6} parent=1 // pred_check
      _
    $region35: #{gcn_forward.6} parent=1 // pred_check_branch
      %41 = sbr.rel (0) target = $region37
    $region36: #{gcn_forward.6} parent=1 // pred_region
      _
    $region37: #{gcn_forward.6} parent=1 // pred_fallthru
      _
    // Predicated region
    $region38: #{gcn_forward.6} parent=1 // pred_check
      _
    $region39: #{gcn_forward.6} parent=1 // pred_check_branch
      %43 = sbr.rel (0) target = $region41
    $region40: #{gcn_forward.6} parent=1 // pred_region
      _
    $region41: #{gcn_forward.6} parent=1 // pred_fallthru
      _
    // Predicated region
    $region42: #{gcn_forward.6} parent=1 // pred_check
      _
    $region43: #{gcn_forward.6} parent=1 // pred_check_branch
      %45 = sbr.rel (0) target = $region45
    $region44: #{gcn_forward.6} parent=1 // pred_region
      %46 = dma.done [#allocation5], 16
    $region45: #{gcn_forward.6} parent=1 // pred_fallthru
      _
    %47 = sfence
    %v49 = vld [vmem:[%s2] sm:$0xf]
    %v50 = vld [vmem:[%s2 + $0x4] sm:$0xf]
    %v51 = vld [vmem:[%s2 + $0x8] sm:$0xf]
    %v52 = vld [vmem:[%s2 + $0xc] sm:$0xf]
    %v53 = vld [vmem:[%s2 + $0x10] sm:$0xf]
    %v54 = vld [vmem:[%s2 + $0x14] sm:$0xf]
    %v55 = vld [vmem:[%s2 + $0x18] sm:$0xf]
    %v56 = vld [vmem:[%s2 + $0x1c] sm:$0xf]
    %v57 = vld [vmem:[%s3] sm:$0xf]
    %v58 = vld [vmem:[%s3 + $0x4] sm:$0xf]
    %v59 = vld [vmem:[%s3 + $0x8] sm:$0xf]
    %v60 = vld [vmem:[%s3 + $0xc] sm:$0xf]
    %v61 = vld [vmem:[%s3 + $0x10] sm:$0xf]
    %v62 = vld [vmem:[%s3 + $0x14] sm:$0xf]
    %v63 = vld [vmem:[%s3 + $0x18] sm:$0xf]
    %v64 = vld [vmem:[%s3 + $0x1c] sm:$0xf]
    %v65 = vld [vmem:[%s3 + $0x20] sm:$0xf]
    %v66 = vld [vmem:[%s3 + $0x24] sm:$0xf]
    %v67 = vld [vmem:[%s3 + $0x28] sm:$0xf]
    %v68 = vld [vmem:[%s3 + $0x2c] sm:$0xf]
    %v69 = vld [vmem:[%s3 + $0x30] sm:$0xf]
    %v70 = vld [vmem:[%s3 + $0x34] sm:$0xf]
    %v71 = vld [vmem:[%s3 + $0x38] sm:$0xf]
    %v72 = vld [vmem:[%s3 + $0x3c] sm:$0xf]
    %v73 = vld [vmem:[%s5] sm:$0xff]
    %v74 = vld [vmem:[%s5 + $0x8] sm:$0xff]
    %v75 = vld [vmem:[%s5 + $0x10] sm:$0xff]
    %v76 = vld [vmem:[%s5 + $0x18] sm:$0xff]
    %v77 = vld [vmem:[%s5 + $0x20] sm:$0xff]
    %v78 = vld [vmem:[%s5 + $0x28] sm:$0xff]
    %v79 = vld [vmem:[%s5 + $0x30] sm:$0xff]
    %v80 = vld [vmem:[%s5 + $0x38] sm:$0xff]
    %v81 = vld [vmem:[%s4] sm:$0xff]
    %v82 = vld [vmem:[%s4 + $0x8] sm:$0xff]
    %v83 = vld [vmem:[%s4 + $0x10] sm:$0xff]
    %v84 = vld [vmem:[%s4 + $0x18] sm:$0xff]
    %v85 = vld [vmem:[%s4 + $0x20] sm:$0xff]
    %v86 = vld [vmem:[%s4 + $0x28] sm:$0xff]
    %v87 = vld [vmem:[%s4 + $0x30] sm:$0xff]
    %v88 = vld [vmem:[%s4 + $0x38] sm:$0xff]
    %v97 = vunpack.c.l.b16 %v49
    %v98 = vunpack.c.l.b16 %v50
    %v99 = vunpack.c.l.b16 %v51
    %v100 = vunpack.c.l.b16 %v52
    %v101 = vunpack.c.l.b16 %v53
    %v102 = vunpack.c.l.b16 %v54
    %v103 = vunpack.c.l.b16 %v55
    %v104 = vunpack.c.l.b16 %v56
    %v105 = vpack.c.b16 %v98, %v97
    %v106 = vpack.c.b16 %v100, %v99
    %v107 = vpack.c.b16 %v102, %v101
    %v108 = vpack.c.b16 %v104, %v103
    %v129 = vunpack.c.l.b16 %v57
    %v130 = vunpack.c.l.b16 %v58
    %v131 = vunpack.c.l.b16 %v59
    %v132 = vunpack.c.l.b16 %v60
    %v133 = vunpack.c.l.b16 %v61
    %v134 = vunpack.c.l.b16 %v62
    %v135 = vunpack.c.l.b16 %v63
    %v136 = vunpack.c.l.b16 %v64
    %v137 = vunpack.c.l.b16 %v65
    %v138 = vunpack.c.l.b16 %v66
    %v139 = vunpack.c.l.b16 %v67
    %v140 = vunpack.c.l.b16 %v68
    %v141 = vunpack.c.l.b16 %v69
    %v142 = vunpack.c.l.b16 %v70
    %v143 = vunpack.c.l.b16 %v71
    %v144 = vunpack.c.l.b16 %v72
    %v145 = vpack.c.b16 %v130, %v129
    %v146 = vpack.c.b16 %v132, %v131
    %v147 = vpack.c.b16 %v134, %v133
    %v148 = vpack.c.b16 %v136, %v135
    %v149 = vpack.c.b16 %v138, %v137
    %v150 = vpack.c.b16 %v140, %v139
    %v151 = vpack.c.b16 %v142, %v141
    %v152 = vpack.c.b16 %v144, %v143
    %161 = vmatprep.subr.bf16.mxu0 0
    %162 = vmatpush1.bf16.msra.mxu0 %v152
    %163 = vmatprep.subr.bf16.mxu0 0
    %164 = vmatpush1.bf16.msra.mxu0 %v151
    %165 = vmatprep.subr.bf16.mxu0 0
    %166 = vmatpush1.bf16.msra.mxu0 %v150
    %167 = vmatprep.subr.bf16.mxu0 0
    %168 = vmatpush1.bf16.msra.mxu0 %v149
    %169 = vmatprep.subr.bf16.mxu0 0
    %170 = vmatpush1.bf16.msra.mxu0 %v148
    %171 = vmatprep.subr.bf16.mxu0 0
    %172 = vmatpush1.bf16.msra.mxu0 %v147
    %173 = vmatprep.subr.bf16.mxu0 0
    %174 = vmatpush1.bf16.msra.mxu0 %v146
    %175 = vmatprep.subr.bf16.mxu0 0
    %176 = vmatpush1.bf16.msra.mxu0 %v145
    %177 = vmatprep.subr.bf16.mxu0 0
    %178 = vmatpush2.bf16.msra.mxu0 0
    %179 = vmatprep.subr.bf16.mxu0 0
    %180 = vmatpush2.bf16.msra.mxu0 0
    %181 = vmatprep.subr.bf16.mxu0 0
    %182 = vmatpush2.bf16.msra.mxu0 0
    %183 = vmatprep.subr.bf16.mxu0 0
    %184 = vmatpush2.bf16.msra.mxu0 0
    %185 = vmatprep.subr.bf16.mxu0 0
    %186 = vmatpush2.bf16.msra.mxu0 0
    %187 = vmatprep.subr.bf16.mxu0 0
    %188 = vmatpush2.bf16.msra.mxu0 0
    %189 = vmatprep.subr.bf16.mxu0 0
    %190 = vmatpush2.bf16.msra.mxu0 0
    %191 = vmatprep.subr.bf16.mxu0 0
    %192 = vmatpush2.bf16.msra.mxu0 0
    %193 = vmatprep.mubr.bf16.mxu0 0
    %194 = vmatmul.mubr.bf16.gmra.mxu0 %v105
    %v195 = vpop.f32.mrf.mxu0
    %v196 = vadd.f32 %v81, %v195
    %v197 = vpop.f32.mrf.mxu0
    %v198 = vpop.f32.mrf.mxu0
    %v199 = vadd.f32 %v82, %v198
    %v200 = vpop.f32.mrf.mxu0
    %201 = vmatprep.mubr.bf16.mxu0 0
    %202 = vmatmul.mubr.bf16.gmra.mxu0 %v106
    %v203 = vpop.f32.mrf.mxu0
    %v204 = vadd.f32 %v83, %v203
    %v205 = vpop.f32.mrf.mxu0
    %v206 = vpop.f32.mrf.mxu0
    %v207 = vadd.f32 %v84, %v206
    %v208 = vpop.f32.mrf.mxu0
    %209 = vmatprep.mubr.bf16.mxu0 0
    %210 = vmatmul.mubr.bf16.gmra.mxu0 %v107
    %v211 = vpop.f32.mrf.mxu0
    %v212 = vadd.f32 %v85, %v211
    %v213 = vpop.f32.mrf.mxu0
    %v214 = vpop.f32.mrf.mxu0
    %v215 = vadd.f32 %v86, %v214
    %v216 = vpop.f32.mrf.mxu0
    %217 = vmatprep.mubr.bf16.mxu0 0
    %218 = vmatmul.mubr.bf16.gmra.mxu0 %v108
    %v219 = vpop.f32.mrf.mxu0
    %v220 = vadd.f32 %v87, %v219
    %v221 = vpop.f32.mrf.mxu0
    %v222 = vpop.f32.mrf.mxu0
    %v223 = vadd.f32 %v88, %v222
    %v224 = vpop.f32.mrf.mxu0
    %225 = vdwg.mxu0
    %v226 = vmax.f32 %v196, 0.0
    %v227 = vmax.f32 %v199, 0.0
    %v228 = vmax.f32 %v204, 0.0
    %v229 = vmax.f32 %v207, 0.0
    %v230 = vmax.f32 %v212, 0.0
    %v231 = vmax.f32 %v215, 0.0
    %v232 = vmax.f32 %v220, 0.0
    %v233 = vmax.f32 %v223, 0.0
    %235 = vset.pattern.permute.xlu0 0
    %236 = vperm.xlu0 %235, %v73
    %v237 = vpop.permute.xlu0 %236
    %240 = vset.pattern.permute.xlu0 0
    %241 = vperm.xlu0 %240, %v74
    %v242 = vpop.permute.xlu0 %241
    %245 = vset.pattern.permute.xlu0 0
    %246 = vperm.xlu0 %245, %v75
    %v247 = vpop.permute.xlu0 %246
    %250 = vset.pattern.permute.xlu0 0
    %251 = vperm.xlu0 %250, %v76
    %v252 = vpop.permute.xlu0 %251
    %255 = vset.pattern.permute.xlu0 0
    %256 = vperm.xlu0 %255, %v77
    %v257 = vpop.permute.xlu0 %256
    %260 = vset.pattern.permute.xlu0 0
    %261 = vperm.xlu0 %260, %v78
    %v262 = vpop.permute.xlu0 %261
    %265 = vset.pattern.permute.xlu0 0
    %266 = vperm.xlu0 %265, %v79
    %v267 = vpop.permute.xlu0 %266
    %270 = vset.pattern.permute.xlu0 0
    %271 = vperm.xlu0 %270, %v80
    %v272 = vpop.permute.xlu0 %271
    %v274 = vmul.f32 %v237, %v226
    %v275 = vmul.f32 %v242, %v227
    %v276 = vmul.f32 %v247, %v228
    %v277 = vmul.f32 %v252, %v229
    %v278 = vmul.f32 %v257, %v230
    %v279 = vmul.f32 %v262, %v231
    %v280 = vmul.f32 %v267, %v232
    %v281 = vmul.f32 %v272, %v233
    %282 = vst [vmem:[#allocation2] sm:$0xff] %v274
    %283 = vst [vmem:[#allocation2 + $0x8] sm:$0xff] %v275
    %284 = vst [vmem:[#allocation2 + $0x10] sm:$0xff] %v276
    %285 = vst [vmem:[#allocation2 + $0x18] sm:$0xff] %v277
    %286 = vst [vmem:[#allocation2 + $0x20] sm:$0xff] %v278
    %287 = vst [vmem:[#allocation2 + $0x28] sm:$0xff] %v279
    %288 = vst [vmem:[#allocation2 + $0x30] sm:$0xff] %v280
    %289 = vst [vmem:[#allocation2 + $0x38] sm:$0xff] %v281
    %290 = vst [vmem:[#allocation3] sm:$0xff] 0.0
    %291 = vst [vmem:[#allocation3 + $0x8] sm:$0xff] 0.0
    %292 = vst [vmem:[#allocation3 + $0x10] sm:$0xff] 0.0
    %293 = vst [vmem:[#allocation3 + $0x18] sm:$0xff] 0.0
    %s294 = sld [smem:[#allocation4]]
    %s295 = scalar_lea.vmem [#allocation3], %s294
    %v296 = vld [vmem:[%s295] sm:$0x1]
    %v297 = vld [vmem:[#allocation2] sm:$0x1]
    %v298 = vadd.f32 %v296, %v297
    %299 = vst [vmem:[%s295] sm:$0x1] %v298
    %s300 = sld [smem:[#allocation4 + $0x1]]
    %s301 = scalar_lea.vmem [#allocation3], %s300
    %v302 = vld [vmem:[%s301] sm:$0x1]
    %v303 = vld [vmem:[#allocation2 + $0x1] sm:$0x1]
    %v304 = vadd.f32 %v302, %v303
    %305 = vst [vmem:[%s301] sm:$0x1] %v304
    %s306 = sld [smem:[#allocation4 + $0x2]]
    %s307 = scalar_lea.vmem [#allocation3], %s306
    %v308 = vld [vmem:[%s307] sm:$0x1]
    %v309 = vld [vmem:[#allocation2 + $0x2] sm:$0x1]
    %v310 = vadd.f32 %v308, %v309
    %311 = vst [vmem:[%s307] sm:$0x1] %v310
    %s312 = sld [smem:[#allocation4 + $0x3]]
    %s313 = scalar_lea.vmem [#allocation3], %s312
    %v314 = vld [vmem:[%s313] sm:$0x1]
    %v315 = vld [vmem:[#allocation2 + $0x3] sm:$0x1]
    %v316 = vadd.f32 %v314, %v315
    %317 = vst [vmem:[%s313] sm:$0x1] %v316
    %s318 = sld [smem:[#allocation4 + $0x4]]
    %s319 = scalar_lea.vmem [#allocation3], %s318
    %v320 = vld [vmem:[%s319] sm:$0x1]
    %v321 = vld [vmem:[#allocation2 + $0x4] sm:$0x1]
    %v322 = vadd.f32 %v320, %v321
    %323 = vst [vmem:[%s319] sm:$0x1] %v322
    %s324 = sld [smem:[#allocation4 + $0x5]]
    %s325 = scalar_lea.vmem [#allocation3], %s324
    %v326 = vld [vmem:[%s325] sm:$0x1]
    %v327 = vld [vmem:[#allocation2 + $0x5] sm:$0x1]
    %v328 = vadd.f32 %v326, %v327
    %329 = vst [vmem:[%s325] sm:$0x1] %v328
    %s330 = sld [smem:[#allocation4 + $0x6]]
    %s331 = scalar_lea.vmem [#allocation3], %s330
    %v332 = vld [vmem:[%s331] sm:$0x1]
    %v333 = vld [vmem:[#allocation2 + $0x6] sm:$0x1]
    %v334 = vadd.f32 %v332, %v333
    %335 = vst [vmem:[%s331] sm:$0x1] %v334
    %s336 = sld [smem:[#allocation4 + $0x7]]
    %s337 = scalar_lea.vmem [#allocation3], %s336
    %v338 = vld [vmem:[%s337] sm:$0x1]
    %v339 = vld [vmem:[#allocation2 + $0x7] sm:$0x1]
    %v340 = vadd.f32 %v338, %v339
    %341 = vst [vmem:[%s337] sm:$0x1] %v340
    %s342 = sld [smem:[#allocation4 + $0x8]]
    %s343 = scalar_lea.vmem [#allocation3], %s342
    %v344 = vld [vmem:[%s343] sm:$0x1]
    %v345 = vld [vmem:[#allocation2 + $0x8] sm:$0x1]
    %v346 = vadd.f32 %v344, %v345
    %347 = vst [vmem:[%s343] sm:$0x1] %v346
    %s348 = sld [smem:[#allocation4 + $0x9]]
    %s349 = scalar_lea.vmem [#allocation3], %s348
    %v350 = vld [vmem:[%s349] sm:$0x1]
    %v351 = vld [vmem:[#allocation2 + $0x9] sm:$0x1]
    %v352 = vadd.f32 %v350, %v351
    %353 = vst [vmem:[%s349] sm:$0x1] %v352
    %s354 = sld [smem:[#allocation4 + $0xa]]
    %s355 = scalar_lea.vmem [#allocation3], %s354
    %v356 = vld [vmem:[%s355] sm:$0x1]
    %v357 = vld [vmem:[#allocation2 + $0xa] sm:$0x1]
    %v358 = vadd.f32 %v356, %v357
    %359 = vst [vmem:[%s355] sm:$0x1] %v358
    %s360 = sld [smem:[#allocation4 + $0xb]]
    %s361 = scalar_lea.vmem [#allocation3], %s360
    %v362 = vld [vmem:[%s361] sm:$0x1]
    %v363 = vld [vmem:[#allocation2 + $0xb] sm:$0x1]
    %v364 = vadd.f32 %v362, %v363
    %365 = vst [vmem:[%s361] sm:$0x1] %v364
    %s366 = sld [smem:[#allocation4 + $0xc]]
    %s367 = scalar_lea.vmem [#allocation3], %s366
    %v368 = vld [vmem:[%s367] sm:$0x1]
    %v369 = vld [vmem:[#allocation2 + $0xc] sm:$0x1]
    %v370 = vadd.f32 %v368, %v369
    %371 = vst [vmem:[%s367] sm:$0x1] %v370
    %s372 = sld [smem:[#allocation4 + $0xd]]
    %s373 = scalar_lea.vmem [#allocation3], %s372
    %v374 = vld [vmem:[%s373] sm:$0x1]
    %v375 = vld [vmem:[#allocation2 + $0xd] sm:$0x1]
    %v376 = vadd.f32 %v374, %v375
    %377 = vst [vmem:[%s373] sm:$0x1] %v376
    %s378 = sld [smem:[#allocation4 + $0xe]]
    %s379 = scalar_lea.vmem [#allocation3], %s378
    %v380 = vld [vmem:[%s379] sm:$0x1]
    %v381 = vld [vmem:[#allocation2 + $0xe] sm:$0x1]
    %v382 = vadd.f32 %v380, %v381
    %383 = vst [vmem:[%s379] sm:$0x1] %v382
    %s384 = sld [smem:[#allocation4 + $0xf]]
    %s385 = scalar_lea.vmem [#allocation3], %s384
    %v386 = vld [vmem:[%s385] sm:$0x1]
    %v387 = vld [vmem:[#allocation2 + $0xf] sm:$0x1]
    %v388 = vadd.f32 %v386, %v387
    %389 = vst [vmem:[%s385] sm:$0x1] %v388
    %s390 = sld [smem:[#allocation4 + $0x10]]
    %s391 = scalar_lea.vmem [#allocation3], %s390
    %v392 = vld [vmem:[%s391] sm:$0x1]
    %v393 = vld [vmem:[#allocation2 + $0x10] sm:$0x1]
    %v394 = vadd.f32 %v392, %v393
    %395 = vst [vmem:[%s391] sm:$0x1] %v394
    %s396 = sld [smem:[#allocation4 + $0x11]]
    %s397 = scalar_lea.vmem [#allocation3], %s396
    %v398 = vld [vmem:[%s397] sm:$0x1]
    %v399 = vld [vmem:[#allocation2 + $0x11] sm:$0x1]
    %v400 = vadd.f32 %v398, %v399
    %401 = vst [vmem:[%s397] sm:$0x1] %v400
    %s402 = sld [smem:[#allocation4 + $0x12]]
    %s403 = scalar_lea.vmem [#allocation3], %s402
    %v404 = vld [vmem:[%s403] sm:$0x1]
    %v405 = vld [vmem:[#allocation2 + $0x12] sm:$0x1]
    %v406 = vadd.f32 %v404, %v405
    %407 = vst [vmem:[%s403] sm:$0x1] %v406
    %s408 = sld [smem:[#allocation4 + $0x13]]
    %s409 = scalar_lea.vmem [#allocation3], %s408
    %v410 = vld [vmem:[%s409] sm:$0x1]
    %v411 = vld [vmem:[#allocation2 + $0x13] sm:$0x1]
    %v412 = vadd.f32 %v410, %v411
    %413 = vst [vmem:[%s409] sm:$0x1] %v412
    %s414 = sld [smem:[#allocation4 + $0x14]]
    %s415 = scalar_lea.vmem [#allocation3], %s414
    %v416 = vld [vmem:[%s415] sm:$0x1]
    %v417 = vld [vmem:[#allocation2 + $0x14] sm:$0x1]
    %v418 = vadd.f32 %v416, %v417
    %419 = vst [vmem:[%s415] sm:$0x1] %v418
    %s420 = sld [smem:[#allocation4 + $0x15]]
    %s421 = scalar_lea.vmem [#allocation3], %s420
    %v422 = vld [vmem:[%s421] sm:$0x1]
    %v423 = vld [vmem:[#allocation2 + $0x15] sm:$0x1]
    %v424 = vadd.f32 %v422, %v423
    %425 = vst [vmem:[%s421] sm:$0x1] %v424
    %s426 = sld [smem:[#allocation4 + $0x16]]
    %s427 = scalar_lea.vmem [#allocation3], %s426
    %v428 = vld [vmem:[%s427] sm:$0x1]
    %v429 = vld [vmem:[#allocation2 + $0x16] sm:$0x1]
    %v430 = vadd.f32 %v428, %v429
    %431 = vst [vmem:[%s427] sm:$0x1] %v430
    %s432 = sld [smem:[#allocation4 + $0x17]]
    %s433 = scalar_lea.vmem [#allocation3], %s432
    %v434 = vld [vmem:[%s433] sm:$0x1]
    %v435 = vld [vmem:[#allocation2 + $0x17] sm:$0x1]
    %v436 = vadd.f32 %v434, %v435
    %437 = vst [vmem:[%s433] sm:$0x1] %v436
    %s438 = sld [smem:[#allocation4 + $0x18]]
    %s439 = scalar_lea.vmem [#allocation3], %s438
    %v440 = vld [vmem:[%s439] sm:$0x1]
    %v441 = vld [vmem:[#allocation2 + $0x18] sm:$0x1]
    %v442 = vadd.f32 %v440, %v441
    %443 = vst [vmem:[%s439] sm:$0x1] %v442
    %s444 = sld [smem:[#allocation4 + $0x19]]
    %s445 = scalar_lea.vmem [#allocation3], %s444
    %v446 = vld [vmem:[%s445] sm:$0x1]
    %v447 = vld [vmem:[#allocation2 + $0x19] sm:$0x1]
    %v448 = vadd.f32 %v446, %v447
    %449 = vst [vmem:[%s445] sm:$0x1] %v448
    %s450 = sld [smem:[#allocation4 + $0x1a]]
    %s451 = scalar_lea.vmem [#allocation3], %s450
    %v452 = vld [vmem:[%s451] sm:$0x1]
    %v453 = vld [vmem:[#allocation2 + $0x1a] sm:$0x1]
    %v454 = vadd.f32 %v452, %v453
    %455 = vst [vmem:[%s451] sm:$0x1] %v454
    %s456 = sld [smem:[#allocation4 + $0x1b]]
    %s457 = scalar_lea.vmem [#allocation3], %s456
    %v458 = vld [vmem:[%s457] sm:$0x1]
    %v459 = vld [vmem:[#allocation2 + $0x1b] sm:$0x1]
    %v460 = vadd.f32 %v458, %v459
    %461 = vst [vmem:[%s457] sm:$0x1] %v460
    %s462 = sld [smem:[#allocation4 + $0x1c]]
    %s463 = scalar_lea.vmem [#allocation3], %s462
    %v464 = vld [vmem:[%s463] sm:$0x1]
    %v465 = vld [vmem:[#allocation2 + $0x1c] sm:$0x1]
    %v466 = vadd.f32 %v464, %v465
    %467 = vst [vmem:[%s463] sm:$0x1] %v466
    %s468 = sld [smem:[#allocation4 + $0x1d]]
    %s469 = scalar_lea.vmem [#allocation3], %s468
    %v470 = vld [vmem:[%s469] sm:$0x1]
    %v471 = vld [vmem:[#allocation2 + $0x1d] sm:$0x1]
    %v472 = vadd.f32 %v470, %v471
    %473 = vst [vmem:[%s469] sm:$0x1] %v472
    %s474 = sld [smem:[#allocation4 + $0x1e]]
    %s475 = scalar_lea.vmem [#allocation3], %s474
    %v476 = vld [vmem:[%s475] sm:$0x1]
    %v477 = vld [vmem:[#allocation2 + $0x1e] sm:$0x1]
    %v478 = vadd.f32 %v476, %v477
    %479 = vst [vmem:[%s475] sm:$0x1] %v478
    %s480 = sld [smem:[#allocation4 + $0x1f]]
    %s481 = scalar_lea.vmem [#allocation3], %s480
    %v482 = vld [vmem:[%s481] sm:$0x1]
    %v483 = vld [vmem:[#allocation2 + $0x1f] sm:$0x1]
    %v484 = vadd.f32 %v482, %v483
    %485 = vst [vmem:[%s481] sm:$0x1] %v484
    %s486 = sld [smem:[#allocation4 + $0x20]]
    %s487 = scalar_lea.vmem [#allocation3], %s486
    %v488 = vld [vmem:[%s487] sm:$0x1]
    %v489 = vld [vmem:[#allocation2 + $0x20] sm:$0x1]
    %v490 = vadd.f32 %v488, %v489
    %491 = vst [vmem:[%s487] sm:$0x1] %v490
    %s492 = sld [smem:[#allocation4 + $0x21]]
    %s493 = scalar_lea.vmem [#allocation3], %s492
    %v494 = vld [vmem:[%s493] sm:$0x1]
    %v495 = vld [vmem:[#allocation2 + $0x21] sm:$0x1]
    %v496 = vadd.f32 %v494, %v495
    %497 = vst [vmem:[%s493] sm:$0x1] %v496
    %s498 = sld [smem:[#allocation4 + $0x22]]
    %s499 = scalar_lea.vmem [#allocation3], %s498
    %v500 = vld [vmem:[%s499] sm:$0x1]
    %v501 = vld [vmem:[#allocation2 + $0x22] sm:$0x1]
    %v502 = vadd.f32 %v500, %v501
    %503 = vst [vmem:[%s499] sm:$0x1] %v502
    %s504 = sld [smem:[#allocation4 + $0x23]]
    %s505 = scalar_lea.vmem [#allocation3], %s504
    %v506 = vld [vmem:[%s505] sm:$0x1]
    %v507 = vld [vmem:[#allocation2 + $0x23] sm:$0x1]
    %v508 = vadd.f32 %v506, %v507
    %509 = vst [vmem:[%s505] sm:$0x1] %v508
    %s510 = sld [smem:[#allocation4 + $0x24]]
    %s511 = scalar_lea.vmem [#allocation3], %s510
    %v512 = vld [vmem:[%s511] sm:$0x1]
    %v513 = vld [vmem:[#allocation2 + $0x24] sm:$0x1]
    %v514 = vadd.f32 %v512, %v513
    %515 = vst [vmem:[%s511] sm:$0x1] %v514
    %s516 = sld [smem:[#allocation4 + $0x25]]
    %s517 = scalar_lea.vmem [#allocation3], %s516
    %v518 = vld [vmem:[%s517] sm:$0x1]
    %v519 = vld [vmem:[#allocation2 + $0x25] sm:$0x1]
    %v520 = vadd.f32 %v518, %v519
    %521 = vst [vmem:[%s517] sm:$0x1] %v520
    %s522 = sld [smem:[#allocation4 + $0x26]]
    %s523 = scalar_lea.vmem [#allocation3], %s522
    %v524 = vld [vmem:[%s523] sm:$0x1]
    %v525 = vld [vmem:[#allocation2 + $0x26] sm:$0x1]
    %v526 = vadd.f32 %v524, %v525
    %527 = vst [vmem:[%s523] sm:$0x1] %v526
    %s528 = sld [smem:[#allocation4 + $0x27]]
    %s529 = scalar_lea.vmem [#allocation3], %s528
    %v530 = vld [vmem:[%s529] sm:$0x1]
    %v531 = vld [vmem:[#allocation2 + $0x27] sm:$0x1]
    %v532 = vadd.f32 %v530, %v531
    %533 = vst [vmem:[%s529] sm:$0x1] %v532
    %s534 = sld [smem:[#allocation4 + $0x28]]
    %s535 = scalar_lea.vmem [#allocation3], %s534
    %v536 = vld [vmem:[%s535] sm:$0x1]
    %v537 = vld [vmem:[#allocation2 + $0x28] sm:$0x1]
    %v538 = vadd.f32 %v536, %v537
    %539 = vst [vmem:[%s535] sm:$0x1] %v538
    %s540 = sld [smem:[#allocation4 + $0x29]]
    %s541 = scalar_lea.vmem [#allocation3], %s540
    %v542 = vld [vmem:[%s541] sm:$0x1]
    %v543 = vld [vmem:[#allocation2 + $0x29] sm:$0x1]
    %v544 = vadd.f32 %v542, %v543
    %545 = vst [vmem:[%s541] sm:$0x1] %v544
    %s546 = sld [smem:[#allocation4 + $0x2a]]
    %s547 = scalar_lea.vmem [#allocation3], %s546
    %v548 = vld [vmem:[%s547] sm:$0x1]
    %v549 = vld [vmem:[#allocation2 + $0x2a] sm:$0x1]
    %v550 = vadd.f32 %v548, %v549
    %551 = vst [vmem:[%s547] sm:$0x1] %v550
    %s552 = sld [smem:[#allocation4 + $0x2b]]
    %s553 = scalar_lea.vmem [#allocation3], %s552
    %v554 = vld [vmem:[%s553] sm:$0x1]
    %v555 = vld [vmem:[#allocation2 + $0x2b] sm:$0x1]
    %v556 = vadd.f32 %v554, %v555
    %557 = vst [vmem:[%s553] sm:$0x1] %v556
    %s558 = sld [smem:[#allocation4 + $0x2c]]
    %s559 = scalar_lea.vmem [#allocation3], %s558
    %v560 = vld [vmem:[%s559] sm:$0x1]
    %v561 = vld [vmem:[#allocation2 + $0x2c] sm:$0x1]
    %v562 = vadd.f32 %v560, %v561
    %563 = vst [vmem:[%s559] sm:$0x1] %v562
    %s564 = sld [smem:[#allocation4 + $0x2d]]
    %s565 = scalar_lea.vmem [#allocation3], %s564
    %v566 = vld [vmem:[%s565] sm:$0x1]
    %v567 = vld [vmem:[#allocation2 + $0x2d] sm:$0x1]
    %v568 = vadd.f32 %v566, %v567
    %569 = vst [vmem:[%s565] sm:$0x1] %v568
    %s570 = sld [smem:[#allocation4 + $0x2e]]
    %s571 = scalar_lea.vmem [#allocation3], %s570
    %v572 = vld [vmem:[%s571] sm:$0x1]
    %v573 = vld [vmem:[#allocation2 + $0x2e] sm:$0x1]
    %v574 = vadd.f32 %v572, %v573
    %575 = vst [vmem:[%s571] sm:$0x1] %v574
    %s576 = sld [smem:[#allocation4 + $0x2f]]
    %s577 = scalar_lea.vmem [#allocation3], %s576
    %v578 = vld [vmem:[%s577] sm:$0x1]
    %v579 = vld [vmem:[#allocation2 + $0x2f] sm:$0x1]
    %v580 = vadd.f32 %v578, %v579
    %581 = vst [vmem:[%s577] sm:$0x1] %v580
    %s582 = sld [smem:[#allocation4 + $0x30]]
    %s583 = scalar_lea.vmem [#allocation3], %s582
    %v584 = vld [vmem:[%s583] sm:$0x1]
    %v585 = vld [vmem:[#allocation2 + $0x30] sm:$0x1]
    %v586 = vadd.f32 %v584, %v585
    %587 = vst [vmem:[%s583] sm:$0x1] %v586
    %s588 = sld [smem:[#allocation4 + $0x31]]
    %s589 = scalar_lea.vmem [#allocation3], %s588
    %v590 = vld [vmem:[%s589] sm:$0x1]
    %v591 = vld [vmem:[#allocation2 + $0x31] sm:$0x1]
    %v592 = vadd.f32 %v590, %v591
    %593 = vst [vmem:[%s589] sm:$0x1] %v592
    %s594 = sld [smem:[#allocation4 + $0x32]]
    %s595 = scalar_lea.vmem [#allocation3], %s594
    %v596 = vld [vmem:[%s595] sm:$0x1]
    %v597 = vld [vmem:[#allocation2 + $0x32] sm:$0x1]
    %v598 = vadd.f32 %v596, %v597
    %599 = vst [vmem:[%s595] sm:$0x1] %v598
    %s600 = sld [smem:[#allocation4 + $0x33]]
    %s601 = scalar_lea.vmem [#allocation3], %s600
    %v602 = vld [vmem:[%s601] sm:$0x1]
    %v603 = vld [vmem:[#allocation2 + $0x33] sm:$0x1]
    %v604 = vadd.f32 %v602, %v603
    %605 = vst [vmem:[%s601] sm:$0x1] %v604
    %s606 = sld [smem:[#allocation4 + $0x34]]
    %s607 = scalar_lea.vmem [#allocation3], %s606
    %v608 = vld [vmem:[%s607] sm:$0x1]
    %v609 = vld [vmem:[#allocation2 + $0x34] sm:$0x1]
    %v610 = vadd.f32 %v608, %v609
    %611 = vst [vmem:[%s607] sm:$0x1] %v610
    %s612 = sld [smem:[#allocation4 + $0x35]]
    %s613 = scalar_lea.vmem [#allocation3], %s612
    %v614 = vld [vmem:[%s613] sm:$0x1]
    %v615 = vld [vmem:[#allocation2 + $0x35] sm:$0x1]
    %v616 = vadd.f32 %v614, %v615
    %617 = vst [vmem:[%s613] sm:$0x1] %v616
    %s618 = sld [smem:[#allocation4 + $0x36]]
    %s619 = scalar_lea.vmem [#allocation3], %s618
    %v620 = vld [vmem:[%s619] sm:$0x1]
    %v621 = vld [vmem:[#allocation2 + $0x36] sm:$0x1]
    %v622 = vadd.f32 %v620, %v621
    %623 = vst [vmem:[%s619] sm:$0x1] %v622
    %s624 = sld [smem:[#allocation4 + $0x37]]
    %s625 = scalar_lea.vmem [#allocation3], %s624
    %v626 = vld [vmem:[%s625] sm:$0x1]
    %v627 = vld [vmem:[#allocation2 + $0x37] sm:$0x1]
    %v628 = vadd.f32 %v626, %v627
    %629 = vst [vmem:[%s625] sm:$0x1] %v628
    %s630 = sld [smem:[#allocation4 + $0x38]]
    %s631 = scalar_lea.vmem [#allocation3], %s630
    %v632 = vld [vmem:[%s631] sm:$0x1]
    %v633 = vld [vmem:[#allocation2 + $0x38] sm:$0x1]
    %v634 = vadd.f32 %v632, %v633
    %635 = vst [vmem:[%s631] sm:$0x1] %v634
    %s636 = sld [smem:[#allocation4 + $0x39]]
    %s637 = scalar_lea.vmem [#allocation3], %s636
    %v638 = vld [vmem:[%s637] sm:$0x1]
    %v639 = vld [vmem:[#allocation2 + $0x39] sm:$0x1]
    %v640 = vadd.f32 %v638, %v639
    %641 = vst [vmem:[%s637] sm:$0x1] %v640
    %s642 = sld [smem:[#allocation4 + $0x3a]]
    %s643 = scalar_lea.vmem [#allocation3], %s642
    %v644 = vld [vmem:[%s643] sm:$0x1]
    %v645 = vld [vmem:[#allocation2 + $0x3a] sm:$0x1]
    %v646 = vadd.f32 %v644, %v645
    %647 = vst [vmem:[%s643] sm:$0x1] %v646
    %s648 = sld [smem:[#allocation4 + $0x3b]]
    %s649 = scalar_lea.vmem [#allocation3], %s648
    %v650 = vld [vmem:[%s649] sm:$0x1]
    %v651 = vld [vmem:[#allocation2 + $0x3b] sm:$0x1]
    %v652 = vadd.f32 %v650, %v651
    %653 = vst [vmem:[%s649] sm:$0x1] %v652
    %s654 = sld [smem:[#allocation4 + $0x3c]]
    %s655 = scalar_lea.vmem [#allocation3], %s654
    %v656 = vld [vmem:[%s655] sm:$0x1]
    %v657 = vld [vmem:[#allocation2 + $0x3c] sm:$0x1]
    %v658 = vadd.f32 %v656, %v657
    %659 = vst [vmem:[%s655] sm:$0x1] %v658
    %s660 = sld [smem:[#allocation4 + $0x3d]]
    %s661 = scalar_lea.vmem [#allocation3], %s660
    %v662 = vld [vmem:[%s661] sm:$0x1]
    %v663 = vld [vmem:[#allocation2 + $0x3d] sm:$0x1]
    %v664 = vadd.f32 %v662, %v663
    %665 = vst [vmem:[%s661] sm:$0x1] %v664
    %s666 = sld [smem:[#allocation4 + $0x3e]]
    %s667 = scalar_lea.vmem [#allocation3], %s666
    %v668 = vld [vmem:[%s667] sm:$0x1]
    %v669 = vld [vmem:[#allocation2 + $0x3e] sm:$0x1]
    %v670 = vadd.f32 %v668, %v669
    %671 = vst [vmem:[%s667] sm:$0x1] %v670
    %s672 = sld [smem:[#allocation4 + $0x3f]]
    %s673 = scalar_lea.vmem [#allocation3], %s672
    %v674 = vld [vmem:[%s673] sm:$0x1]
    %v675 = vld [vmem:[#allocation2 + $0x3f] sm:$0x1]
    %v676 = vadd.f32 %v674, %v675
    %677 = vst [vmem:[%s673] sm:$0x1] %v676
    %v678 = vld [vmem:[%s1] sm:$0xf]
    %v679 = vld [vmem:[%s1 + $0x4] sm:$0xf]
    %v680 = vld [vmem:[%s1 + $0x8] sm:$0xf]
    %v681 = vld [vmem:[%s1 + $0xc] sm:$0xf]
    %v682 = vld [vmem:[%s3] sm:$0xf]
    %v683 = vld [vmem:[%s3 + $0x4] sm:$0xf]
    %v684 = vld [vmem:[%s3 + $0x8] sm:$0xf]
    %v685 = vld [vmem:[%s3 + $0xc] sm:$0xf]
    %v686 = vld [vmem:[%s3 + $0x10] sm:$0xf]
    %v687 = vld [vmem:[%s3 + $0x14] sm:$0xf]
    %v688 = vld [vmem:[%s3 + $0x18] sm:$0xf]
    %v689 = vld [vmem:[%s3 + $0x1c] sm:$0xf]
    %v690 = vld [vmem:[%s3 + $0x20] sm:$0xf]
    %v691 = vld [vmem:[%s3 + $0x24] sm:$0xf]
    %v692 = vld [vmem:[%s3 + $0x28] sm:$0xf]
    %v693 = vld [vmem:[%s3 + $0x2c] sm:$0xf]
    %v694 = vld [vmem:[%s3 + $0x30] sm:$0xf]
    %v695 = vld [vmem:[%s3 + $0x34] sm:$0xf]
    %v696 = vld [vmem:[%s3 + $0x38] sm:$0xf]
    %v697 = vld [vmem:[%s3 + $0x3c] sm:$0xf]
    %v698 = vld [vmem:[#allocation3] sm:$0xff]
    %v699 = vld [vmem:[#allocation3 + $0x8] sm:$0xff]
    %v700 = vld [vmem:[#allocation3 + $0x10] sm:$0xff]
    %v701 = vld [vmem:[#allocation3 + $0x18] sm:$0xff]
    %v702 = vld [vmem:[%s6] sm:$0x1]
    %v704 = vlaneseq
    %v705 = vshrl.u32 %v704, 7
    %v706 = vsub.s32 0, %v705
    %v707 = vrot.slane %v702, %v706
    %v713 = vunpack.c.l.b16 %v678
    %v714 = vunpack.c.l.b16 %v679
    %v715 = vunpack.c.l.b16 %v680
    %v716 = vunpack.c.l.b16 %v681
    %v717 = vpack.c.b16 %v714, %v713
    %v718 = vpack.c.b16 %v716, %v715
    %v737 = vunpack.c.l.b16 %v682
    %v738 = vunpack.c.l.b16 %v683
    %v739 = vunpack.c.l.b16 %v684
    %v740 = vunpack.c.l.b16 %v685
    %v741 = vunpack.c.l.b16 %v686
    %v742 = vunpack.c.l.b16 %v687
    %v743 = vunpack.c.l.b16 %v688
    %v744 = vunpack.c.l.b16 %v689
    %v745 = vunpack.c.l.b16 %v690
    %v746 = vunpack.c.l.b16 %v691
    %v747 = vunpack.c.l.b16 %v692
    %v748 = vunpack.c.l.b16 %v693
    %v749 = vunpack.c.l.b16 %v694
    %v750 = vunpack.c.l.b16 %v695
    %v751 = vunpack.c.l.b16 %v696
    %v752 = vunpack.c.l.b16 %v697
    %v753 = vpack.c.b16 %v738, %v737
    %v754 = vpack.c.b16 %v740, %v739
    %v755 = vpack.c.b16 %v742, %v741
    %v756 = vpack.c.b16 %v744, %v743
    %v757 = vpack.c.b16 %v746, %v745
    %v758 = vpack.c.b16 %v748, %v747
    %v759 = vpack.c.b16 %v750, %v749
    %v760 = vpack.c.b16 %v752, %v751
    %769 = vmatprep.subr.bf16.mxu0 0
    %770 = vmatpush1.bf16.msra.mxu0 %v760
    %771 = vmatprep.subr.bf16.mxu0 0
    %772 = vmatpush1.bf16.msra.mxu0 %v759
    %773 = vmatprep.subr.bf16.mxu0 0
    %774 = vmatpush1.bf16.msra.mxu0 %v758
    %775 = vmatprep.subr.bf16.mxu0 0
    %776 = vmatpush1.bf16.msra.mxu0 %v757
    %777 = vmatprep.subr.bf16.mxu0 0
    %778 = vmatpush1.bf16.msra.mxu0 %v756
    %779 = vmatprep.subr.bf16.mxu0 0
    %780 = vmatpush1.bf16.msra.mxu0 %v755
    %781 = vmatprep.subr.bf16.mxu0 0
    %782 = vmatpush1.bf16.msra.mxu0 %v754
    %783 = vmatprep.subr.bf16.mxu0 0
    %784 = vmatpush1.bf16.msra.mxu0 %v753
    %785 = vmatprep.subr.bf16.mxu0 0
    %786 = vmatpush2.bf16.msra.mxu0 0
    %787 = vmatprep.subr.bf16.mxu0 0
    %788 = vmatpush2.bf16.msra.mxu0 0
    %789 = vmatprep.subr.bf16.mxu0 0
    %790 = vmatpush2.bf16.msra.mxu0 0
    %791 = vmatprep.subr.bf16.mxu0 0
    %792 = vmatpush2.bf16.msra.mxu0 0
    %793 = vmatprep.subr.bf16.mxu0 0
    %794 = vmatpush2.bf16.msra.mxu0 0
    %795 = vmatprep.subr.bf16.mxu0 0
    %796 = vmatpush2.bf16.msra.mxu0 0
    %797 = vmatprep.subr.bf16.mxu0 0
    %798 = vmatpush2.bf16.msra.mxu0 0
    %799 = vmatprep.subr.bf16.mxu0 0
    %800 = vmatpush2.bf16.msra.mxu0 0
    %801 = vmatprep.mubr.bf16.mxu0 0
    %802 = vmatmul.mubr.bf16.gmra.mxu0 %v717
    %v803 = vpop.f32.mrf.mxu0
    %v804 = vadd.f32 %v707, %v803
    %v805 = vpop.f32.mrf.mxu0
    %v806 = vpop.f32.mrf.mxu0
    %v807 = vadd.f32 %v707, %v806
    %v808 = vpop.f32.mrf.mxu0
    %809 = vmatprep.mubr.bf16.mxu0 0
    %810 = vmatmul.mubr.bf16.gmra.mxu0 %v718
    %v811 = vpop.f32.mrf.mxu0
    %v812 = vadd.f32 %v707, %v811
    %v813 = vpop.f32.mrf.mxu0
    %v814 = vpop.f32.mrf.mxu0
    %v815 = vadd.f32 %v707, %v814
    %v816 = vpop.f32.mrf.mxu0
    %817 = vdwg.mxu0
    %v818 = vmax.f32 %v804, 0.0
    %v819 = vmax.f32 %v807, 0.0
    %v820 = vmax.f32 %v812, 0.0
    %v821 = vmax.f32 %v815, 0.0
    %v822 = vld [vmem:[%s7] sm:$0xff]
    %v823 = vld [vmem:[%s7 + $0x8] sm:$0xff]
    %v824 = vld [vmem:[%s7 + $0x10] sm:$0xff]
    %v825 = vld [vmem:[%s7 + $0x18] sm:$0xff]
    %827 = vset.pattern.permute.xlu0 0
    %828 = vperm.xlu0 %827, %v822
    %v829 = vpop.permute.xlu0 %828
    %832 = vset.pattern.permute.xlu0 0
    %833 = vperm.xlu0 %832, %v823
    %v834 = vpop.permute.xlu0 %833
    %837 = vset.pattern.permute.xlu0 0
    %838 = vperm.xlu0 %837, %v824
    %v839 = vpop.permute.xlu0 %838
    %842 = vset.pattern.permute.xlu0 0
    %843 = vperm.xlu0 %842, %v825
    %v844 = vpop.permute.xlu0 %843
    %v846 = vmul.f32 %v818, %v829
    %v847 = vmul.f32 %v819, %v834
    %v848 = vmul.f32 %v820, %v839
    %v849 = vmul.f32 %v821, %v844
    %v850 = vadd.f32 %v698, %v846
    %v851 = vadd.f32 %v699, %v847
    %v852 = vadd.f32 %v700, %v848
    %v853 = vadd.f32 %v701, %v849
    %v854 = vpack.c.bf16 %v851, %v850
    %v855 = vpack.c.bf16 %v853, %v852
    %v858 = vunpack.c.l.b16 %v854
    %v859 = vunpack.c.h.b16 %v854
    %v860 = vunpack.c.l.b16 %v855
    %v861 = vunpack.c.h.b16 %v855
    %v862 = vpack.c.b16 %v858, %v858
    %v863 = vpack.c.b16 %v859, %v859
    %v864 = vpack.c.b16 %v860, %v860
    %v865 = vpack.c.b16 %v861, %v861
    %870 = vst [vmem:[%s10] sm:$0xf] %v862
    %871 = vst [vmem:[%s10 + $0x4] sm:$0xf] %v863
    %872 = vst [vmem:[%s10 + $0x8] sm:$0xf] %v864
    %873 = vst [vmem:[%s10 + $0xc] sm:$0xf] %v865
    // Predicated region
    $region46: #{gcn_forward.6} parent=1 // pred_check
      _
    $region47: #{gcn_forward.6} parent=1 // pred_check_branch
      %875 = sbr.rel (0) target = $region49
    $region48: #{gcn_forward.6} parent=1 // pred_region
      _
    $region49: #{gcn_forward.6} parent=1 // pred_fallthru
      _
    // Predicated region
    $region50: #{gcn_forward.6} parent=1 // pred_check
      _
    $region51: #{gcn_forward.6} parent=1 // pred_check_branch
      %877 = sbr.rel (0) target = $region53
    $region52: #{gcn_forward.6} parent=1 // pred_region
      _
    $region53: #{gcn_forward.6} parent=1 // pred_fallthru
      _
    %878 = vsyncpa [#allocation5], 1

// kernel: gcn_forward.4
$region0: #{gcn_forward.4}
  #allocation0 [shape = 'u32[]', space=smem, size = 0x4, offset = 0x4, fixed_abs, tag = 'smem constant byte address 0x4 - core index']
  #allocation1 [shape = 'u32[144,128]{1,0:T(1,128)}', space=vmem, size = 0x12000, scoped, tag = 'internal scratch']
  #allocation2 [shape = 'f32[64,128]{1,0:T(8,128)}', space=vmem, size = 0x8000, scoped, tag = 'scratch operand']
  #allocation3 [shape = 'f32[32,128]{1,0:T(8,128)}', space=vmem, size = 0x4000, scoped, tag = 'scratch operand']
  %s0 = inlined_call_operand.vmem [shape: s32[64], index: 0, kind: input, shape index: {}]
  %s1 = inlined_call_operand.vmem [shape: bf16[32,128], index: 1, kind: input, shape index: {}]
  %s2 = inlined_call_operand.vmem [shape: bf16[64,128], index: 2, kind: input, shape index: {}]
  %s3 = inlined_call_operand.vmem [shape: bf16[128,128], index: 3, kind: input, shape index: {}]
  %s4 = inlined_call_operand.vmem [shape: f32[64,128], index: 4, kind: input, shape index: {}]
  %s5 = inlined_call_operand.vmem [shape: f32[64,1], index: 5, kind: input, shape index: {}]
  %s6 = inlined_call_operand.vmem [shape: f32[1,128], index: 6, kind: input, shape index: {}]
  %s7 = inlined_call_operand.vmem [shape: f32[32,1], index: 7, kind: input, shape index: {}]
  %s8 = inlined_call_operand.vmem [shape: f32[1,128], index: 8, kind: input, shape index: {}]
  %s9 = inlined_call_operand.vmem [shape: f32[1,128], index: 9, kind: input, shape index: {}]
  %s10 = inlined_call_operand.vmem [shape: bf16[32,128], index: 10, kind: output, shape index: {}]
  %s11 = sld [smem:[#allocation0]]
  $region54: #{gcn_forward.4} parent=0
    _
  %s13 = ssub.s32 1, %s11
  %s14 = scalar_select 0, %s13, %s11
  $region1: #{gcn_forward.4} parent=0
    #allocation4 [shape = 'u8[512]{0}', space=smem, size = 0x200, scoped, tag = 'input window, operand 0, single buffered']
    #allocation5 [shape = 's32[1]{0}', space=sflag, size = 0x4, scoped, tag = 'scoped memory for gcn_forward.4']
    %15 = vsyncpa [#allocation5], 0
    // Predicated region
    $region2: #{gcn_forward.4} parent=1 // pred_check
      _
    $region3: #{gcn_forward.4} parent=1 // pred_check_branch
      %17 = sbr.rel (0) target = $region5
    $region4: #{gcn_forward.4} parent=1 // pred_region
      %s19 = ssub.s32 16, 16
      %20 = vsyncadd [#allocation5], %s19
      %s22 = sshll.u32 %s0, 4
      %s23 = int_to_ptr.vmem [resolvable:$true] %s22
      %25 = dma.vmem_to_smem %s23, 16, [#allocation4], [#allocation5]
    $region5: #{gcn_forward.4} parent=1 // pred_fallthru
      _
    // Predicated region
    $region6: #{gcn_forward.4} parent=1 // pred_check
      _
    $region7: #{gcn_forward.4} parent=1 // pred_check_branch
      %27 = sbr.rel (0) target = $region9
    $region8: #{gcn_forward.4} parent=1 // pred_region
      _
    $region9: #{gcn_forward.4} parent=1 // pred_fallthru
      _
    // Predicated region
    $region10: #{gcn_forward.4} parent=1 // pred_check
      _
    $region11: #{gcn_forward.4} parent=1 // pred_check_branch
      %29 = sbr.rel (0) target = $region13
    $region12: #{gcn_forward.4} parent=1 // pred_region
      _
    $region13: #{gcn_forward.4} parent=1 // pred_fallthru
      _
    // Predicated region
    $region14: #{gcn_forward.4} parent=1 // pred_check
      _
    $region15: #{gcn_forward.4} parent=1 // pred_check_branch
      %31 = sbr.rel (0) target = $region17
    $region16: #{gcn_forward.4} parent=1 // pred_region
      _
    $region17: #{gcn_forward.4} parent=1 // pred_fallthru
      _
    // Predicated region
    $region18: #{gcn_forward.4} parent=1 // pred_check
      _
    $region19: #{gcn_forward.4} parent=1 // pred_check_branch
      %33 = sbr.rel (0) target = $region21
    $region20: #{gcn_forward.4} parent=1 // pred_region
      _
    $region21: #{gcn_forward.4} parent=1 // pred_fallthru
      _
    // Predicated region
    $region22: #{gcn_forward.4} parent=1 // pred_check
      _
    $region23: #{gcn_forward.4} parent=1 // pred_check_branch
      %35 = sbr.rel (0) target = $region25
    $region24: #{gcn_forward.4} parent=1 // pred_region
      _
    $region25: #{gcn_forward.4} parent=1 // pred_fallthru
      _
    // Predicated region
    $region26: #{gcn_forward.4} parent=1 // pred_check
      _
    $region27: #{gcn_forward.4} parent=1 // pred_check_branch
      %37 = sbr.rel (0) target = $region29
    $region28: #{gcn_forward.4} parent=1 // pred_region
      _
    $region29: #{gcn_forward.4} parent=1 // pred_fallthru
      _
    // Predicated region
    $region30: #{gcn_forward.4} parent=1 // pred_check
      _
    $region31: #{gcn_forward.4} parent=1 // pred_check_branch
      %39 = sbr.rel (0) target = $region33
    $region32: #{gcn_forward.4} parent=1 // pred_region
      _
    $region33: #{gcn_forward.4} parent=1 // pred_fallthru
      _
    // Predicated region
    $region34: #{gcn_forward.4} parent=1 // pred_check
      _
    $region35: #{gcn_forward.4} parent=1 // pred_check_branch
      %41 = sbr.rel (0) target = $region37
    $region36: #{gcn_forward.4} parent=1 // pred_region
      _
    $region37: #{gcn_forward.4} parent=1 // pred_fallthru
      _
    // Predicated region
    $region38: #{gcn_forward.4} parent=1 // pred_check
      _
    $region39: #{gcn_forward.4} parent=1 // pred_check_branch
      %43 = sbr.rel (0) target = $region41
    $region40: #{gcn_forward.4} parent=1 // pred_region
      _
    $region41: #{gcn_forward.4} parent=1 // pred_fallthru
      _
    // Predicated region
    $region42: #{gcn_forward.4} parent=1 // pred_check
      _
    $region43: #{gcn_forward.4} parent=1 // pred_check_branch
      %45 = sbr.rel (0) target = $region45
    $region44: #{gcn_forward.4} parent=1 // pred_region
      %46 = dma.done [#allocation5], 16
    $region45: #{gcn_forward.4} parent=1 // pred_fallthru
      _
    %47 = sfence
    %v49 = vld [vmem:[%s2] sm:$0xf]
    %v50 = vld [vmem:[%s2 + $0x4] sm:$0xf]
    %v51 = vld [vmem:[%s2 + $0x8] sm:$0xf]
    %v52 = vld [vmem:[%s2 + $0xc] sm:$0xf]
    %v53 = vld [vmem:[%s2 + $0x10] sm:$0xf]
    %v54 = vld [vmem:[%s2 + $0x14] sm:$0xf]
    %v55 = vld [vmem:[%s2 + $0x18] sm:$0xf]
    %v56 = vld [vmem:[%s2 + $0x1c] sm:$0xf]
    %v57 = vld [vmem:[%s3] sm:$0xf]
    %v58 = vld [vmem:[%s3 + $0x4] sm:$0xf]
    %v59 = vld [vmem:[%s3 + $0x8] sm:$0xf]
    %v60 = vld [vmem:[%s3 + $0xc] sm:$0xf]
    %v61 = vld [vmem:[%s3 + $0x10] sm:$0xf]
    %v62 = vld [vmem:[%s3 + $0x14] sm:$0xf]
    %v63 = vld [vmem:[%s3 + $0x18] sm:$0xf]
    %v64 = vld [vmem:[%s3 + $0x1c] sm:$0xf]
    %v65 = vld [vmem:[%s3 + $0x20] sm:$0xf]
    %v66 = vld [vmem:[%s3 + $0x24] sm:$0xf]
    %v67 = vld [vmem:[%s3 + $0x28] sm:$0xf]
    %v68 = vld [vmem:[%s3 + $0x2c] sm:$0xf]
    %v69 = vld [vmem:[%s3 + $0x30] sm:$0xf]
    %v70 = vld [vmem:[%s3 + $0x34] sm:$0xf]
    %v71 = vld [vmem:[%s3 + $0x38] sm:$0xf]
    %v72 = vld [vmem:[%s3 + $0x3c] sm:$0xf]
    %v73 = vld [vmem:[%s5] sm:$0xff]
    %v74 = vld [vmem:[%s5 + $0x8] sm:$0xff]
    %v75 = vld [vmem:[%s5 + $0x10] sm:$0xff]
    %v76 = vld [vmem:[%s5 + $0x18] sm:$0xff]
    %v77 = vld [vmem:[%s5 + $0x20] sm:$0xff]
    %v78 = vld [vmem:[%s5 + $0x28] sm:$0xff]
    %v79 = vld [vmem:[%s5 + $0x30] sm:$0xff]
    %v80 = vld [vmem:[%s5 + $0x38] sm:$0xff]
    %v81 = vld [vmem:[%s4] sm:$0xff]
    %v82 = vld [vmem:[%s4 + $0x8] sm:$0xff]
    %v83 = vld [vmem:[%s4 + $0x10] sm:$0xff]
    %v84 = vld [vmem:[%s4 + $0x18] sm:$0xff]
    %v85 = vld [vmem:[%s4 + $0x20] sm:$0xff]
    %v86 = vld [vmem:[%s4 + $0x28] sm:$0xff]
    %v87 = vld [vmem:[%s4 + $0x30] sm:$0xff]
    %v88 = vld [vmem:[%s4 + $0x38] sm:$0xff]
    %v97 = vunpack.c.l.b16 %v49
    %v98 = vunpack.c.l.b16 %v50
    %v99 = vunpack.c.l.b16 %v51
    %v100 = vunpack.c.l.b16 %v52
    %v101 = vunpack.c.l.b16 %v53
    %v102 = vunpack.c.l.b16 %v54
    %v103 = vunpack.c.l.b16 %v55
    %v104 = vunpack.c.l.b16 %v56
    %v105 = vpack.c.b16 %v98, %v97
    %v106 = vpack.c.b16 %v100, %v99
    %v107 = vpack.c.b16 %v102, %v101
    %v108 = vpack.c.b16 %v104, %v103
    %v129 = vunpack.c.l.b16 %v57
    %v130 = vunpack.c.l.b16 %v58
    %v131 = vunpack.c.l.b16 %v59
    %v132 = vunpack.c.l.b16 %v60
    %v133 = vunpack.c.l.b16 %v61
    %v134 = vunpack.c.l.b16 %v62
    %v135 = vunpack.c.l.b16 %v63
    %v136 = vunpack.c.l.b16 %v64
    %v137 = vunpack.c.l.b16 %v65
    %v138 = vunpack.c.l.b16 %v66
    %v139 = vunpack.c.l.b16 %v67
    %v140 = vunpack.c.l.b16 %v68
    %v141 = vunpack.c.l.b16 %v69
    %v142 = vunpack.c.l.b16 %v70
    %v143 = vunpack.c.l.b16 %v71
    %v144 = vunpack.c.l.b16 %v72
    %v145 = vpack.c.b16 %v130, %v129
    %v146 = vpack.c.b16 %v132, %v131
    %v147 = vpack.c.b16 %v134, %v133
    %v148 = vpack.c.b16 %v136, %v135
    %v149 = vpack.c.b16 %v138, %v137
    %v150 = vpack.c.b16 %v140, %v139
    %v151 = vpack.c.b16 %v142, %v141
    %v152 = vpack.c.b16 %v144, %v143
    %161 = vmatprep.subr.bf16.mxu0 0
    %162 = vmatpush1.bf16.msra.mxu0 %v152
    %163 = vmatprep.subr.bf16.mxu0 0
    %164 = vmatpush1.bf16.msra.mxu0 %v151
    %165 = vmatprep.subr.bf16.mxu0 0
    %166 = vmatpush1.bf16.msra.mxu0 %v150
    %167 = vmatprep.subr.bf16.mxu0 0
    %168 = vmatpush1.bf16.msra.mxu0 %v149
    %169 = vmatprep.subr.bf16.mxu0 0
    %170 = vmatpush1.bf16.msra.mxu0 %v148
    %171 = vmatprep.subr.bf16.mxu0 0
    %172 = vmatpush1.bf16.msra.mxu0 %v147
    %173 = vmatprep.subr.bf16.mxu0 0
    %174 = vmatpush1.bf16.msra.mxu0 %v146
    %175 = vmatprep.subr.bf16.mxu0 0
    %176 = vmatpush1.bf16.msra.mxu0 %v145
    %177 = vmatprep.subr.bf16.mxu0 0
    %178 = vmatpush2.bf16.msra.mxu0 0
    %179 = vmatprep.subr.bf16.mxu0 0
    %180 = vmatpush2.bf16.msra.mxu0 0
    %181 = vmatprep.subr.bf16.mxu0 0
    %182 = vmatpush2.bf16.msra.mxu0 0
    %183 = vmatprep.subr.bf16.mxu0 0
    %184 = vmatpush2.bf16.msra.mxu0 0
    %185 = vmatprep.subr.bf16.mxu0 0
    %186 = vmatpush2.bf16.msra.mxu0 0
    %187 = vmatprep.subr.bf16.mxu0 0
    %188 = vmatpush2.bf16.msra.mxu0 0
    %189 = vmatprep.subr.bf16.mxu0 0
    %190 = vmatpush2.bf16.msra.mxu0 0
    %191 = vmatprep.subr.bf16.mxu0 0
    %192 = vmatpush2.bf16.msra.mxu0 0
    %193 = vmatprep.mubr.bf16.mxu0 0
    %194 = vmatmul.mubr.bf16.gmra.mxu0 %v105
    %v195 = vpop.f32.mrf.mxu0
    %v196 = vadd.f32 %v81, %v195
    %v197 = vpop.f32.mrf.mxu0
    %v198 = vpop.f32.mrf.mxu0
    %v199 = vadd.f32 %v82, %v198
    %v200 = vpop.f32.mrf.mxu0
    %201 = vmatprep.mubr.bf16.mxu0 0
    %202 = vmatmul.mubr.bf16.gmra.mxu0 %v106
    %v203 = vpop.f32.mrf.mxu0
    %v204 = vadd.f32 %v83, %v203
    %v205 = vpop.f32.mrf.mxu0
    %v206 = vpop.f32.mrf.mxu0
    %v207 = vadd.f32 %v84, %v206
    %v208 = vpop.f32.mrf.mxu0
    %209 = vmatprep.mubr.bf16.mxu0 0
    %210 = vmatmul.mubr.bf16.gmra.mxu0 %v107
    %v211 = vpop.f32.mrf.mxu0
    %v212 = vadd.f32 %v85, %v211
    %v213 = vpop.f32.mrf.mxu0
    %v214 = vpop.f32.mrf.mxu0
    %v215 = vadd.f32 %v86, %v214
    %v216 = vpop.f32.mrf.mxu0
    %217 = vmatprep.mubr.bf16.mxu0 0
    %218 = vmatmul.mubr.bf16.gmra.mxu0 %v108
    %v219 = vpop.f32.mrf.mxu0
    %v220 = vadd.f32 %v87, %v219
    %v221 = vpop.f32.mrf.mxu0
    %v222 = vpop.f32.mrf.mxu0
    %v223 = vadd.f32 %v88, %v222
    %v224 = vpop.f32.mrf.mxu0
    %225 = vdwg.mxu0
    %v226 = vmax.f32 %v196, 0.0
    %v227 = vmax.f32 %v199, 0.0
    %v228 = vmax.f32 %v204, 0.0
    %v229 = vmax.f32 %v207, 0.0
    %v230 = vmax.f32 %v212, 0.0
    %v231 = vmax.f32 %v215, 0.0
    %v232 = vmax.f32 %v220, 0.0
    %v233 = vmax.f32 %v223, 0.0
    %235 = vset.pattern.permute.xlu0 0
    %236 = vperm.xlu0 %235, %v73
    %v237 = vpop.permute.xlu0 %236
    %240 = vset.pattern.permute.xlu0 0
    %241 = vperm.xlu0 %240, %v74
    %v242 = vpop.permute.xlu0 %241
    %245 = vset.pattern.permute.xlu0 0
    %246 = vperm.xlu0 %245, %v75
    %v247 = vpop.permute.xlu0 %246
    %250 = vset.pattern.permute.xlu0 0
    %251 = vperm.xlu0 %250, %v76
    %v252 = vpop.permute.xlu0 %251
    %255 = vset.pattern.permute.xlu0 0
    %256 = vperm.xlu0 %255, %v77
    %v257 = vpop.permute.xlu0 %256
    %260 = vset.pattern.permute.xlu0 0
    %261 = vperm.xlu0 %260, %v78
    %v262 = vpop.permute.xlu0 %261
    %265 = vset.pattern.permute.xlu0 0
    %266 = vperm.xlu0 %265, %v79
    %v267 = vpop.permute.xlu0 %266
    %270 = vset.pattern.permute.xlu0 0
    %271 = vperm.xlu0 %270, %v80
    %v272 = vpop.permute.xlu0 %271
    %v274 = vmul.f32 %v237, %v226
    %v275 = vmul.f32 %v242, %v227
    %v276 = vmul.f32 %v247, %v228
    %v277 = vmul.f32 %v252, %v229
    %v278 = vmul.f32 %v257, %v230
    %v279 = vmul.f32 %v262, %v231
    %v280 = vmul.f32 %v267, %v232
    %v281 = vmul.f32 %v272, %v233
    %282 = vst [vmem:[#allocation2] sm:$0xff] %v274
    %283 = vst [vmem:[#allocation2 + $0x8] sm:$0xff] %v275
    %284 = vst [vmem:[#allocation2 + $0x10] sm:$0xff] %v276
    %285 = vst [vmem:[#allocation2 + $0x18] sm:$0xff] %v277
    %286 = vst [vmem:[#allocation2 + $0x20] sm:$0xff] %v278
    %287 = vst [vmem:[#allocation2 + $0x28] sm:$0xff] %v279
    %288 = vst [vmem:[#allocation2 + $0x30] sm:$0xff] %v280
    %289 = vst [vmem:[#allocation2 + $0x38] sm:$0xff] %v281
    %290 = vst [vmem:[#allocation3] sm:$0xff] 0.0
    %291 = vst [vmem:[#allocation3 + $0x8] sm:$0xff] 0.0
    %292 = vst [vmem:[#allocation3 + $0x10] sm:$0xff] 0.0
    %293 = vst [vmem:[#allocation3 + $0x18] sm:$0xff] 0.0
    %s294 = sld [smem:[#allocation4]]
    %s295 = scalar_lea.vmem [#allocation3], %s294
    %v296 = vld [vmem:[%s295] sm:$0x1]
    %v297 = vld [vmem:[#allocation2] sm:$0x1]
    %v298 = vadd.f32 %v296, %v297
    %299 = vst [vmem:[%s295] sm:$0x1] %v298
    %s300 = sld [smem:[#allocation4 + $0x1]]
    %s301 = scalar_lea.vmem [#allocation3], %s300
    %v302 = vld [vmem:[%s301] sm:$0x1]
    %v303 = vld [vmem:[#allocation2 + $0x1] sm:$0x1]
    %v304 = vadd.f32 %v302, %v303
    %305 = vst [vmem:[%s301] sm:$0x1] %v304
    %s306 = sld [smem:[#allocation4 + $0x2]]
    %s307 = scalar_lea.vmem [#allocation3], %s306
    %v308 = vld [vmem:[%s307] sm:$0x1]
    %v309 = vld [vmem:[#allocation2 + $0x2] sm:$0x1]
    %v310 = vadd.f32 %v308, %v309
    %311 = vst [vmem:[%s307] sm:$0x1] %v310
    %s312 = sld [smem:[#allocation4 + $0x3]]
    %s313 = scalar_lea.vmem [#allocation3], %s312
    %v314 = vld [vmem:[%s313] sm:$0x1]
    %v315 = vld [vmem:[#allocation2 + $0x3] sm:$0x1]
    %v316 = vadd.f32 %v314, %v315
    %317 = vst [vmem:[%s313] sm:$0x1] %v316
    %s318 = sld [smem:[#allocation4 + $0x4]]
    %s319 = scalar_lea.vmem [#allocation3], %s318
    %v320 = vld [vmem:[%s319] sm:$0x1]
    %v321 = vld [vmem:[#allocation2 + $0x4] sm:$0x1]
    %v322 = vadd.f32 %v320, %v321
    %323 = vst [vmem:[%s319] sm:$0x1] %v322
    %s324 = sld [smem:[#allocation4 + $0x5]]
    %s325 = scalar_lea.vmem [#allocation3], %s324
    %v326 = vld [vmem:[%s325] sm:$0x1]
    %v327 = vld [vmem:[#allocation2 + $0x5] sm:$0x1]
    %v328 = vadd.f32 %v326, %v327
    %329 = vst [vmem:[%s325] sm:$0x1] %v328
    %s330 = sld [smem:[#allocation4 + $0x6]]
    %s331 = scalar_lea.vmem [#allocation3], %s330
    %v332 = vld [vmem:[%s331] sm:$0x1]
    %v333 = vld [vmem:[#allocation2 + $0x6] sm:$0x1]
    %v334 = vadd.f32 %v332, %v333
    %335 = vst [vmem:[%s331] sm:$0x1] %v334
    %s336 = sld [smem:[#allocation4 + $0x7]]
    %s337 = scalar_lea.vmem [#allocation3], %s336
    %v338 = vld [vmem:[%s337] sm:$0x1]
    %v339 = vld [vmem:[#allocation2 + $0x7] sm:$0x1]
    %v340 = vadd.f32 %v338, %v339
    %341 = vst [vmem:[%s337] sm:$0x1] %v340
    %s342 = sld [smem:[#allocation4 + $0x8]]
    %s343 = scalar_lea.vmem [#allocation3], %s342
    %v344 = vld [vmem:[%s343] sm:$0x1]
    %v345 = vld [vmem:[#allocation2 + $0x8] sm:$0x1]
    %v346 = vadd.f32 %v344, %v345
    %347 = vst [vmem:[%s343] sm:$0x1] %v346
    %s348 = sld [smem:[#allocation4 + $0x9]]
    %s349 = scalar_lea.vmem [#allocation3], %s348
    %v350 = vld [vmem:[%s349] sm:$0x1]
    %v351 = vld [vmem:[#allocation2 + $0x9] sm:$0x1]
    %v352 = vadd.f32 %v350, %v351
    %353 = vst [vmem:[%s349] sm:$0x1] %v352
    %s354 = sld [smem:[#allocation4 + $0xa]]
    %s355 = scalar_lea.vmem [#allocation3], %s354
    %v356 = vld [vmem:[%s355] sm:$0x1]
    %v357 = vld [vmem:[#allocation2 + $0xa] sm:$0x1]
    %v358 = vadd.f32 %v356, %v357
    %359 = vst [vmem:[%s355] sm:$0x1] %v358
    %s360 = sld [smem:[#allocation4 + $0xb]]
    %s361 = scalar_lea.vmem [#allocation3], %s360
    %v362 = vld [vmem:[%s361] sm:$0x1]
    %v363 = vld [vmem:[#allocation2 + $0xb] sm:$0x1]
    %v364 = vadd.f32 %v362, %v363
    %365 = vst [vmem:[%s361] sm:$0x1] %v364
    %s366 = sld [smem:[#allocation4 + $0xc]]
    %s367 = scalar_lea.vmem [#allocation3], %s366
    %v368 = vld [vmem:[%s367] sm:$0x1]
    %v369 = vld [vmem:[#allocation2 + $0xc] sm:$0x1]
    %v370 = vadd.f32 %v368, %v369
    %371 = vst [vmem:[%s367] sm:$0x1] %v370
    %s372 = sld [smem:[#allocation4 + $0xd]]
    %s373 = scalar_lea.vmem [#allocation3], %s372
    %v374 = vld [vmem:[%s373] sm:$0x1]
    %v375 = vld [vmem:[#allocation2 + $0xd] sm:$0x1]
    %v376 = vadd.f32 %v374, %v375
    %377 = vst [vmem:[%s373] sm:$0x1] %v376
    %s378 = sld [smem:[#allocation4 + $0xe]]
    %s379 = scalar_lea.vmem [#allocation3], %s378
    %v380 = vld [vmem:[%s379] sm:$0x1]
    %v381 = vld [vmem:[#allocation2 + $0xe] sm:$0x1]
    %v382 = vadd.f32 %v380, %v381
    %383 = vst [vmem:[%s379] sm:$0x1] %v382
    %s384 = sld [smem:[#allocation4 + $0xf]]
    %s385 = scalar_lea.vmem [#allocation3], %s384
    %v386 = vld [vmem:[%s385] sm:$0x1]
    %v387 = vld [vmem:[#allocation2 + $0xf] sm:$0x1]
    %v388 = vadd.f32 %v386, %v387
    %389 = vst [vmem:[%s385] sm:$0x1] %v388
    %s390 = sld [smem:[#allocation4 + $0x10]]
    %s391 = scalar_lea.vmem [#allocation3], %s390
    %v392 = vld [vmem:[%s391] sm:$0x1]
    %v393 = vld [vmem:[#allocation2 + $0x10] sm:$0x1]
    %v394 = vadd.f32 %v392, %v393
    %395 = vst [vmem:[%s391] sm:$0x1] %v394
    %s396 = sld [smem:[#allocation4 + $0x11]]
    %s397 = scalar_lea.vmem [#allocation3], %s396
    %v398 = vld [vmem:[%s397] sm:$0x1]
    %v399 = vld [vmem:[#allocation2 + $0x11] sm:$0x1]
    %v400 = vadd.f32 %v398, %v399
    %401 = vst [vmem:[%s397] sm:$0x1] %v400
    %s402 = sld [smem:[#allocation4 + $0x12]]
    %s403 = scalar_lea.vmem [#allocation3], %s402
    %v404 = vld [vmem:[%s403] sm:$0x1]
    %v405 = vld [vmem:[#allocation2 + $0x12] sm:$0x1]
    %v406 = vadd.f32 %v404, %v405
    %407 = vst [vmem:[%s403] sm:$0x1] %v406
    %s408 = sld [smem:[#allocation4 + $0x13]]
    %s409 = scalar_lea.vmem [#allocation3], %s408
    %v410 = vld [vmem:[%s409] sm:$0x1]
    %v411 = vld [vmem:[#allocation2 + $0x13] sm:$0x1]
    %v412 = vadd.f32 %v410, %v411
    %413 = vst [vmem:[%s409] sm:$0x1] %v412
    %s414 = sld [smem:[#allocation4 + $0x14]]
    %s415 = scalar_lea.vmem [#allocation3], %s414
    %v416 = vld [vmem:[%s415] sm:$0x1]
    %v417 = vld [vmem:[#allocation2 + $0x14] sm:$0x1]
    %v418 = vadd.f32 %v416, %v417
    %419 = vst [vmem:[%s415] sm:$0x1] %v418
    %s420 = sld [smem:[#allocation4 + $0x15]]
    %s421 = scalar_lea.vmem [#allocation3], %s420
    %v422 = vld [vmem:[%s421] sm:$0x1]
    %v423 = vld [vmem:[#allocation2 + $0x15] sm:$0x1]
    %v424 = vadd.f32 %v422, %v423
    %425 = vst [vmem:[%s421] sm:$0x1] %v424
    %s426 = sld [smem:[#allocation4 + $0x16]]
    %s427 = scalar_lea.vmem [#allocation3], %s426
    %v428 = vld [vmem:[%s427] sm:$0x1]
    %v429 = vld [vmem:[#allocation2 + $0x16] sm:$0x1]
    %v430 = vadd.f32 %v428, %v429
    %431 = vst [vmem:[%s427] sm:$0x1] %v430
    %s432 = sld [smem:[#allocation4 + $0x17]]
    %s433 = scalar_lea.vmem [#allocation3], %s432
    %v434 = vld [vmem:[%s433] sm:$0x1]
    %v435 = vld [vmem:[#allocation2 + $0x17] sm:$0x1]
    %v436 = vadd.f32 %v434, %v435
    %437 = vst [vmem:[%s433] sm:$0x1] %v436
    %s438 = sld [smem:[#allocation4 + $0x18]]
    %s439 = scalar_lea.vmem [#allocation3], %s438
    %v440 = vld [vmem:[%s439] sm:$0x1]
    %v441 = vld [vmem:[#allocation2 + $0x18] sm:$0x1]
    %v442 = vadd.f32 %v440, %v441
    %443 = vst [vmem:[%s439] sm:$0x1] %v442
    %s444 = sld [smem:[#allocation4 + $0x19]]
    %s445 = scalar_lea.vmem [#allocation3], %s444
    %v446 = vld [vmem:[%s445] sm:$0x1]
    %v447 = vld [vmem:[#allocation2 + $0x19] sm:$0x1]
    %v448 = vadd.f32 %v446, %v447
    %449 = vst [vmem:[%s445] sm:$0x1] %v448
    %s450 = sld [smem:[#allocation4 + $0x1a]]
    %s451 = scalar_lea.vmem [#allocation3], %s450
    %v452 = vld [vmem:[%s451] sm:$0x1]
    %v453 = vld [vmem:[#allocation2 + $0x1a] sm:$0x1]
    %v454 = vadd.f32 %v452, %v453
    %455 = vst [vmem:[%s451] sm:$0x1] %v454
    %s456 = sld [smem:[#allocation4 + $0x1b]]
    %s457 = scalar_lea.vmem [#allocation3], %s456
    %v458 = vld [vmem:[%s457] sm:$0x1]
    %v459 = vld [vmem:[#allocation2 + $0x1b] sm:$0x1]
    %v460 = vadd.f32 %v458, %v459
    %461 = vst [vmem:[%s457] sm:$0x1] %v460
    %s462 = sld [smem:[#allocation4 + $0x1c]]
    %s463 = scalar_lea.vmem [#allocation3], %s462
    %v464 = vld [vmem:[%s463] sm:$0x1]
    %v465 = vld [vmem:[#allocation2 + $0x1c] sm:$0x1]
    %v466 = vadd.f32 %v464, %v465
    %467 = vst [vmem:[%s463] sm:$0x1] %v466
    %s468 = sld [smem:[#allocation4 + $0x1d]]
    %s469 = scalar_lea.vmem [#allocation3], %s468
    %v470 = vld [vmem:[%s469] sm:$0x1]
    %v471 = vld [vmem:[#allocation2 + $0x1d] sm:$0x1]
    %v472 = vadd.f32 %v470, %v471
    %473 = vst [vmem:[%s469] sm:$0x1] %v472
    %s474 = sld [smem:[#allocation4 + $0x1e]]
    %s475 = scalar_lea.vmem [#allocation3], %s474
    %v476 = vld [vmem:[%s475] sm:$0x1]
    %v477 = vld [vmem:[#allocation2 + $0x1e] sm:$0x1]
    %v478 = vadd.f32 %v476, %v477
    %479 = vst [vmem:[%s475] sm:$0x1] %v478
    %s480 = sld [smem:[#allocation4 + $0x1f]]
    %s481 = scalar_lea.vmem [#allocation3], %s480
    %v482 = vld [vmem:[%s481] sm:$0x1]
    %v483 = vld [vmem:[#allocation2 + $0x1f] sm:$0x1]
    %v484 = vadd.f32 %v482, %v483
    %485 = vst [vmem:[%s481] sm:$0x1] %v484
    %s486 = sld [smem:[#allocation4 + $0x20]]
    %s487 = scalar_lea.vmem [#allocation3], %s486
    %v488 = vld [vmem:[%s487] sm:$0x1]
    %v489 = vld [vmem:[#allocation2 + $0x20] sm:$0x1]
    %v490 = vadd.f32 %v488, %v489
    %491 = vst [vmem:[%s487] sm:$0x1] %v490
    %s492 = sld [smem:[#allocation4 + $0x21]]
    %s493 = scalar_lea.vmem [#allocation3], %s492
    %v494 = vld [vmem:[%s493] sm:$0x1]
    %v495 = vld [vmem:[#allocation2 + $0x21] sm:$0x1]
    %v496 = vadd.f32 %v494, %v495
    %497 = vst [vmem:[%s493] sm:$0x1] %v496
    %s498 = sld [smem:[#allocation4 + $0x22]]
    %s499 = scalar_lea.vmem [#allocation3], %s498
    %v500 = vld [vmem:[%s499] sm:$0x1]
    %v501 = vld [vmem:[#allocation2 + $0x22] sm:$0x1]
    %v502 = vadd.f32 %v500, %v501
    %503 = vst [vmem:[%s499] sm:$0x1] %v502
    %s504 = sld [smem:[#allocation4 + $0x23]]
    %s505 = scalar_lea.vmem [#allocation3], %s504
    %v506 = vld [vmem:[%s505] sm:$0x1]
    %v507 = vld [vmem:[#allocation2 + $0x23] sm:$0x1]
    %v508 = vadd.f32 %v506, %v507
    %509 = vst [vmem:[%s505] sm:$0x1] %v508
    %s510 = sld [smem:[#allocation4 + $0x24]]
    %s511 = scalar_lea.vmem [#allocation3], %s510
    %v512 = vld [vmem:[%s511] sm:$0x1]
    %v513 = vld [vmem:[#allocation2 + $0x24] sm:$0x1]
    %v514 = vadd.f32 %v512, %v513
    %515 = vst [vmem:[%s511] sm:$0x1] %v514
    %s516 = sld [smem:[#allocation4 + $0x25]]
    %s517 = scalar_lea.vmem [#allocation3], %s516
    %v518 = vld [vmem:[%s517] sm:$0x1]
    %v519 = vld [vmem:[#allocation2 + $0x25] sm:$0x1]
    %v520 = vadd.f32 %v518, %v519
    %521 = vst [vmem:[%s517] sm:$0x1] %v520
    %s522 = sld [smem:[#allocation4 + $0x26]]
    %s523 = scalar_lea.vmem [#allocation3], %s522
    %v524 = vld [vmem:[%s523] sm:$0x1]
    %v525 = vld [vmem:[#allocation2 + $0x26] sm:$0x1]
    %v526 = vadd.f32 %v524, %v525
    %527 = vst [vmem:[%s523] sm:$0x1] %v526
    %s528 = sld [smem:[#allocation4 + $0x27]]
    %s529 = scalar_lea.vmem [#allocation3], %s528
    %v530 = vld [vmem:[%s529] sm:$0x1]
    %v531 = vld [vmem:[#allocation2 + $0x27] sm:$0x1]
    %v532 = vadd.f32 %v530, %v531
    %533 = vst [vmem:[%s529] sm:$0x1] %v532
    %s534 = sld [smem:[#allocation4 + $0x28]]
    %s535 = scalar_lea.vmem [#allocation3], %s534
    %v536 = vld [vmem:[%s535] sm:$0x1]
    %v537 = vld [vmem:[#allocation2 + $0x28] sm:$0x1]
    %v538 = vadd.f32 %v536, %v537
    %539 = vst [vmem:[%s535] sm:$0x1] %v538
    %s540 = sld [smem:[#allocation4 + $0x29]]
    %s541 = scalar_lea.vmem [#allocation3], %s540
    %v542 = vld [vmem:[%s541] sm:$0x1]
    %v543 = vld [vmem:[#allocation2 + $0x29] sm:$0x1]
    %v544 = vadd.f32 %v542, %v543
    %545 = vst [vmem:[%s541] sm:$0x1] %v544
    %s546 = sld [smem:[#allocation4 + $0x2a]]
    %s547 = scalar_lea.vmem [#allocation3], %s546
    %v548 = vld [vmem:[%s547] sm:$0x1]
    %v549 = vld [vmem:[#allocation2 + $0x2a] sm:$0x1]
    %v550 = vadd.f32 %v548, %v549
    %551 = vst [vmem:[%s547] sm:$0x1] %v550
    %s552 = sld [smem:[#allocation4 + $0x2b]]
    %s553 = scalar_lea.vmem [#allocation3], %s552
    %v554 = vld [vmem:[%s553] sm:$0x1]
    %v555 = vld [vmem:[#allocation2 + $0x2b] sm:$0x1]
    %v556 = vadd.f32 %v554, %v555
    %557 = vst [vmem:[%s553] sm:$0x1] %v556
    %s558 = sld [smem:[#allocation4 + $0x2c]]
    %s559 = scalar_lea.vmem [#allocation3], %s558
    %v560 = vld [vmem:[%s559] sm:$0x1]
    %v561 = vld [vmem:[#allocation2 + $0x2c] sm:$0x1]
    %v562 = vadd.f32 %v560, %v561
    %563 = vst [vmem:[%s559] sm:$0x1] %v562
    %s564 = sld [smem:[#allocation4 + $0x2d]]
    %s565 = scalar_lea.vmem [#allocation3], %s564
    %v566 = vld [vmem:[%s565] sm:$0x1]
    %v567 = vld [vmem:[#allocation2 + $0x2d] sm:$0x1]
    %v568 = vadd.f32 %v566, %v567
    %569 = vst [vmem:[%s565] sm:$0x1] %v568
    %s570 = sld [smem:[#allocation4 + $0x2e]]
    %s571 = scalar_lea.vmem [#allocation3], %s570
    %v572 = vld [vmem:[%s571] sm:$0x1]
    %v573 = vld [vmem:[#allocation2 + $0x2e] sm:$0x1]
    %v574 = vadd.f32 %v572, %v573
    %575 = vst [vmem:[%s571] sm:$0x1] %v574
    %s576 = sld [smem:[#allocation4 + $0x2f]]
    %s577 = scalar_lea.vmem [#allocation3], %s576
    %v578 = vld [vmem:[%s577] sm:$0x1]
    %v579 = vld [vmem:[#allocation2 + $0x2f] sm:$0x1]
    %v580 = vadd.f32 %v578, %v579
    %581 = vst [vmem:[%s577] sm:$0x1] %v580
    %s582 = sld [smem:[#allocation4 + $0x30]]
    %s583 = scalar_lea.vmem [#allocation3], %s582
    %v584 = vld [vmem:[%s583] sm:$0x1]
    %v585 = vld [vmem:[#allocation2 + $0x30] sm:$0x1]
    %v586 = vadd.f32 %v584, %v585
    %587 = vst [vmem:[%s583] sm:$0x1] %v586
    %s588 = sld [smem:[#allocation4 + $0x31]]
    %s589 = scalar_lea.vmem [#allocation3], %s588
    %v590 = vld [vmem:[%s589] sm:$0x1]
    %v591 = vld [vmem:[#allocation2 + $0x31] sm:$0x1]
    %v592 = vadd.f32 %v590, %v591
    %593 = vst [vmem:[%s589] sm:$0x1] %v592
    %s594 = sld [smem:[#allocation4 + $0x32]]
    %s595 = scalar_lea.vmem [#allocation3], %s594
    %v596 = vld [vmem:[%s595] sm:$0x1]
    %v597 = vld [vmem:[#allocation2 + $0x32] sm:$0x1]
    %v598 = vadd.f32 %v596, %v597
    %599 = vst [vmem:[%s595] sm:$0x1] %v598
    %s600 = sld [smem:[#allocation4 + $0x33]]
    %s601 = scalar_lea.vmem [#allocation3], %s600
    %v602 = vld [vmem:[%s601] sm:$0x1]
    %v603 = vld [vmem:[#allocation2 + $0x33] sm:$0x1]
    %v604 = vadd.f32 %v602, %v603
    %605 = vst [vmem:[%s601] sm:$0x1] %v604
    %s606 = sld [smem:[#allocation4 + $0x34]]
    %s607 = scalar_lea.vmem [#allocation3], %s606
    %v608 = vld [vmem:[%s607] sm:$0x1]
    %v609 = vld [vmem:[#allocation2 + $0x34] sm:$0x1]
    %v610 = vadd.f32 %v608, %v609
    %611 = vst [vmem:[%s607] sm:$0x1] %v610
    %s612 = sld [smem:[#allocation4 + $0x35]]
    %s613 = scalar_lea.vmem [#allocation3], %s612
    %v614 = vld [vmem:[%s613] sm:$0x1]
    %v615 = vld [vmem:[#allocation2 + $0x35] sm:$0x1]
    %v616 = vadd.f32 %v614, %v615
    %617 = vst [vmem:[%s613] sm:$0x1] %v616
    %s618 = sld [smem:[#allocation4 + $0x36]]
    %s619 = scalar_lea.vmem [#allocation3], %s618
    %v620 = vld [vmem:[%s619] sm:$0x1]
    %v621 = vld [vmem:[#allocation2 + $0x36] sm:$0x1]
    %v622 = vadd.f32 %v620, %v621
    %623 = vst [vmem:[%s619] sm:$0x1] %v622
    %s624 = sld [smem:[#allocation4 + $0x37]]
    %s625 = scalar_lea.vmem [#allocation3], %s624
    %v626 = vld [vmem:[%s625] sm:$0x1]
    %v627 = vld [vmem:[#allocation2 + $0x37] sm:$0x1]
    %v628 = vadd.f32 %v626, %v627
    %629 = vst [vmem:[%s625] sm:$0x1] %v628
    %s630 = sld [smem:[#allocation4 + $0x38]]
    %s631 = scalar_lea.vmem [#allocation3], %s630
    %v632 = vld [vmem:[%s631] sm:$0x1]
    %v633 = vld [vmem:[#allocation2 + $0x38] sm:$0x1]
    %v634 = vadd.f32 %v632, %v633
    %635 = vst [vmem:[%s631] sm:$0x1] %v634
    %s636 = sld [smem:[#allocation4 + $0x39]]
    %s637 = scalar_lea.vmem [#allocation3], %s636
    %v638 = vld [vmem:[%s637] sm:$0x1]
    %v639 = vld [vmem:[#allocation2 + $0x39] sm:$0x1]
    %v640 = vadd.f32 %v638, %v639
    %641 = vst [vmem:[%s637] sm:$0x1] %v640
    %s642 = sld [smem:[#allocation4 + $0x3a]]
    %s643 = scalar_lea.vmem [#allocation3], %s642
    %v644 = vld [vmem:[%s643] sm:$0x1]
    %v645 = vld [vmem:[#allocation2 + $0x3a] sm:$0x1]
    %v646 = vadd.f32 %v644, %v645
    %647 = vst [vmem:[%s643] sm:$0x1] %v646
    %s648 = sld [smem:[#allocation4 + $0x3b]]
    %s649 = scalar_lea.vmem [#allocation3], %s648
    %v650 = vld [vmem:[%s649] sm:$0x1]
    %v651 = vld [vmem:[#allocation2 + $0x3b] sm:$0x1]
    %v652 = vadd.f32 %v650, %v651
    %653 = vst [vmem:[%s649] sm:$0x1] %v652
    %s654 = sld [smem:[#allocation4 + $0x3c]]
    %s655 = scalar_lea.vmem [#allocation3], %s654
    %v656 = vld [vmem:[%s655] sm:$0x1]
    %v657 = vld [vmem:[#allocation2 + $0x3c] sm:$0x1]
    %v658 = vadd.f32 %v656, %v657
    %659 = vst [vmem:[%s655] sm:$0x1] %v658
    %s660 = sld [smem:[#allocation4 + $0x3d]]
    %s661 = scalar_lea.vmem [#allocation3], %s660
    %v662 = vld [vmem:[%s661] sm:$0x1]
    %v663 = vld [vmem:[#allocation2 + $0x3d] sm:$0x1]
    %v664 = vadd.f32 %v662, %v663
    %665 = vst [vmem:[%s661] sm:$0x1] %v664
    %s666 = sld [smem:[#allocation4 + $0x3e]]
    %s667 = scalar_lea.vmem [#allocation3], %s666
    %v668 = vld [vmem:[%s667] sm:$0x1]
    %v669 = vld [vmem:[#allocation2 + $0x3e] sm:$0x1]
    %v670 = vadd.f32 %v668, %v669
    %671 = vst [vmem:[%s667] sm:$0x1] %v670
    %s672 = sld [smem:[#allocation4 + $0x3f]]
    %s673 = scalar_lea.vmem [#allocation3], %s672
    %v674 = vld [vmem:[%s673] sm:$0x1]
    %v675 = vld [vmem:[#allocation2 + $0x3f] sm:$0x1]
    %v676 = vadd.f32 %v674, %v675
    %677 = vst [vmem:[%s673] sm:$0x1] %v676
    %v678 = vld [vmem:[%s1] sm:$0xf]
    %v679 = vld [vmem:[%s1 + $0x4] sm:$0xf]
    %v680 = vld [vmem:[%s1 + $0x8] sm:$0xf]
    %v681 = vld [vmem:[%s1 + $0xc] sm:$0xf]
    %v682 = vld [vmem:[%s3] sm:$0xf]
    %v683 = vld [vmem:[%s3 + $0x4] sm:$0xf]
    %v684 = vld [vmem:[%s3 + $0x8] sm:$0xf]
    %v685 = vld [vmem:[%s3 + $0xc] sm:$0xf]
    %v686 = vld [vmem:[%s3 + $0x10] sm:$0xf]
    %v687 = vld [vmem:[%s3 + $0x14] sm:$0xf]
    %v688 = vld [vmem:[%s3 + $0x18] sm:$0xf]
    %v689 = vld [vmem:[%s3 + $0x1c] sm:$0xf]
    %v690 = vld [vmem:[%s3 + $0x20] sm:$0xf]
    %v691 = vld [vmem:[%s3 + $0x24] sm:$0xf]
    %v692 = vld [vmem:[%s3 + $0x28] sm:$0xf]
    %v693 = vld [vmem:[%s3 + $0x2c] sm:$0xf]
    %v694 = vld [vmem:[%s3 + $0x30] sm:$0xf]
    %v695 = vld [vmem:[%s3 + $0x34] sm:$0xf]
    %v696 = vld [vmem:[%s3 + $0x38] sm:$0xf]
    %v697 = vld [vmem:[%s3 + $0x3c] sm:$0xf]
    %v698 = vld [vmem:[#allocation3] sm:$0xff]
    %v699 = vld [vmem:[#allocation3 + $0x8] sm:$0xff]
    %v700 = vld [vmem:[#allocation3 + $0x10] sm:$0xff]
    %v701 = vld [vmem:[#allocation3 + $0x18] sm:$0xff]
    %v702 = vld [vmem:[%s6] sm:$0x1]
    %v704 = vlaneseq
    %v705 = vshrl.u32 %v704, 7
    %v706 = vsub.s32 0, %v705
    %v707 = vrot.slane %v702, %v706
    %v713 = vunpack.c.l.b16 %v678
    %v714 = vunpack.c.l.b16 %v679
    %v715 = vunpack.c.l.b16 %v680
    %v716 = vunpack.c.l.b16 %v681
    %v717 = vpack.c.b16 %v714, %v713
    %v718 = vpack.c.b16 %v716, %v715
    %v737 = vunpack.c.l.b16 %v682
    %v738 = vunpack.c.l.b16 %v683
    %v739 = vunpack.c.l.b16 %v684
    %v740 = vunpack.c.l.b16 %v685
    %v741 = vunpack.c.l.b16 %v686
    %v742 = vunpack.c.l.b16 %v687
    %v743 = vunpack.c.l.b16 %v688
    %v744 = vunpack.c.l.b16 %v689
    %v745 = vunpack.c.l.b16 %v690
    %v746 = vunpack.c.l.b16 %v691
    %v747 = vunpack.c.l.b16 %v692
    %v748 = vunpack.c.l.b16 %v693
    %v749 = vunpack.c.l.b16 %v694
    %v750 = vunpack.c.l.b16 %v695
    %v751 = vunpack.c.l.b16 %v696
    %v752 = vunpack.c.l.b16 %v697
    %v753 = vpack.c.b16 %v738, %v737
    %v754 = vpack.c.b16 %v740, %v739
    %v755 = vpack.c.b16 %v742, %v741
    %v756 = vpack.c.b16 %v744, %v743
    %v757 = vpack.c.b16 %v746, %v745
    %v758 = vpack.c.b16 %v748, %v747
    %v759 = vpack.c.b16 %v750, %v749
    %v760 = vpack.c.b16 %v752, %v751
    %769 = vmatprep.subr.bf16.mxu0 0
    %770 = vmatpush1.bf16.msra.mxu0 %v760
    %771 = vmatprep.subr.bf16.mxu0 0
    %772 = vmatpush1.bf16.msra.mxu0 %v759
    %773 = vmatprep.subr.bf16.mxu0 0
    %774 = vmatpush1.bf16.msra.mxu0 %v758
    %775 = vmatprep.subr.bf16.mxu0 0
    %776 = vmatpush1.bf16.msra.mxu0 %v757
    %777 = vmatprep.subr.bf16.mxu0 0
    %778 = vmatpush1.bf16.msra.mxu0 %v756
    %779 = vmatprep.subr.bf16.mxu0 0
    %780 = vmatpush1.bf16.msra.mxu0 %v755
    %781 = vmatprep.subr.bf16.mxu0 0
    %782 = vmatpush1.bf16.msra.mxu0 %v754
    %783 = vmatprep.subr.bf16.mxu0 0
    %784 = vmatpush1.bf16.msra.mxu0 %v753
    %785 = vmatprep.subr.bf16.mxu0 0
    %786 = vmatpush2.bf16.msra.mxu0 0
    %787 = vmatprep.subr.bf16.mxu0 0
    %788 = vmatpush2.bf16.msra.mxu0 0
    %789 = vmatprep.subr.bf16.mxu0 0
    %790 = vmatpush2.bf16.msra.mxu0 0
    %791 = vmatprep.subr.bf16.mxu0 0
    %792 = vmatpush2.bf16.msra.mxu0 0
    %793 = vmatprep.subr.bf16.mxu0 0
    %794 = vmatpush2.bf16.msra.mxu0 0
    %795 = vmatprep.subr.bf16.mxu0 0
    %796 = vmatpush2.bf16.msra.mxu0 0
    %797 = vmatprep.subr.bf16.mxu0 0
    %798 = vmatpush2.bf16.msra.mxu0 0
    %799 = vmatprep.subr.bf16.mxu0 0
    %800 = vmatpush2.bf16.msra.mxu0 0
    %801 = vmatprep.mubr.bf16.mxu0 0
    %802 = vmatmul.mubr.bf16.gmra.mxu0 %v717
    %v803 = vpop.f32.mrf.mxu0
    %v804 = vadd.f32 %v707, %v803
    %v805 = vpop.f32.mrf.mxu0
    %v806 = vpop.f32.mrf.mxu0
    %v807 = vadd.f32 %v707, %v806
    %v808 = vpop.f32.mrf.mxu0
    %809 = vmatprep.mubr.bf16.mxu0 0
    %810 = vmatmul.mubr.bf16.gmra.mxu0 %v718
    %v811 = vpop.f32.mrf.mxu0
    %v812 = vadd.f32 %v707, %v811
    %v813 = vpop.f32.mrf.mxu0
    %v814 = vpop.f32.mrf.mxu0
    %v815 = vadd.f32 %v707, %v814
    %v816 = vpop.f32.mrf.mxu0
    %817 = vdwg.mxu0
    %v818 = vmax.f32 %v804, 0.0
    %v819 = vmax.f32 %v807, 0.0
    %v820 = vmax.f32 %v812, 0.0
    %v821 = vmax.f32 %v815, 0.0
    %v822 = vld [vmem:[%s7] sm:$0xff]
    %v823 = vld [vmem:[%s7 + $0x8] sm:$0xff]
    %v824 = vld [vmem:[%s7 + $0x10] sm:$0xff]
    %v825 = vld [vmem:[%s7 + $0x18] sm:$0xff]
    %827 = vset.pattern.permute.xlu0 0
    %828 = vperm.xlu0 %827, %v822
    %v829 = vpop.permute.xlu0 %828
    %832 = vset.pattern.permute.xlu0 0
    %833 = vperm.xlu0 %832, %v823
    %v834 = vpop.permute.xlu0 %833
    %837 = vset.pattern.permute.xlu0 0
    %838 = vperm.xlu0 %837, %v824
    %v839 = vpop.permute.xlu0 %838
    %842 = vset.pattern.permute.xlu0 0
    %843 = vperm.xlu0 %842, %v825
    %v844 = vpop.permute.xlu0 %843
    %v846 = vmul.f32 %v818, %v829
    %v847 = vmul.f32 %v819, %v834
    %v848 = vmul.f32 %v820, %v839
    %v849 = vmul.f32 %v821, %v844
    %v850 = vadd.f32 %v698, %v846
    %v851 = vadd.f32 %v699, %v847
    %v852 = vadd.f32 %v700, %v848
    %v853 = vadd.f32 %v701, %v849
    %v854 = vadd.f32 %v850, %v851
    %v855 = vadd.f32 %v854, %v852
    %v856 = vadd.f32 %v855, %v853
    %v857 = vrot.slane %v856, 4
    %v858 = vadd.f32 %v856, %v857
    %v859 = vrot.slane %v858, 2
    %v860 = vadd.f32 %v858, %v859
    %v861 = vrot.slane %v860, 1
    %v862 = vadd.f32 %v860, %v861
    %v863 = vrcp.pop 32.0
    %v864 = vmul.f32 %v862, %v863
    %v865 = vsub.f32 %v850, %v864
    %v866 = vsub.f32 %v851, %v864
    %v867 = vsub.f32 %v852, %v864
    %v868 = vsub.f32 %v853, %v864
    %v869 = vmul.f32 %v865, %v865
    %v870 = vmul.f32 %v866, %v866
    %v871 = vmul.f32 %v867, %v867
    %v872 = vmul.f32 %v868, %v868
    %v873 = vadd.f32 %v869, %v870
    %v874 = vadd.f32 %v873, %v871
    %v875 = vadd.f32 %v874, %v872
    %v876 = vrot.slane %v875, 4
    %v877 = vadd.f32 %v875, %v876
    %v878 = vrot.slane %v877, 2
    %v879 = vadd.f32 %v877, %v878
    %v880 = vrot.slane %v879, 1
    %v881 = vadd.f32 %v879, %v880
    %v882 = vmul.f32 %v881, %v863
    %v883 = vadd.f32 %v882, 1e-05
    %v884 = vrsqrt.pop %v883
    %v885 = vmul.f32 %v865, %v884
    %v886 = vmul.f32 %v866, %v884
    %v887 = vmul.f32 %v867, %v884
    %v888 = vmul.f32 %v868, %v884
    %v889 = vld [vmem:[%s8] sm:$0x1]
    %v891 = vlaneseq
    %v892 = vshrl.u32 %v891, 7
    %v893 = vsub.s32 0, %v892
    %v894 = vrot.slane %v889, %v893
    %v896 = vmul.f32 %v885, %v894
    %v897 = vmul.f32 %v886, %v894
    %v898 = vmul.f32 %v887, %v894
    %v899 = vmul.f32 %v888, %v894
    %v900 = vld [vmem:[%s9] sm:$0x1]
    %v902 = vlaneseq
    %v903 = vshrl.u32 %v902, 7
    %v904 = vsub.s32 0, %v903
    %v905 = vrot.slane %v900, %v904
    %v907 = vadd.f32 %v896, %v905
    %v908 = vadd.f32 %v897, %v905
    %v909 = vadd.f32 %v898, %v905
    %v910 = vadd.f32 %v899, %v905
    %v911 = vmax.f32 %v907, 0.0
    %v912 = vmax.f32 %v908, 0.0
    %v913 = vmax.f32 %v909, 0.0
    %v914 = vmax.f32 %v910, 0.0
    %v915 = vpack.c.bf16 %v912, %v911
    %v916 = vpack.c.bf16 %v914, %v913
    %v919 = vunpack.c.l.b16 %v915
    %v920 = vunpack.c.h.b16 %v915
    %v921 = vunpack.c.l.b16 %v916
    %v922 = vunpack.c.h.b16 %v916
    %v923 = vpack.c.b16 %v919, %v919
    %v924 = vpack.c.b16 %v920, %v920
    %v925 = vpack.c.b16 %v921, %v921
    %v926 = vpack.c.b16 %v922, %v922
    %931 = vst [vmem:[%s10] sm:$0xf] %v923
    %932 = vst [vmem:[%s10 + $0x4] sm:$0xf] %v924
    %933 = vst [vmem:[%s10 + $0x8] sm:$0xf] %v925
    %934 = vst [vmem:[%s10 + $0xc] sm:$0xf] %v926
    // Predicated region
    $region46: #{gcn_forward.4} parent=1 // pred_check
      _
    $region47: #{gcn_forward.4} parent=1 // pred_check_branch
      %936 = sbr.rel (0) target = $region49
    $region48: #{gcn_forward.4} parent=1 // pred_region
      _
    $region49: #{gcn_forward.4} parent=1 // pred_fallthru
      _
    // Predicated region
    $region50: #{gcn_forward.4} parent=1 // pred_check
      _
    $region51: #{gcn_forward.4} parent=1 // pred_check_branch
      %938 = sbr.rel (0) target = $region53
    $region52: #{gcn_forward.4} parent=1 // pred_region
      _
    $region53: #{gcn_forward.4} parent=1 // pred_fallthru
      _
    %939 = vsyncpa [#allocation5], 1

</llo_original>
